<compile_context>
chip_gen: v7x
topology: tpu7x:2x2x1
jax: 0.10.0
libtpu: 0.0.40
codegen_flags: <defaults>
</compile_context>

<pallas_src>
import functools
import math

import jax
import jax.numpy as jnp
import numpy as np
from jax import lax
from jax.experimental import pallas as pl
from jax.experimental.pallas import tpu as pltpu


# ----------------------------------------------------------------------------
# helpers
# ----------------------------------------------------------------------------
_SQRT_2_OVER_PI = 0.7978845608028654


def _gelu_tanh(x):
    # TODO(synk): tanh-GELU approximation (<= ~3e-3 abs deviation from nn.GELU's
    # exact erf form); Mosaic has no guaranteed erf lowering and tanh maps onto
    # the otherwise-idle EUP slot.
    return 0.5 * x * (1.0 + jnp.tanh(_SQRT_2_OVER_PI * (x + 0.044715 * x * x * x)))


def adaptive_pool_matrix(in_size, out_size=7):
    # AdaptiveAvgPool: output i averages input [floor(i*in/out), ceil((i+1)*in/out))
    P = np.zeros((out_size, in_size), dtype=np.float32)
    for i in range(out_size):
        s = (i * in_size) // out_size
        e = -((-(i + 1) * in_size) // out_size)
        P[i, s:e] = 1.0 / (e - s)
    return P


@functools.lru_cache(maxsize=None)
def build_pool_matrix(H, W, out=7):
    # Cached: rebuilt only once per (H, W); inside jit it becomes a constant.
    Ph = adaptive_pool_matrix(H, out)
    Pw = adaptive_pool_matrix(W, out)
    return np.einsum("ih,jw->ijhw", Ph, Pw).reshape(out * out, H * W).astype(np.float32)


# ----------------------------------------------------------------------------
# Kernel 1: linear spatial reduce (pool -> 1x1 conv -> LayerNorm -> GELU)
#           k and v of the SAME batch are processed in one grid step (two
#           separate inputs/outputs; no HBM stack / concat of full-res tensors).
# ----------------------------------------------------------------------------
def _sr_body(x_ref, pool_ref, w_ref, b_ref, g_ref, beta_ref, o_ref):
    x = x_ref[0].astype(jnp.bfloat16)                                     # [N, C]
    pooled = jnp.dot(pool_ref[...], x, preferred_element_type=jnp.float32)    # [49, C]
    y = jnp.dot(pooled.astype(jnp.bfloat16), w_ref[...],
                preferred_element_type=jnp.float32) + b_ref[...]
    # LayerNorm in f32 (VPU), eps matches nn.LayerNorm default.
    mean = jnp.mean(y, axis=-1, keepdims=True)
    var = jnp.mean(jnp.square(y - mean), axis=-1, keepdims=True)
    y = (y - mean) * lax.rsqrt(var + 1e-5) * g_ref[...] + beta_ref[...]
    o_ref[0] = _gelu_tanh(y).astype(o_ref.dtype)                          # bf16 out


def _make_sr_kernel(two_streams):
    if two_streams:
        def kernel(k_ref, v_ref, pool_ref, w_ref, b_ref, g_ref, beta_ref,
                   kr_ref, vr_ref):
            # k and v of one batch share a grid step: amortizes the per-step
            # overhead and the pool-matrix / weight DMAs.
            # TODO(synk): a stacked [2*49, C] conv-matmul LHS would raise MXU
            # row fill further but needs sublane-misaligned concat/split copies.
            _sr_body(k_ref, pool_ref, w_ref, b_ref, g_ref, beta_ref, kr_ref)
            _sr_body(v_ref, pool_ref, w_ref, b_ref, g_ref, beta_ref, vr_ref)
    else:
        def kernel(k_ref, pool_ref, w_ref, b_ref, g_ref, beta_ref, kr_ref):
            _sr_body(k_ref, pool_ref, w_ref, b_ref, g_ref, beta_ref, kr_ref)
    return kernel


def linear_spatial_reduce(k, v, pool_bf, w_sr_bf, b_sr, ln_w, ln_b):
    """Pool -> 1x1 conv -> LN -> GELU.  `v` may be None (shared-k/v path)."""
    B, N, C = k.shape
    P = pool_bf.shape[0]
    two = v is not None
    n_streams = 2 if two else 1

    flops = 2 * B * n_streams * (P * N * C + P * C * C)
    transcendentals = B * n_streams * P * C                                # tanh
    bytes_accessed = (B * n_streams * N * C * 4 + P * N * 2 + C * C * 2
                      + 3 * C * 4 + B * n_streams * P * C * 2)

    per_batch = pl.BlockSpec((1, N, C), lambda b: (b, 0, 0))
    inv = lambda b: (0, 0)
    weight_specs = [
        pl.BlockSpec((P, N), inv),
        pl.BlockSpec((C, C), inv),
        pl.BlockSpec((1, C), inv),
        pl.BlockSpec((1, C), inv),
        pl.BlockSpec((1, C), inv),
    ]
    out_block = pl.BlockSpec((1, P, C), lambda b: (b, 0, 0))

    if two:
        in_specs = [per_batch, per_batch] + weight_specs
        out_shape = (jax.ShapeDtypeStruct((B, P, C), jnp.bfloat16),
                     jax.ShapeDtypeStruct((B, P, C), jnp.bfloat16))
        out_specs = (out_block, out_block)
        args = (k, v, pool_bf, w_sr_bf, b_sr, ln_w, ln_b)
    else:
        in_specs = [per_batch] + weight_specs
        out_shape = jax.ShapeDtypeStruct((B, P, C), jnp.bfloat16)
        out_specs = out_block
        args = (k, pool_bf, w_sr_bf, b_sr, ln_w, ln_b)

    res = pl.pallas_call(
        _make_sr_kernel(two),
        out_shape=out_shape,
        grid=(B,),
        in_specs=in_specs,
        out_specs=out_specs,
        compiler_params=pltpu.CompilerParams(dimension_semantics=("parallel",)),
        cost_estimate=pl.CostEstimate(flops=flops, transcendentals=transcendentals,
                                      bytes_accessed=bytes_accessed),
    )(*args)
    if two:
        return res
    return res, None


# ----------------------------------------------------------------------------
# Kernel 2: head-major multi-head attention, grid = (batch, query tile)
# ----------------------------------------------------------------------------
def _pick_q_tile(nq):
    # Prefer large, sublane-aligned query tiles (>=256 fills the v6e/v7x MXU,
    # 128 for v5e); fall back to the whole query length when small/indivisible.
    for t in (512, 448, 256, 128, 64):
        if nq % t == 0:
            return t
    return nq


def _make_mha_kernel(num_heads, has_mask, return_attn, share_kv):
    def kernel(*refs):
        refs = list(refs)
        q_ref = refs.pop(0)
        kr_ref = refs.pop(0)
        vr_ref = kr_ref if share_kv else refs.pop(0)
        wq_ref = refs.pop(0)      # [heads, C, dh] bf16 (scale pre-folded)
        wk_ref = refs.pop(0)      # [heads, C, dh] bf16
        wv_ref = refs.pop(0)      # [heads, C, dh] bf16
        wo_ref = refs.pop(0)      # [heads, dh, C] bf16
        bq_ref = refs.pop(0)      # [heads, 1, dh] f32 (scale pre-folded)
        bk_ref = refs.pop(0)      # [heads, 1, dh] f32
        bv_ref = refs.pop(0)      # [heads, 1, dh] f32
        bo_ref = refs.pop(0)      # [1, C]         f32
        mask_ref = refs.pop(0) if has_mask else None
        o_ref = refs.pop(0)
        attn_ref = refs.pop(0) if return_attn else None

        qb = q_ref[0].astype(jnp.bfloat16)    # [TQ, C]
        kb = kr_ref[0]                        # [Nk, C] bf16 (SR output)
        vb = vr_ref[0]                        # same ref when share_kv

        # TODO(synk): attention dropout is a no-op here (eval-mode semantics).
        # Head-major loop: only leading-dim weight indexing -> no lane slicing,
        # no masked partial stores, all dots are zero-waste MXU work.
        acc = None
        for h in range(num_heads):
            q_h = (jnp.dot(qb, wq_ref[h], preferred_element_type=jnp.float32)
                   + bq_ref[h]).astype(jnp.bfloat16)                    # [TQ, dh]
            k_h = (jnp.dot(kb, wk_ref[h], preferred_element_type=jnp.float32)
                   + bk_ref[h]).astype(jnp.bfloat16)                    # [Nk, dh]
            v_h = (jnp.dot(vb, wv_ref[h], preferred_element_type=jnp.float32)
                   + bv_ref[h]).astype(jnp.bfloat16)                    # [Nk, dh]
            # Scores via NT dot_general -> no materialised K^T.
            s = lax.dot_general(q_h, k_h, (((1,), (1,)), ((), ())),
                                preferred_element_type=jnp.float32)     # [TQ, Nk]
            if has_mask:
                s = s + mask_ref[...]
            m = jnp.max(s, axis=-1, keepdims=True)
            e = jnp.exp(s - m)
            a = e * pl.reciprocal(jnp.sum(e, axis=-1, keepdims=True), approx=True)
            if return_attn:
                attn_ref[0, h] = a
            ctx = jnp.dot(a.astype(jnp.bfloat16), v_h,
                          preferred_element_type=jnp.float32)           # [TQ, dh]
            part = jnp.dot(ctx.astype(jnp.bfloat16), wo_ref[h],
                           preferred_element_type=jnp.float32)          # [TQ, C]
            acc = part if acc is None else acc + part
        o_ref[0] = (acc + bo_ref[...]).astype(o_ref.dtype)
    return kernel


def multihead_attention(q, kr, vr, wq_h, wk_h, wv_h, wo_h, bq_h, bk_h, bv_h, bo,
                        num_heads, mask_bias=None, return_attn=True):
    B, Nq, C = q.shape
    Nk = kr.shape[1]
    dh = C // num_heads
    share_kv = vr is None
    has_mask = mask_bias is not None
    TQ = _pick_q_tile(Nq)
    nqt = Nq // TQ

    inv3 = lambda b, t: (0, 0, 0)
    inv2 = lambda b, t: (0, 0)

    in_specs = [pl.BlockSpec((1, TQ, C), lambda b, t: (b, t, 0)),
                pl.BlockSpec((1, Nk, C), lambda b, t: (b, 0, 0))]
    args = [q, kr]
    if not share_kv:
        in_specs.append(pl.BlockSpec((1, Nk, C), lambda b, t: (b, 0, 0)))
        args.append(vr)
    in_specs += [
        pl.BlockSpec((num_heads, C, dh), inv3),
        pl.BlockSpec((num_heads, C, dh), inv3),
        pl.BlockSpec((num_heads, C, dh), inv3),
        pl.BlockSpec((num_heads, dh, C), inv3),
        pl.BlockSpec((num_heads, 1, dh), inv3),
        pl.BlockSpec((num_heads, 1, dh), inv3),
        pl.BlockSpec((num_heads, 1, dh), inv3),
        pl.BlockSpec((1, C), inv2),
    ]
    args += [wq_h, wk_h, wv_h, wo_h, bq_h, bk_h, bv_h, bo]
    if has_mask:
        in_specs.append(pl.BlockSpec((TQ, Nk), lambda b, t: (t, 0)))
        args.append(mask_bias)

    out_block = pl.BlockSpec((1, TQ, C), lambda b, t: (b, t, 0))
    if return_attn:
        # TODO(synk): for production set return_attn=False (or emit probs in
        # bf16 with a 128-padded last dim) - the f32 probs tensor dominates the
        # kernel's HBM writes.
        out_shape = (jax.ShapeDtypeStruct((B, Nq, C), jnp.float32),
                     jax.ShapeDtypeStruct((B, num_heads, Nq, Nk), jnp.float32))
        out_specs = (out_block,
                     pl.BlockSpec((1, num_heads, TQ, Nk), lambda b, t: (b, 0, t, 0)))
    else:
        out_shape = jax.ShapeDtypeStruct((B, Nq, C), jnp.float32)
        out_specs = out_block

    kv_streams = 1 if share_kv else 2
    flops = (2 * B * (Nq * C * C                              # Q projection
                      + nqt * kv_streams * Nk * C * C         # K/V per q-tile
                      + Nq * C * C)                           # output projection
             + 2 * B * num_heads * Nq * Nk * dh * 2)          # scores + ctx
    transcendentals = B * num_heads * Nq * Nk
    bytes_accessed = (B * Nq * C * 4 + B * kv_streams * nqt * Nk * C * 2
                      + 4 * num_heads * C * dh * 2
                      + (3 * num_heads * dh + C) * 4
                      + (Nq * Nk * 4 if has_mask else 0)
                      + B * Nq * C * 4
                      + (B * num_heads * Nq * Nk * 4 if return_attn else 0))

    # TODO(synk): on v7x (64 MiB VMEM) set vmem_limit_bytes explicitly and use
    # pipeline_mode=pl.Buffered(1) on the grid-invariant weight/bias blocks;
    # defaults kept here so one kernel stays portable across v5e/v6e/v7x.
    res = pl.pallas_call(
        _make_mha_kernel(num_heads, has_mask, return_attn, share_kv),
        out_shape=out_shape,
        grid=(B, nqt),
        in_specs=in_specs,
        out_specs=out_specs,
        compiler_params=pltpu.CompilerParams(
            dimension_semantics=("parallel", "parallel")),
        cost_estimate=pl.CostEstimate(flops=flops, transcendentals=transcendentals,
                                      bytes_accessed=bytes_accessed),
    )(*args)
    if return_attn:
        return res
    return res, None


# ----------------------------------------------------------------------------
# Module wrapper (parameter setup + jitted forward)
# ----------------------------------------------------------------------------
def init_params(key, d_model):
    C = d_model
    ks = jax.random.split(key, 6)
    std_conv = math.sqrt(2.0 / C)                # Conv2d kaiming-style (1x1 kernel)
    w_sr = jax.random.normal(ks[0], (C, C), jnp.float32) * std_conv   # [out, in]

    def trunc_normal(k):                         # trunc_normal_(std=0.02)
        w = jax.random.normal(k, (C, C), jnp.float32) * 0.02
        return jnp.clip(w, -0.04, 0.04)

    wq, wk, wv, wo = (trunc_normal(ks[i]) for i in range(1, 5))
    zeros = jnp.zeros((1, C), jnp.float32)
    return dict(
        w_sr_t=w_sr.T, b_sr=zeros,
        ln_w=jnp.ones((1, C), jnp.float32), ln_b=zeros,
        w_qkv_t=jnp.concatenate([wq.T, wk.T, wv.T], axis=1),   # [C, 3C]
        b_qkv=jnp.zeros((1, 3 * C), jnp.float32),
        wo_t=wo.T, bo=zeros,
    )


@functools.partial(jax.jit,
                   static_argnames=("H", "W", "num_heads", "return_attn", "share_kv"))
def _linear_sra_impl(params, q, k, v, mask, H, W, num_heads, return_attn, share_kv):
    B, Nq, C = q.shape
    dh = C // num_heads
    scale = 1.0 / math.sqrt(dh)
    pool_bf = jnp.asarray(build_pool_matrix(H, W), jnp.bfloat16)   # jit constant
    w_sr_bf = params["w_sr_t"].astype(jnp.bfloat16)

    # Spatial reduction.  share_kv: reduce once; no duplicated [B, 2*49, C]
    # tensor is ever written to HBM.  Otherwise k and v are reduced in one
    # pallas_call with separate inputs/outputs (no jnp.stack of full-res x).
    kr, vr = linear_spatial_reduce(k, None if share_kv else v, pool_bf, w_sr_bf,
                                   params["b_sr"], params["ln_w"], params["ln_b"])

    # Head-major weight layout (tiny trace-time reshapes, done once outside the
    # kernel): removes all dh-wide lane slicing from the attention hot loop.
    wqkv = params["w_qkv_t"]                                  # [C, 3C]
    bqkv = params["b_qkv"]                                    # [1, 3C]

    def heads_rhs(w):                                         # [C, C] -> [h, C, dh]
        return w.reshape(C, num_heads, dh).transpose(1, 0, 2)

    def heads_bias(b):                                        # [1, C] -> [h, 1, dh]
        return b.reshape(1, num_heads, dh).transpose(1, 0, 2)

    wq_h = (heads_rhs(wqkv[:, :C]) * scale).astype(jnp.bfloat16)   # 1/sqrt(dh) folded
    wk_h = heads_rhs(wqkv[:, C:2 * C]).astype(jnp.bfloat16)
    wv_h = heads_rhs(wqkv[:, 2 * C:]).astype(jnp.bfloat16)
    wo_h = params["wo_t"].reshape(num_heads, dh, C).astype(jnp.bfloat16)
    bq_h = heads_bias(bqkv[:, :C]) * scale
    bk_h = heads_bias(bqkv[:, C:2 * C])
    bv_h = heads_bias(bqkv[:, 2 * C:])

    mask_bias = None
    if mask is not None:
        mask_bias = jnp.where(mask, 0.0, -1e9).astype(jnp.float32)

    return multihead_attention(q, kr, vr, wq_h, wk_h, wv_h, wo_h,
                               bq_h, bk_h, bv_h, params["bo"], num_heads,
                               mask_bias, return_attn)


def linear_sra_forward(params, q, k, v, H, W, num_heads, mask=None, return_attn=True):
    # NOTE: shared-kv dispatch uses Python identity (k is v); numerically-equal
    # but distinct arrays take the (correct, slower) two-stream path.
    return _linear_sra_impl(params, q, k, v, mask, H=H, W=W, num_heads=num_heads,
                            return_attn=return_attn, share_kv=(k is v))


# ----------------------------------------------------------------------------
# Pure-JAX f32 reference (exact-erf GELU) for sanity check
# ----------------------------------------------------------------------------
def reference_forward(params, q, k, v, H, W, num_heads, mask=None):
    B, Nq, C = q.shape
    pool = jnp.asarray(build_pool_matrix(H, W), jnp.float32)

    def sr(x):
        p = jnp.einsum("pn,bnc->bpc", pool, x)
        y = p @ params["w_sr_t"] + params["b_sr"]
        mean = y.mean(-1, keepdims=True)
        var = ((y - mean) ** 2).mean(-1, keepdims=True)
        y = (y - mean) / jnp.sqrt(var + 1e-5) * params["ln_w"] + params["ln_b"]
        return 0.5 * y * (1.0 + jax.scipy.special.erf(y / np.sqrt(2.0)))

    kr, vr = sr(k), sr(v)
    wq_t, wk_t, wv_t = (params["w_qkv_t"][:, i * C:(i + 1) * C] for i in range(3))
    bq, bk, bv = (params["b_qkv"][:, i * C:(i + 1) * C] for i in range(3))
    Q = q @ wq_t + bq
    K = kr @ wk_t + bk
    V = vr @ wv_t + bv
    dh = C // num_heads
    Qh = Q.reshape(B, Nq, num_heads, dh).transpose(0, 2, 1, 3)
    Kh = K.reshape(B, -1, num_heads, dh).transpose(0, 2, 1, 3)
    Vh = V.reshape(B, -1, num_heads, dh).transpose(0, 2, 1, 3)
    s = jnp.einsum("bhqd,bhkd->bhqk", Qh, Kh) / math.sqrt(dh)
    if mask is not None:
        s = s + jnp.where(mask, 0.0, -1e9)
    a = jax.nn.softmax(s, axis=-1)
    ctx = jnp.einsum("bhqk,bhkd->bhqd", a, Vh).transpose(0, 2, 1, 3).reshape(B, Nq, C)
    out = ctx @ params["wo_t"] + params["bo"]
    return out, a


if __name__ == "__main__":
    key = jax.random.PRNGKey(0)
    B, Nq, d_model, num_heads, H, W = 2, 8, 32, 4, 14, 14
    kq, kk, kv_, kp = jax.random.split(key, 4)
    q = jax.random.normal(kq, (B, Nq, d_model), jnp.float32)
    k = jax.random.normal(kk, (B, H * W, d_model), jnp.float32)
    v = jax.random.normal(kv_, (B, H * W, d_model), jnp.float32)
    params = init_params(kp, d_model)

    ATOL, RTOL = 3e-4, 3e-2   # bf16 MXU operands + tanh-GELU vs f32/erf reference

    # 1) distinct k/v, no mask
    out, attn = linear_sra_forward(params, q, k, v, H, W, num_heads, mask=None)
    jax.block_until_ready((out, attn))
    ref_out, ref_attn = reference_forward(params, q, k, v, H, W, num_heads, mask=None)
    assert np.allclose(np.asarray(out), np.asarray(ref_out), atol=ATOL, rtol=RTOL)
    assert np.allclose(np.asarray(attn), np.asarray(ref_attn), atol=ATOL, rtol=RTOL)

    # 2) distinct k/v, lower-triangular mask over the reduced kv length (49)
    Nk = 49
    mask = jnp.tril(jnp.ones((Nq, Nk), dtype=bool))
    out_m, attn_m = linear_sra_forward(params, q, k, v, H, W, num_heads, mask=mask)
    jax.block_until_ready((out_m, attn_m))
    ref_out_m, ref_attn_m = reference_forward(params, q, k, v, H, W, num_heads, mask=mask)
    assert np.allclose(np.asarray(out_m), np.asarray(ref_out_m), atol=ATOL, rtol=RTOL)
    assert np.allclose(np.asarray(attn_m), np.asarray(ref_attn_m), atol=ATOL, rtol=RTOL)

    # 3) shared k/v (the usual LinearSRA call pattern): single SR pass, no concat
    out_s, attn_s = linear_sra_forward(params, q, k, k, H, W, num_heads, mask=None)
    jax.block_until_ready((out_s, attn_s))
    ref_out_s, ref_attn_s = reference_forward(params, q, k, k, H, W, num_heads, mask=None)
    assert np.allclose(np.asarray(out_s), np.asarray(ref_out_s), atol=ATOL, rtol=RTOL)
    assert np.allclose(np.asarray(attn_s), np.asarray(ref_attn_s), atol=ATOL, rtol=RTOL)

    print("KERNEL_OK")
</pallas_src>

<mosaic_0001>
module attributes {stable_mosaic.version = 11 : i64} {
  func.func @kernel(%arg0: i32, %arg1: memref<1x196x32xf32, #tpu.memory_space<vmem>>, %arg2: memref<1x196x32xf32, #tpu.memory_space<vmem>>, %arg3: memref<49x196xbf16, #tpu.memory_space<vmem>>, %arg4: memref<32x32xbf16, #tpu.memory_space<vmem>>, %arg5: memref<1x32xf32, #tpu.memory_space<vmem>>, %arg6: memref<1x32xf32, #tpu.memory_space<vmem>>, %arg7: memref<1x32xf32, #tpu.memory_space<vmem>>, %arg8: memref<1x49x32xbf16, #tpu.memory_space<vmem>>, %arg9: memref<1x49x32xbf16, #tpu.memory_space<vmem>>) attributes {dimension_semantics = [#tpu.dimension_semantics<parallel>], iteration_bounds = array<i64: 2>, scalar_prefetch = 0 : i64, scratch_operands = 0 : i64, tpu.core_type = #tpu.core_type<tc>, window_params = [{transform_indices = @transform_0, window_bounds = array<i64: 1, 196, 32>}, {transform_indices = @transform_1, window_bounds = array<i64: 1, 196, 32>}, {pipeline_mode = #tpu.pipeline_mode<synchronous>, transform_indices = @transform_2, window_bounds = array<i64: 49, 196>}, {pipeline_mode = #tpu.pipeline_mode<synchronous>, transform_indices = @transform_3, window_bounds = array<i64: 32, 32>}, {pipeline_mode = #tpu.pipeline_mode<synchronous>, transform_indices = @transform_4, window_bounds = array<i64: 1, 32>}, {pipeline_mode = #tpu.pipeline_mode<synchronous>, transform_indices = @transform_5, window_bounds = array<i64: 1, 32>}, {pipeline_mode = #tpu.pipeline_mode<synchronous>, transform_indices = @transform_6, window_bounds = array<i64: 1, 32>}, {transform_indices = @transform_7, window_bounds = array<i64: 1, 49, 32>}, {transform_indices = @transform_8, window_bounds = array<i64: 1, 49, 32>}]} {
    %c0 = arith.constant 0 : index
    %c0_0 = arith.constant 0 : index
    %c0_1 = arith.constant 0 : index
    %0 = vector.load %arg1[%c0, %c0_0, %c0_1] : memref<1x196x32xf32, #tpu.memory_space<vmem>>, vector<1x196x32xf32>
    %1 = vector.shape_cast %0 : vector<1x196x32xf32> to vector<196x32xf32>
    %2 = arith.truncf %1 : vector<196x32xf32> to vector<196x32xbf16>
    %c0_2 = arith.constant 0 : index
    %c0_3 = arith.constant 0 : index
    %3 = vector.load %arg3[%c0_2, %c0_3] : memref<49x196xbf16, #tpu.memory_space<vmem>>, vector<49x196xbf16>
    %cst = arith.constant dense<0.000000e+00> : vector<49x32xf32>
    %4 = tpu.matmul %3, %2, %cst {dimension_numbers = #tpu.dot_dimension_numbers<[1], [0], [0], [1], [0, 0, 1, 1], [], []>} : vector<49x196xbf16>, vector<196x32xbf16>, vector<49x32xf32> -> vector<49x32xf32>
    %5 = arith.truncf %4 : vector<49x32xf32> to vector<49x32xbf16>
    %c0_4 = arith.constant 0 : index
    %c0_5 = arith.constant 0 : index
    %6 = vector.load %arg4[%c0_4, %c0_5] : memref<32x32xbf16, #tpu.memory_space<vmem>>, vector<32x32xbf16>
    %cst_6 = arith.constant dense<0.000000e+00> : vector<49x32xf32>
    %7 = tpu.matmul %5, %6, %cst_6 {dimension_numbers = #tpu.dot_dimension_numbers<[1], [0], [0], [1], [0, 0, 1, 1], [], []>} : vector<49x32xbf16>, vector<32x32xbf16>, vector<49x32xf32> -> vector<49x32xf32>
    %c0_7 = arith.constant 0 : index
    %c0_8 = arith.constant 0 : index
    %8 = vector.load %arg5[%c0_7, %c0_8] : memref<1x32xf32, #tpu.memory_space<vmem>>, vector<1x32xf32>
    %9 = vector.broadcast %8 : vector<1x32xf32> to vector<49x32xf32>
    %10 = arith.addf %7, %9 : vector<49x32xf32>
    %cst_9 = arith.constant dense<0.000000e+00> : vector<49xf32>
    %11 = vector.multi_reduction <add>, %10, %cst_9 [1] : vector<49x32xf32> to vector<49xf32>
    %12 = vector.shape_cast %11 : vector<49xf32> to vector<49x1xf32>
    %cst_10 = arith.constant 3.200000e+01 : f32
    %13 = vector.broadcast %cst_10 : f32 to vector<49x1xf32>
    %14 = arith.divf %12, %13 : vector<49x1xf32>
    %15 = vector.broadcast %14 : vector<49x1xf32> to vector<49x32xf32>
    %16 = arith.subf %10, %15 : vector<49x32xf32>
    %17 = arith.mulf %16, %16 : vector<49x32xf32>
    %cst_11 = arith.constant dense<0.000000e+00> : vector<49xf32>
    %18 = vector.multi_reduction <add>, %17, %cst_11 [1] : vector<49x32xf32> to vector<49xf32>
    %19 = vector.shape_cast %18 : vector<49xf32> to vector<49x1xf32>
    %cst_12 = arith.constant 3.200000e+01 : f32
    %20 = vector.broadcast %cst_12 : f32 to vector<49x1xf32>
    %21 = arith.divf %19, %20 : vector<49x1xf32>
    %22 = vector.broadcast %14 : vector<49x1xf32> to vector<49x32xf32>
    %23 = arith.subf %10, %22 : vector<49x32xf32>
    %cst_13 = arith.constant 9.99999974E-6 : f32
    %24 = vector.broadcast %cst_13 : f32 to vector<49x1xf32>
    %25 = arith.addf %21, %24 : vector<49x1xf32>
    %26 = math.rsqrt %25 : vector<49x1xf32>
    %27 = vector.broadcast %26 : vector<49x1xf32> to vector<49x32xf32>
    %28 = arith.mulf %23, %27 : vector<49x32xf32>
    %c0_14 = arith.constant 0 : index
    %c0_15 = arith.constant 0 : index
    %29 = vector.load %arg6[%c0_14, %c0_15] : memref<1x32xf32, #tpu.memory_space<vmem>>, vector<1x32xf32>
    %30 = vector.broadcast %29 : vector<1x32xf32> to vector<49x32xf32>
    %31 = arith.mulf %28, %30 : vector<49x32xf32>
    %c0_16 = arith.constant 0 : index
    %c0_17 = arith.constant 0 : index
    %32 = vector.load %arg7[%c0_16, %c0_17] : memref<1x32xf32, #tpu.memory_space<vmem>>, vector<1x32xf32>
    %33 = vector.broadcast %32 : vector<1x32xf32> to vector<49x32xf32>
    %34 = arith.addf %31, %33 : vector<49x32xf32>
    %cst_18 = arith.constant 5.000000e-01 : f32
    %35 = vector.broadcast %cst_18 : f32 to vector<49x32xf32>
    %36 = arith.mulf %35, %34 : vector<49x32xf32>
    %cst_19 = arith.constant 4.471500e-02 : f32
    %37 = vector.broadcast %cst_19 : f32 to vector<49x32xf32>
    %38 = arith.mulf %37, %34 : vector<49x32xf32>
    %39 = arith.mulf %38, %34 : vector<49x32xf32>
    %40 = arith.mulf %39, %34 : vector<49x32xf32>
    %41 = arith.addf %34, %40 : vector<49x32xf32>
    %cst_20 = arith.constant 0.797884583 : f32
    %42 = vector.broadcast %cst_20 : f32 to vector<49x32xf32>
    %43 = arith.mulf %42, %41 : vector<49x32xf32>
    %44 = math.tanh %43 : vector<49x32xf32>
    %cst_21 = arith.constant 1.000000e+00 : f32
    %45 = vector.broadcast %cst_21 : f32 to vector<49x32xf32>
    %46 = arith.addf %45, %44 : vector<49x32xf32>
    %47 = arith.mulf %36, %46 : vector<49x32xf32>
    %48 = arith.truncf %47 : vector<49x32xf32> to vector<49x32xbf16>
    %c0_22 = arith.constant 0 : index
    %c0_23 = arith.constant 0 : index
    %c0_24 = arith.constant 0 : index
    %49 = vector.load %arg8[%c0_22, %c0_23, %c0_24] : memref<1x49x32xbf16, #tpu.memory_space<vmem>>, vector<1x49x32xbf16>
    %50 = vector.shape_cast %49 : vector<1x49x32xbf16> to vector<49x32xbf16>
    %51 = vector.shape_cast %48 : vector<49x32xbf16> to vector<1x49x32xbf16>
    tpu.vector_store %arg8[%c0_22, %c0_23, %c0_24], %51 {strides = array<i32>} : memref<1x49x32xbf16, #tpu.memory_space<vmem>>, vector<1x49x32xbf16>,
    %c0_25 = arith.constant 0 : index
    %c0_26 = arith.constant 0 : index
    %c0_27 = arith.constant 0 : index
    %52 = vector.load %arg2[%c0_25, %c0_26, %c0_27] : memref<1x196x32xf32, #tpu.memory_space<vmem>>, vector<1x196x32xf32>
    %53 = vector.shape_cast %52 : vector<1x196x32xf32> to vector<196x32xf32>
    %54 = arith.truncf %53 : vector<196x32xf32> to vector<196x32xbf16>
    %c0_28 = arith.constant 0 : index
    %c0_29 = arith.constant 0 : index
    %55 = vector.load %arg3[%c0_28, %c0_29] : memref<49x196xbf16, #tpu.memory_space<vmem>>, vector<49x196xbf16>
    %cst_30 = arith.constant dense<0.000000e+00> : vector<49x32xf32>
    %56 = tpu.matmul %55, %54, %cst_30 {dimension_numbers = #tpu.dot_dimension_numbers<[1], [0], [0], [1], [0, 0, 1, 1], [], []>} : vector<49x196xbf16>, vector<196x32xbf16>, vector<49x32xf32> -> vector<49x32xf32>
    %57 = arith.truncf %56 : vector<49x32xf32> to vector<49x32xbf16>
    %c0_31 = arith.constant 0 : index
    %c0_32 = arith.constant 0 : index
    %58 = vector.load %arg4[%c0_31, %c0_32] : memref<32x32xbf16, #tpu.memory_space<vmem>>, vector<32x32xbf16>
    %cst_33 = arith.constant dense<0.000000e+00> : vector<49x32xf32>
    %59 = tpu.matmul %57, %58, %cst_33 {dimension_numbers = #tpu.dot_dimension_numbers<[1], [0], [0], [1], [0, 0, 1, 1], [], []>} : vector<49x32xbf16>, vector<32x32xbf16>, vector<49x32xf32> -> vector<49x32xf32>
    %c0_34 = arith.constant 0 : index
    %c0_35 = arith.constant 0 : index
    %60 = vector.load %arg5[%c0_34, %c0_35] : memref<1x32xf32, #tpu.memory_space<vmem>>, vector<1x32xf32>
    %61 = vector.broadcast %60 : vector<1x32xf32> to vector<49x32xf32>
    %62 = arith.addf %59, %61 : vector<49x32xf32>
    %cst_36 = arith.constant dense<0.000000e+00> : vector<49xf32>
    %63 = vector.multi_reduction <add>, %62, %cst_36 [1] : vector<49x32xf32> to vector<49xf32>
    %64 = vector.shape_cast %63 : vector<49xf32> to vector<49x1xf32>
    %cst_37 = arith.constant 3.200000e+01 : f32
    %65 = vector.broadcast %cst_37 : f32 to vector<49x1xf32>
    %66 = arith.divf %64, %65 : vector<49x1xf32>
    %67 = vector.broadcast %66 : vector<49x1xf32> to vector<49x32xf32>
    %68 = arith.subf %62, %67 : vector<49x32xf32>
    %69 = arith.mulf %68, %68 : vector<49x32xf32>
    %cst_38 = arith.constant dense<0.000000e+00> : vector<49xf32>
    %70 = vector.multi_reduction <add>, %69, %cst_38 [1] : vector<49x32xf32> to vector<49xf32>
    %71 = vector.shape_cast %70 : vector<49xf32> to vector<49x1xf32>
    %cst_39 = arith.constant 3.200000e+01 : f32
    %72 = vector.broadcast %cst_39 : f32 to vector<49x1xf32>
    %73 = arith.divf %71, %72 : vector<49x1xf32>
    %74 = vector.broadcast %66 : vector<49x1xf32> to vector<49x32xf32>
    %75 = arith.subf %62, %74 : vector<49x32xf32>
    %cst_40 = arith.constant 9.99999974E-6 : f32
    %76 = vector.broadcast %cst_40 : f32 to vector<49x1xf32>
    %77 = arith.addf %73, %76 : vector<49x1xf32>
    %78 = math.rsqrt %77 : vector<49x1xf32>
    %79 = vector.broadcast %78 : vector<49x1xf32> to vector<49x32xf32>
    %80 = arith.mulf %75, %79 : vector<49x32xf32>
    %c0_41 = arith.constant 0 : index
    %c0_42 = arith.constant 0 : index
    %81 = vector.load %arg6[%c0_41, %c0_42] : memref<1x32xf32, #tpu.memory_space<vmem>>, vector<1x32xf32>
    %82 = vector.broadcast %81 : vector<1x32xf32> to vector<49x32xf32>
    %83 = arith.mulf %80, %82 : vector<49x32xf32>
    %c0_43 = arith.constant 0 : index
    %c0_44 = arith.constant 0 : index
    %84 = vector.load %arg7[%c0_43, %c0_44] : memref<1x32xf32, #tpu.memory_space<vmem>>, vector<1x32xf32>
    %85 = vector.broadcast %84 : vector<1x32xf32> to vector<49x32xf32>
    %86 = arith.addf %83, %85 : vector<49x32xf32>
    %cst_45 = arith.constant 5.000000e-01 : f32
    %87 = vector.broadcast %cst_45 : f32 to vector<49x32xf32>
    %88 = arith.mulf %87, %86 : vector<49x32xf32>
    %cst_46 = arith.constant 4.471500e-02 : f32
    %89 = vector.broadcast %cst_46 : f32 to vector<49x32xf32>
    %90 = arith.mulf %89, %86 : vector<49x32xf32>
    %91 = arith.mulf %90, %86 : vector<49x32xf32>
    %92 = arith.mulf %91, %86 : vector<49x32xf32>
    %93 = arith.addf %86, %92 : vector<49x32xf32>
    %cst_47 = arith.constant 0.797884583 : f32
    %94 = vector.broadcast %cst_47 : f32 to vector<49x32xf32>
    %95 = arith.mulf %94, %93 : vector<49x32xf32>
    %96 = math.tanh %95 : vector<49x32xf32>
    %cst_48 = arith.constant 1.000000e+00 : f32
    %97 = vector.broadcast %cst_48 : f32 to vector<49x32xf32>
    %98 = arith.addf %97, %96 : vector<49x32xf32>
    %99 = arith.mulf %88, %98 : vector<49x32xf32>
    %100 = arith.truncf %99 : vector<49x32xf32> to vector<49x32xbf16>
    %c0_49 = arith.constant 0 : index
    %c0_50 = arith.constant 0 : index
    %c0_51 = arith.constant 0 : index
    %101 = vector.load %arg9[%c0_49, %c0_50, %c0_51] : memref<1x49x32xbf16, #tpu.memory_space<vmem>>, vector<1x49x32xbf16>
    %102 = vector.shape_cast %101 : vector<1x49x32xbf16> to vector<49x32xbf16>
    %103 = vector.shape_cast %100 : vector<49x32xbf16> to vector<1x49x32xbf16>
    tpu.vector_store %arg9[%c0_49, %c0_50, %c0_51], %103 {strides = array<i32>} : memref<1x49x32xbf16, #tpu.memory_space<vmem>>, vector<1x49x32xbf16>,
    return
  }
  func.func @transform_0(%arg0: i32) -> (i32, i32, i32) {
    %c0_i32 = arith.constant 0 : i32
    %c0_i32_0 = arith.constant 0 : i32
    %c0_i32_1 = arith.constant 0 : i32
    return %arg0, %c0_i32, %c0_i32_0 : i32, i32, i32
  }
  func.func @transform_1(%arg0: i32) -> (i32, i32, i32) {
    %c0_i32 = arith.constant 0 : i32
    %c0_i32_0 = arith.constant 0 : i32
    %c0_i32_1 = arith.constant 0 : i32
    return %arg0, %c0_i32, %c0_i32_0 : i32, i32, i32
  }
  func.func @transform_2(%arg0: i32) -> (i32, i32) {
    %c0_i32 = arith.constant 0 : i32
    %c0_i32_0 = arith.constant 0 : i32
    %c0_i32_1 = arith.constant 0 : i32
    return %c0_i32, %c0_i32_0 : i32, i32
  }
  func.func @transform_3(%arg0: i32) -> (i32, i32) {
    %c0_i32 = arith.constant 0 : i32
    %c0_i32_0 = arith.constant 0 : i32
    %c0_i32_1 = arith.constant 0 : i32
    return %c0_i32, %c0_i32_0 : i32, i32
  }
  func.func @transform_4(%arg0: i32) -> (i32, i32) {
    %c0_i32 = arith.constant 0 : i32
    %c0_i32_0 = arith.constant 0 : i32
    %c0_i32_1 = arith.constant 0 : i32
    return %c0_i32, %c0_i32_0 : i32, i32
  }
  func.func @transform_5(%arg0: i32) -> (i32, i32) {
    %c0_i32 = arith.constant 0 : i32
    %c0_i32_0 = arith.constant 0 : i32
    %c0_i32_1 = arith.constant 0 : i32
    return %c0_i32, %c0_i32_0 : i32, i32
  }
  func.func @transform_6(%arg0: i32) -> (i32, i32) {
    %c0_i32 = arith.constant 0 : i32
    %c0_i32_0 = arith.constant 0 : i32
    %c0_i32_1 = arith.constant 0 : i32
    return %c0_i32, %c0_i32_0 : i32, i32
  }
  func.func @transform_7(%arg0: i32) -> (i32, i32, i32) {
    %c0_i32 = arith.constant 0 : i32
    %c0_i32_0 = arith.constant 0 : i32
    %c0_i32_1 = arith.constant 0 : i32
    return %arg0, %c0_i32, %c0_i32_0 : i32, i32, i32
  }
  func.func @transform_8(%arg0: i32) -> (i32, i32, i32) {
    %c0_i32 = arith.constant 0 : i32
    %c0_i32_0 = arith.constant 0 : i32
    %c0_i32_1 = arith.constant 0 : i32
    return %arg0, %c0_i32, %c0_i32_0 : i32, i32, i32
  }
}

module attributes {stable_mosaic.version = 11 : i64} {
  func.func @kernel(%arg0: i32, %arg1: i32, %arg2: memref<1x8x32xf32, #tpu.memory_space<vmem>>, %arg3: memref<1x49x32xbf16, #tpu.memory_space<vmem>>, %arg4: memref<1x49x32xbf16, #tpu.memory_space<vmem>>, %arg5: memref<4x32x8xbf16, #tpu.memory_space<vmem>>, %arg6: memref<4x32x8xbf16, #tpu.memory_space<vmem>>, %arg7: memref<4x32x8xbf16, #tpu.memory_space<vmem>>, %arg8: memref<4x8x32xbf16, #tpu.memory_space<vmem>>, %arg9: memref<4x1x8xf32, #tpu.memory_space<vmem>>, %arg10: memref<4x1x8xf32, #tpu.memory_space<vmem>>, %arg11: memref<4x1x8xf32, #tpu.memory_space<vmem>>, %arg12: memref<1x32xf32, #tpu.memory_space<vmem>>, %arg13: memref<1x8x32xf32, #tpu.memory_space<vmem>>, %arg14: memref<1x4x8x49xf32, #tpu.memory_space<vmem>>) attributes {dimension_semantics = [#tpu.dimension_semantics<parallel>, #tpu.dimension_semantics<parallel>], iteration_bounds = array<i64: 2, 1>, scalar_prefetch = 0 : i64, scratch_operands = 0 : i64, tpu.core_type = #tpu.core_type<tc>, window_params = [{transform_indices = @transform_0, window_bounds = array<i64: 1, 8, 32>}, {transform_indices = @transform_1, window_bounds = array<i64: 1, 49, 32>}, {transform_indices = @transform_2, window_bounds = array<i64: 1, 49, 32>}, {pipeline_mode = #tpu.pipeline_mode<synchronous>, transform_indices = @transform_3, window_bounds = array<i64: 4, 32, 8>}, {pipeline_mode = #tpu.pipeline_mode<synchronous>, transform_indices = @transform_4, window_bounds = array<i64: 4, 32, 8>}, {pipeline_mode = #tpu.pipeline_mode<synchronous>, transform_indices = @transform_5, window_bounds = array<i64: 4, 32, 8>}, {pipeline_mode = #tpu.pipeline_mode<synchronous>, transform_indices = @transform_6, window_bounds = array<i64: 4, 8, 32>}, {pipeline_mode = #tpu.pipeline_mode<synchronous>, transform_indices = @transform_7, window_bounds = array<i64: 4, 1, 8>}, {pipeline_mode = #tpu.pipeline_mode<synchronous>, transform_indices = @transform_8, window_bounds = array<i64: 4, 1, 8>}, {pipeline_mode = #tpu.pipeline_mode<synchronous>, transform_indices = @transform_9, window_bounds = array<i64: 4, 1, 8>}, {pipeline_mode = #tpu.pipeline_mode<synchronous>, transform_indices = @transform_10, window_bounds = array<i64: 1, 32>}, {transform_indices = @transform_11, window_bounds = array<i64: 1, 8, 32>}, {transform_indices = @transform_12, window_bounds = array<i64: 1, 4, 8, 49>}]} {
    %c0 = arith.constant 0 : index
    %c0_0 = arith.constant 0 : index
    %c0_1 = arith.constant 0 : index
    %0 = vector.load %arg2[%c0, %c0_0, %c0_1] : memref<1x8x32xf32, #tpu.memory_space<vmem>>, vector<1x8x32xf32>
    %1 = vector.shape_cast %0 : vector<1x8x32xf32> to vector<8x32xf32>
    %2 = arith.truncf %1 : vector<8x32xf32> to vector<8x32xbf16>
    %c0_2 = arith.constant 0 : index
    %c0_3 = arith.constant 0 : index
    %c0_4 = arith.constant 0 : index
    %3 = vector.load %arg3[%c0_2, %c0_3, %c0_4] : memref<1x49x32xbf16, #tpu.memory_space<vmem>>, vector<1x49x32xbf16>
    %4 = vector.shape_cast %3 : vector<1x49x32xbf16> to vector<49x32xbf16>
    %c0_5 = arith.constant 0 : index
    %c0_6 = arith.constant 0 : index
    %c0_7 = arith.constant 0 : index
    %5 = vector.load %arg4[%c0_5, %c0_6, %c0_7] : memref<1x49x32xbf16, #tpu.memory_space<vmem>>, vector<1x49x32xbf16>
    %6 = vector.shape_cast %5 : vector<1x49x32xbf16> to vector<49x32xbf16>
    %c0_8 = arith.constant 0 : index
    %c0_9 = arith.constant 0 : index
    %c0_10 = arith.constant 0 : index
    %7 = vector.load %arg5[%c0_8, %c0_9, %c0_10] : memref<4x32x8xbf16, #tpu.memory_space<vmem>>, vector<1x32x8xbf16>
    %8 = vector.shape_cast %7 : vector<1x32x8xbf16> to vector<32x8xbf16>
    %cst = arith.constant dense<0.000000e+00> : vector<8x8xf32>
    %9 = tpu.matmul %2, %8, %cst {dimension_numbers = #tpu.dot_dimension_numbers<[1], [0], [0], [1], [0, 0, 1, 1], [], []>} : vector<8x32xbf16>, vector<32x8xbf16>, vector<8x8xf32> -> vector<8x8xf32>
    %c0_11 = arith.constant 0 : index
    %c0_12 = arith.constant 0 : index
    %c0_13 = arith.constant 0 : index
    %10 = vector.load %arg9[%c0_11, %c0_12, %c0_13] : memref<4x1x8xf32, #tpu.memory_space<vmem>>, vector<1x1x8xf32>
    %11 = vector.shape_cast %10 : vector<1x1x8xf32> to vector<1x8xf32>
    %12 = vector.broadcast %11 : vector<1x8xf32> to vector<8x8xf32>
    %13 = arith.addf %9, %12 : vector<8x8xf32>
    %14 = arith.truncf %13 : vector<8x8xf32> to vector<8x8xbf16>
    %c0_14 = arith.constant 0 : index
    %c0_15 = arith.constant 0 : index
    %c0_16 = arith.constant 0 : index
    %15 = vector.load %arg6[%c0_14, %c0_15, %c0_16] : memref<4x32x8xbf16, #tpu.memory_space<vmem>>, vector<1x32x8xbf16>
    %16 = vector.shape_cast %15 : vector<1x32x8xbf16> to vector<32x8xbf16>
    %cst_17 = arith.constant dense<0.000000e+00> : vector<49x8xf32>
    %17 = tpu.matmul %4, %16, %cst_17 {dimension_numbers = #tpu.dot_dimension_numbers<[1], [0], [0], [1], [0, 0, 1, 1], [], []>} : vector<49x32xbf16>, vector<32x8xbf16>, vector<49x8xf32> -> vector<49x8xf32>
    %c0_18 = arith.constant 0 : index
    %c0_19 = arith.constant 0 : index
    %c0_20 = arith.constant 0 : index
    %18 = vector.load %arg10[%c0_18, %c0_19, %c0_20] : memref<4x1x8xf32, #tpu.memory_space<vmem>>, vector<1x1x8xf32>
    %19 = vector.shape_cast %18 : vector<1x1x8xf32> to vector<1x8xf32>
    %20 = vector.broadcast %19 : vector<1x8xf32> to vector<49x8xf32>
    %21 = arith.addf %17, %20 : vector<49x8xf32>
    %22 = arith.truncf %21 : vector<49x8xf32> to vector<49x8xbf16>
    %c0_21 = arith.constant 0 : index
    %c0_22 = arith.constant 0 : index
    %c0_23 = arith.constant 0 : index
    %23 = vector.load %arg7[%c0_21, %c0_22, %c0_23] : memref<4x32x8xbf16, #tpu.memory_space<vmem>>, vector<1x32x8xbf16>
    %24 = vector.shape_cast %23 : vector<1x32x8xbf16> to vector<32x8xbf16>
    %cst_24 = arith.constant dense<0.000000e+00> : vector<49x8xf32>
    %25 = tpu.matmul %6, %24, %cst_24 {dimension_numbers = #tpu.dot_dimension_numbers<[1], [0], [0], [1], [0, 0, 1, 1], [], []>} : vector<49x32xbf16>, vector<32x8xbf16>, vector<49x8xf32> -> vector<49x8xf32>
    %c0_25 = arith.constant 0 : index
    %c0_26 = arith.constant 0 : index
    %c0_27 = arith.constant 0 : index
    %26 = vector.load %arg11[%c0_25, %c0_26, %c0_27] : memref<4x1x8xf32, #tpu.memory_space<vmem>>, vector<1x1x8xf32>
    %27 = vector.shape_cast %26 : vector<1x1x8xf32> to vector<1x8xf32>
    %28 = vector.broadcast %27 : vector<1x8xf32> to vector<49x8xf32>
    %29 = arith.addf %25, %28 : vector<49x8xf32>
    %30 = arith.truncf %29 : vector<49x8xf32> to vector<49x8xbf16>
    %cst_28 = arith.constant dense<0.000000e+00> : vector<8x49xf32>
    %31 = tpu.matmul %14, %22, %cst_28 {dimension_numbers = #tpu.dot_dimension_numbers<[1], [1], [0], [0], [0, 0, 1, 0], [], []>} : vector<8x8xbf16>, vector<49x8xbf16>, vector<8x49xf32> -> vector<8x49xf32>
    %cst_29 = arith.constant dense<0xFF800000> : vector<8xf32>
    %32 = vector.multi_reduction <maximumf>, %31, %cst_29 [1] : vector<8x49xf32> to vector<8xf32>
    %33 = vector.shape_cast %32 : vector<8xf32> to vector<8x1xf32>
    %34 = vector.broadcast %33 : vector<8x1xf32> to vector<8x49xf32>
    %35 = arith.subf %31, %34 : vector<8x49xf32>
    %36 = math.exp %35 : vector<8x49xf32>
    %cst_30 = arith.constant dense<0.000000e+00> : vector<8xf32>
    %37 = vector.multi_reduction <add>, %36, %cst_30 [1] : vector<8x49xf32> to vector<8xf32>
    %38 = vector.shape_cast %37 : vector<8xf32> to vector<8x1xf32>
    %39 = tpu.reciprocal %38 {approx = true} : vector<8x1xf32> -> vector<8x1xf32>
    %40 = vector.broadcast %39 : vector<8x1xf32> to vector<8x49xf32>
    %41 = arith.mulf %36, %40 : vector<8x49xf32>
    %c0_31 = arith.constant 0 : index
    %c0_32 = arith.constant 0 : index
    %c0_33 = arith.constant 0 : index
    %c0_34 = arith.constant 0 : index
    %42 = vector.load %arg14[%c0_31, %c0_32, %c0_33, %c0_34] : memref<1x4x8x49xf32, #tpu.memory_space<vmem>>, vector<1x1x8x49xf32>
    %43 = vector.shape_cast %42 : vector<1x1x8x49xf32> to vector<8x49xf32>
    %44 = vector.shape_cast %41 : vector<8x49xf32> to vector<1x1x8x49xf32>
    tpu.vector_store %arg14[%c0_31, %c0_32, %c0_33, %c0_34], %44 {strides = array<i32>} : memref<1x4x8x49xf32, #tpu.memory_space<vmem>>, vector<1x1x8x49xf32>,
    %45 = arith.truncf %41 : vector<8x49xf32> to vector<8x49xbf16>
    %cst_35 = arith.constant dense<0.000000e+00> : vector<8x8xf32>
    %46 = tpu.matmul %45, %30, %cst_35 {dimension_numbers = #tpu.dot_dimension_numbers<[1], [0], [0], [1], [0, 0, 1, 1], [], []>} : vector<8x49xbf16>, vector<49x8xbf16>, vector<8x8xf32> -> vector<8x8xf32>
    %47 = arith.truncf %46 : vector<8x8xf32> to vector<8x8xbf16>
    %c0_36 = arith.constant 0 : index
    %c0_37 = arith.constant 0 : index
    %c0_38 = arith.constant 0 : index
    %48 = vector.load %arg8[%c0_36, %c0_37, %c0_38] : memref<4x8x32xbf16, #tpu.memory_space<vmem>>, vector<1x8x32xbf16>
    %49 = vector.shape_cast %48 : vector<1x8x32xbf16> to vector<8x32xbf16>
    %cst_39 = arith.constant dense<0.000000e+00> : vector<8x32xf32>
    %50 = tpu.matmul %47, %49, %cst_39 {dimension_numbers = #tpu.dot_dimension_numbers<[1], [0], [0], [1], [0, 0, 1, 1], [], []>} : vector<8x8xbf16>, vector<8x32xbf16>, vector<8x32xf32> -> vector<8x32xf32>
    %c1 = arith.constant 1 : index
    %c0_40 = arith.constant 0 : index
    %c0_41 = arith.constant 0 : index
    %51 = vector.load %arg5[%c1, %c0_40, %c0_41] : memref<4x32x8xbf16, #tpu.memory_space<vmem>>, vector<1x32x8xbf16>
    %52 = vector.shape_cast %51 : vector<1x32x8xbf16> to vector<32x8xbf16>
    %cst_42 = arith.constant dense<0.000000e+00> : vector<8x8xf32>
    %53 = tpu.matmul %2, %52, %cst_42 {dimension_numbers = #tpu.dot_dimension_numbers<[1], [0], [0], [1], [0, 0, 1, 1], [], []>} : vector<8x32xbf16>, vector<32x8xbf16>, vector<8x8xf32> -> vector<8x8xf32>
    %c1_43 = arith.constant 1 : index
    %c0_44 = arith.constant 0 : index
    %c0_45 = arith.constant 0 : index
    %54 = vector.load %arg9[%c1_43, %c0_44, %c0_45] : memref<4x1x8xf32, #tpu.memory_space<vmem>>, vector<1x1x8xf32>
    %55 = vector.shape_cast %54 : vector<1x1x8xf32> to vector<1x8xf32>
    %56 = vector.broadcast %55 : vector<1x8xf32> to vector<8x8xf32>
    %57 = arith.addf %53, %56 : vector<8x8xf32>
    %58 = arith.truncf %57 : vector<8x8xf32> to vector<8x8xbf16>
    %c1_46 = arith.constant 1 : index
    %c0_47 = arith.constant 0 : index
    %c0_48 = arith.constant 0 : index
    %59 = vector.load %arg6[%c1_46, %c0_47, %c0_48] : memref<4x32x8xbf16, #tpu.memory_space<vmem>>, vector<1x32x8xbf16>
    %60 = vector.shape_cast %59 : vector<1x32x8xbf16> to vector<32x8xbf16>
    %cst_49 = arith.constant dense<0.000000e+00> : vector<49x8xf32>
    %61 = tpu.matmul %4, %60, %cst_49 {dimension_numbers = #tpu.dot_dimension_numbers<[1], [0], [0], [1], [0, 0, 1, 1], [], []>} : vector<49x32xbf16>, vector<32x8xbf16>, vector<49x8xf32> -> vector<49x8xf32>
    %c1_50 = arith.constant 1 : index
    %c0_51 = arith.constant 0 : index
    %c0_52 = arith.constant 0 : index
    %62 = vector.load %arg10[%c1_50, %c0_51, %c0_52] : memref<4x1x8xf32, #tpu.memory_space<vmem>>, vector<1x1x8xf32>
    %63 = vector.shape_cast %62 : vector<1x1x8xf32> to vector<1x8xf32>
    %64 = vector.broadcast %63 : vector<1x8xf32> to vector<49x8xf32>
    %65 = arith.addf %61, %64 : vector<49x8xf32>
    %66 = arith.truncf %65 : vector<49x8xf32> to vector<49x8xbf16>
    %c1_53 = arith.constant 1 : index
    %c0_54 = arith.constant 0 : index
    %c0_55 = arith.constant 0 : index
    %67 = vector.load %arg7[%c1_53, %c0_54, %c0_55] : memref<4x32x8xbf16, #tpu.memory_space<vmem>>, vector<1x32x8xbf16>
    %68 = vector.shape_cast %67 : vector<1x32x8xbf16> to vector<32x8xbf16>
    %cst_56 = arith.constant dense<0.000000e+00> : vector<49x8xf32>
    %69 = tpu.matmul %6, %68, %cst_56 {dimension_numbers = #tpu.dot_dimension_numbers<[1], [0], [0], [1], [0, 0, 1, 1], [], []>} : vector<49x32xbf16>, vector<32x8xbf16>, vector<49x8xf32> -> vector<49x8xf32>
    %c1_57 = arith.constant 1 : index
    %c0_58 = arith.constant 0 : index
    %c0_59 = arith.constant 0 : index
    %70 = vector.load %arg11[%c1_57, %c0_58, %c0_59] : memref<4x1x8xf32, #tpu.memory_space<vmem>>, vector<1x1x8xf32>
    %71 = vector.shape_cast %70 : vector<1x1x8xf32> to vector<1x8xf32>
    %72 = vector.broadcast %71 : vector<1x8xf32> to vector<49x8xf32>
    %73 = arith.addf %69, %72 : vector<49x8xf32>
    %74 = arith.truncf %73 : vector<49x8xf32> to vector<49x8xbf16>
    %cst_60 = arith.constant dense<0.000000e+00> : vector<8x49xf32>
    %75 = tpu.matmul %58, %66, %cst_60 {dimension_numbers = #tpu.dot_dimension_numbers<[1], [1], [0], [0], [0, 0, 1, 0], [], []>} : vector<8x8xbf16>, vector<49x8xbf16>, vector<8x49xf32> -> vector<8x49xf32>
    %cst_61 = arith.constant dense<0xFF800000> : vector<8xf32>
    %76 = vector.multi_reduction <maximumf>, %75, %cst_61 [1] : vector<8x49xf32> to vector<8xf32>
    %77 = vector.shape_cast %76 : vector<8xf32> to vector<8x1xf32>
    %78 = vector.broadcast %77 : vector<8x1xf32> to vector<8x49xf32>
    %79 = arith.subf %75, %78 : vector<8x49xf32>
    %80 = math.exp %79 : vector<8x49xf32>
    %cst_62 = arith.constant dense<0.000000e+00> : vector<8xf32>
    %81 = vector.multi_reduction <add>, %80, %cst_62 [1] : vector<8x49xf32> to vector<8xf32>
    %82 = vector.shape_cast %81 : vector<8xf32> to vector<8x1xf32>
    %83 = tpu.reciprocal %82 {approx = true} : vector<8x1xf32> -> vector<8x1xf32>
    %84 = vector.broadcast %83 : vector<8x1xf32> to vector<8x49xf32>
    %85 = arith.mulf %80, %84 : vector<8x49xf32>
    %c0_63 = arith.constant 0 : index
    %c1_64 = arith.constant 1 : index
    %c0_65 = arith.constant 0 : index
    %c0_66 = arith.constant 0 : index
    %86 = vector.load %arg14[%c0_63, %c1_64, %c0_65, %c0_66] : memref<1x4x8x49xf32, #tpu.memory_space<vmem>>, vector<1x1x8x49xf32>
    %87 = vector.shape_cast %86 : vector<1x1x8x49xf32> to vector<8x49xf32>
    %88 = vector.shape_cast %85 : vector<8x49xf32> to vector<1x1x8x49xf32>
    tpu.vector_store %arg14[%c0_63, %c1_64, %c0_65, %c0_66], %88 {strides = array<i32>} : memref<1x4x8x49xf32, #tpu.memory_space<vmem>>, vector<1x1x8x49xf32>,
    %89 = arith.truncf %85 : vector<8x49xf32> to vector<8x49xbf16>
    %cst_67 = arith.constant dense<0.000000e+00> : vector<8x8xf32>
    %90 = tpu.matmul %89, %74, %cst_67 {dimension_numbers = #tpu.dot_dimension_numbers<[1], [0], [0], [1], [0, 0, 1, 1], [], []>} : vector<8x49xbf16>, vector<49x8xbf16>, vector<8x8xf32> -> vector<8x8xf32>
    %91 = arith.truncf %90 : vector<8x8xf32> to vector<8x8xbf16>
    %c1_68 = arith.constant 1 : index
    %c0_69 = arith.constant 0 : index
    %c0_70 = arith.constant 0 : index
    %92 = vector.load %arg8[%c1_68, %c0_69, %c0_70] : memref<4x8x32xbf16, #tpu.memory_space<vmem>>, vector<1x8x32xbf16>
    %93 = vector.shape_cast %92 : vector<1x8x32xbf16> to vector<8x32xbf16>
    %cst_71 = arith.constant dense<0.000000e+00> : vector<8x32xf32>
    %94 = tpu.matmul %91, %93, %cst_71 {dimension_numbers = #tpu.dot_dimension_numbers<[1], [0], [0], [1], [0, 0, 1, 1], [], []>} : vector<8x8xbf16>, vector<8x32xbf16>, vector<8x32xf32> -> vector<8x32xf32>
    %95 = arith.addf %50, %94 : vector<8x32xf32>
    %c2 = arith.constant 2 : index
    %c0_72 = arith.constant 0 : index
    %c0_73 = arith.constant 0 : index
    %96 = vector.load %arg5[%c2, %c0_72, %c0_73] : memref<4x32x8xbf16, #tpu.memory_space<vmem>>, vector<1x32x8xbf16>
    %97 = vector.shape_cast %96 : vector<1x32x8xbf16> to vector<32x8xbf16>
    %cst_74 = arith.constant dense<0.000000e+00> : vector<8x8xf32>
    %98 = tpu.matmul %2, %97, %cst_74 {dimension_numbers = #tpu.dot_dimension_numbers<[1], [0], [0], [1], [0, 0, 1, 1], [], []>} : vector<8x32xbf16>, vector<32x8xbf16>, vector<8x8xf32> -> vector<8x8xf32>
    %c2_75 = arith.constant 2 : index
    %c0_76 = arith.constant 0 : index
    %c0_77 = arith.constant 0 : index
    %99 = vector.load %arg9[%c2_75, %c0_76, %c0_77] : memref<4x1x8xf32, #tpu.memory_space<vmem>>, vector<1x1x8xf32>
    %100 = vector.shape_cast %99 : vector<1x1x8xf32> to vector<1x8xf32>
    %101 = vector.broadcast %100 : vector<1x8xf32> to vector<8x8xf32>
    %102 = arith.addf %98, %101 : vector<8x8xf32>
    %103 = arith.truncf %102 : vector<8x8xf32> to vector<8x8xbf16>
    %c2_78 = arith.constant 2 : index
    %c0_79 = arith.constant 0 : index
    %c0_80 = arith.constant 0 : index
    %104 = vector.load %arg6[%c2_78, %c0_79, %c0_80] : memref<4x32x8xbf16, #tpu.memory_space<vmem>>, vector<1x32x8xbf16>
    %105 = vector.shape_cast %104 : vector<1x32x8xbf16> to vector<32x8xbf16>
    %cst_81 = arith.constant dense<0.000000e+00> : vector<49x8xf32>
    %106 = tpu.matmul %4, %105, %cst_81 {dimension_numbers = #tpu.dot_dimension_numbers<[1], [0], [0], [1], [0, 0, 1, 1], [], []>} : vector<49x32xbf16>, vector<32x8xbf16>, vector<49x8xf32> -> vector<49x8xf32>
    %c2_82 = arith.constant 2 : index
    %c0_83 = arith.constant 0 : index
    %c0_84 = arith.constant 0 : index
    %107 = vector.load %arg10[%c2_82, %c0_83, %c0_84] : memref<4x1x8xf32, #tpu.memory_space<vmem>>, vector<1x1x8xf32>
    %108 = vector.shape_cast %107 : vector<1x1x8xf32> to vector<1x8xf32>
    %109 = vector.broadcast %108 : vector<1x8xf32> to vector<49x8xf32>
    %110 = arith.addf %106, %109 : vector<49x8xf32>
    %111 = arith.truncf %110 : vector<49x8xf32> to vector<49x8xbf16>
    %c2_85 = arith.constant 2 : index
    %c0_86 = arith.constant 0 : index
    %c0_87 = arith.constant 0 : index
    %112 = vector.load %arg7[%c2_85, %c0_86, %c0_87] : memref<4x32x8xbf16, #tpu.memory_space<vmem>>, vector<1x32x8xbf16>
    %113 = vector.shape_cast %112 : vector<1x32x8xbf16> to vector<32x8xbf16>
    %cst_88 = arith.constant dense<0.000000e+00> : vector<49x8xf32>
    %114 = tpu.matmul %6, %113, %cst_88 {dimension_numbers = #tpu.dot_dimension_numbers<[1], [0], [0], [1], [0, 0, 1, 1], [], []>} : vector<49x32xbf16>, vector<32x8xbf16>, vector<49x8xf32> -> vector<49x8xf32>
    %c2_89 = arith.constant 2 : index
    %c0_90 = arith.constant 0 : index
    %c0_91 = arith.constant 0 : index
    %115 = vector.load %arg11[%c2_89, %c0_90, %c0_91] : memref<4x1x8xf32, #tpu.memory_space<vmem>>, vector<1x1x8xf32>
    %116 = vector.shape_cast %115 : vector<1x1x8xf32> to vector<1x8xf32>
    %117 = vector.broadcast %116 : vector<1x8xf32> to vector<49x8xf32>
    %118 = arith.addf %114, %117 : vector<49x8xf32>
    %119 = arith.truncf %118 : vector<49x8xf32> to vector<49x8xbf16>
    %cst_92 = arith.constant dense<0.000000e+00> : vector<8x49xf32>
    %120 = tpu.matmul %103, %111, %cst_92 {dimension_numbers = #tpu.dot_dimension_numbers<[1], [1], [0], [0], [0, 0, 1, 0], [], []>} : vector<8x8xbf16>, vector<49x8xbf16>, vector<8x49xf32> -> vector<8x49xf32>
    %cst_93 = arith.constant dense<0xFF800000> : vector<8xf32>
    %121 = vector.multi_reduction <maximumf>, %120, %cst_93 [1] : vector<8x49xf32> to vector<8xf32>
    %122 = vector.shape_cast %121 : vector<8xf32> to vector<8x1xf32>
    %123 = vector.broadcast %122 : vector<8x1xf32> to vector<8x49xf32>
    %124 = arith.subf %120, %123 : vector<8x49xf32>
    %125 = math.exp %124 : vector<8x49xf32>
    %cst_94 = arith.constant dense<0.000000e+00> : vector<8xf32>
    %126 = vector.multi_reduction <add>, %125, %cst_94 [1] : vector<8x49xf32> to vector<8xf32>
    %127 = vector.shape_cast %126 : vector<8xf32> to vector<8x1xf32>
    %128 = tpu.reciprocal %127 {approx = true} : vector<8x1xf32> -> vector<8x1xf32>
    %129 = vector.broadcast %128 : vector<8x1xf32> to vector<8x49xf32>
    %130 = arith.mulf %125, %129 : vector<8x49xf32>
    %c0_95 = arith.constant 0 : index
    %c2_96 = arith.constant 2 : index
    %c0_97 = arith.constant 0 : index
    %c0_98 = arith.constant 0 : index
    %131 = vector.load %arg14[%c0_95, %c2_96, %c0_97, %c0_98] : memref<1x4x8x49xf32, #tpu.memory_space<vmem>>, vector<1x1x8x49xf32>
    %132 = vector.shape_cast %131 : vector<1x1x8x49xf32> to vector<8x49xf32>
    %133 = vector.shape_cast %130 : vector<8x49xf32> to vector<1x1x8x49xf32>
    tpu.vector_store %arg14[%c0_95, %c2_96, %c0_97, %c0_98], %133 {strides = array<i32>} : memref<1x4x8x49xf32, #tpu.memory_space<vmem>>, vector<1x1x8x49xf32>,
    %134 = arith.truncf %130 : vector<8x49xf32> to vector<8x49xbf16>
    %cst_99 = arith.constant dense<0.000000e+00> : vector<8x8xf32>
    %135 = tpu.matmul %134, %119, %cst_99 {dimension_numbers = #tpu.dot_dimension_numbers<[1], [0], [0], [1], [0, 0, 1, 1], [], []>} : vector<8x49xbf16>, vector<49x8xbf16>, vector<8x8xf32> -> vector<8x8xf32>
    %136 = arith.truncf %135 : vector<8x8xf32> to vector<8x8xbf16>
    %c2_100 = arith.constant 2 : index
    %c0_101 = arith.constant 0 : index
    %c0_102 = arith.constant 0 : index
    %137 = vector.load %arg8[%c2_100, %c0_101, %c0_102] : memref<4x8x32xbf16, #tpu.memory_space<vmem>>, vector<1x8x32xbf16>
    %138 = vector.shape_cast %137 : vector<1x8x32xbf16> to vector<8x32xbf16>
    %cst_103 = arith.constant dense<0.000000e+00> : vector<8x32xf32>
    %139 = tpu.matmul %136, %138, %cst_103 {dimension_numbers = #tpu.dot_dimension_numbers<[1], [0], [0], [1], [0, 0, 1, 1], [], []>} : vector<8x8xbf16>, vector<8x32xbf16>, vector<8x32xf32> -> vector<8x32xf32>
    %140 = arith.addf %95, %139 : vector<8x32xf32>
    %c3 = arith.constant 3 : index
    %c0_104 = arith.constant 0 : index
    %c0_105 = arith.constant 0 : index
    %141 = vector.load %arg5[%c3, %c0_104, %c0_105] : memref<4x32x8xbf16, #tpu.memory_space<vmem>>, vector<1x32x8xbf16>
    %142 = vector.shape_cast %141 : vector<1x32x8xbf16> to vector<32x8xbf16>
    %cst_106 = arith.constant dense<0.000000e+00> : vector<8x8xf32>
    %143 = tpu.matmul %2, %142, %cst_106 {dimension_numbers = #tpu.dot_dimension_numbers<[1], [0], [0], [1], [0, 0, 1, 1], [], []>} : vector<8x32xbf16>, vector<32x8xbf16>, vector<8x8xf32> -> vector<8x8xf32>
    %c3_107 = arith.constant 3 : index
    %c0_108 = arith.constant 0 : index
    %c0_109 = arith.constant 0 : index
    %144 = vector.load %arg9[%c3_107, %c0_108, %c0_109] : memref<4x1x8xf32, #tpu.memory_space<vmem>>, vector<1x1x8xf32>
    %145 = vector.shape_cast %144 : vector<1x1x8xf32> to vector<1x8xf32>
    %146 = vector.broadcast %145 : vector<1x8xf32> to vector<8x8xf32>
    %147 = arith.addf %143, %146 : vector<8x8xf32>
    %148 = arith.truncf %147 : vector<8x8xf32> to vector<8x8xbf16>
    %c3_110 = arith.constant 3 : index
    %c0_111 = arith.constant 0 : index
    %c0_112 = arith.constant 0 : index
    %149 = vector.load %arg6[%c3_110, %c0_111, %c0_112] : memref<4x32x8xbf16, #tpu.memory_space<vmem>>, vector<1x32x8xbf16>
    %150 = vector.shape_cast %149 : vector<1x32x8xbf16> to vector<32x8xbf16>
    %cst_113 = arith.constant dense<0.000000e+00> : vector<49x8xf32>
    %151 = tpu.matmul %4, %150, %cst_113 {dimension_numbers = #tpu.dot_dimension_numbers<[1], [0], [0], [1], [0, 0, 1, 1], [], []>} : vector<49x32xbf16>, vector<32x8xbf16>, vector<49x8xf32> -> vector<49x8xf32>
    %c3_114 = arith.constant 3 : index
    %c0_115 = arith.constant 0 : index
    %c0_116 = arith.constant 0 : index
    %152 = vector.load %arg10[%c3_114, %c0_115, %c0_116] : memref<4x1x8xf32, #tpu.memory_space<vmem>>, vector<1x1x8xf32>
    %153 = vector.shape_cast %152 : vector<1x1x8xf32> to vector<1x8xf32>
    %154 = vector.broadcast %153 : vector<1x8xf32> to vector<49x8xf32>
    %155 = arith.addf %151, %154 : vector<49x8xf32>
    %156 = arith.truncf %155 : vector<49x8xf32> to vector<49x8xbf16>
    %c3_117 = arith.constant 3 : index
    %c0_118 = arith.constant 0 : index
    %c0_119 = arith.constant 0 : index
    %157 = vector.load %arg7[%c3_117, %c0_118, %c0_119] : memref<4x32x8xbf16, #tpu.memory_space<vmem>>, vector<1x32x8xbf16>
    %158 = vector.shape_cast %157 : vector<1x32x8xbf16> to vector<32x8xbf16>
    %cst_120 = arith.constant dense<0.000000e+00> : vector<49x8xf32>
    %159 = tpu.matmul %6, %158, %cst_120 {dimension_numbers = #tpu.dot_dimension_numbers<[1], [0], [0], [1], [0, 0, 1, 1], [], []>} : vector<49x32xbf16>, vector<32x8xbf16>, vector<49x8xf32> -> vector<49x8xf32>
    %c3_121 = arith.constant 3 : index
    %c0_122 = arith.constant 0 : index
    %c0_123 = arith.constant 0 : index
    %160 = vector.load %arg11[%c3_121, %c0_122, %c0_123] : memref<4x1x8xf32, #tpu.memory_space<vmem>>, vector<1x1x8xf32>
    %161 = vector.shape_cast %160 : vector<1x1x8xf32> to vector<1x8xf32>
    %162 = vector.broadcast %161 : vector<1x8xf32> to vector<49x8xf32>
    %163 = arith.addf %159, %162 : vector<49x8xf32>
    %164 = arith.truncf %163 : vector<49x8xf32> to vector<49x8xbf16>
    %cst_124 = arith.constant dense<0.000000e+00> : vector<8x49xf32>
    %165 = tpu.matmul %148, %156, %cst_124 {dimension_numbers = #tpu.dot_dimension_numbers<[1], [1], [0], [0], [0, 0, 1, 0], [], []>} : vector<8x8xbf16>, vector<49x8xbf16>, vector<8x49xf32> -> vector<8x49xf32>
    %cst_125 = arith.constant dense<0xFF800000> : vector<8xf32>
    %166 = vector.multi_reduction <maximumf>, %165, %cst_125 [1] : vector<8x49xf32> to vector<8xf32>
    %167 = vector.shape_cast %166 : vector<8xf32> to vector<8x1xf32>
    %168 = vector.broadcast %167 : vector<8x1xf32> to vector<8x49xf32>
    %169 = arith.subf %165, %168 : vector<8x49xf32>
    %170 = math.exp %169 : vector<8x49xf32>
    %cst_126 = arith.constant dense<0.000000e+00> : vector<8xf32>
    %171 = vector.multi_reduction <add>, %170, %cst_126 [1] : vector<8x49xf32> to vector<8xf32>
    %172 = vector.shape_cast %171 : vector<8xf32> to vector<8x1xf32>
    %173 = tpu.reciprocal %172 {approx = true} : vector<8x1xf32> -> vector<8x1xf32>
    %174 = vector.broadcast %173 : vector<8x1xf32> to vector<8x49xf32>
    %175 = arith.mulf %170, %174 : vector<8x49xf32>
    %c0_127 = arith.constant 0 : index
    %c3_128 = arith.constant 3 : index
    %c0_129 = arith.constant 0 : index
    %c0_130 = arith.constant 0 : index
    %176 = vector.load %arg14[%c0_127, %c3_128, %c0_129, %c0_130] : memref<1x4x8x49xf32, #tpu.memory_space<vmem>>, vector<1x1x8x49xf32>
    %177 = vector.shape_cast %176 : vector<1x1x8x49xf32> to vector<8x49xf32>
    %178 = vector.shape_cast %175 : vector<8x49xf32> to vector<1x1x8x49xf32>
    tpu.vector_store %arg14[%c0_127, %c3_128, %c0_129, %c0_130], %178 {strides = array<i32>} : memref<1x4x8x49xf32, #tpu.memory_space<vmem>>, vector<1x1x8x49xf32>,
    %179 = arith.truncf %175 : vector<8x49xf32> to vector<8x49xbf16>
    %cst_131 = arith.constant dense<0.000000e+00> : vector<8x8xf32>
    %180 = tpu.matmul %179, %164, %cst_131 {dimension_numbers = #tpu.dot_dimension_numbers<[1], [0], [0], [1], [0, 0, 1, 1], [], []>} : vector<8x49xbf16>, vector<49x8xbf16>, vector<8x8xf32> -> vector<8x8xf32>
    %181 = arith.truncf %180 : vector<8x8xf32> to vector<8x8xbf16>
    %c3_132 = arith.constant 3 : index
    %c0_133 = arith.constant 0 : index
    %c0_134 = arith.constant 0 : index
    %182 = vector.load %arg8[%c3_132, %c0_133, %c0_134] : memref<4x8x32xbf16, #tpu.memory_space<vmem>>, vector<1x8x32xbf16>
    %183 = vector.shape_cast %182 : vector<1x8x32xbf16> to vector<8x32xbf16>
    %cst_135 = arith.constant dense<0.000000e+00> : vector<8x32xf32>
    %184 = tpu.matmul %181, %183, %cst_135 {dimension_numbers = #tpu.dot_dimension_numbers<[1], [0], [0], [1], [0, 0, 1, 1], [], []>} : vector<8x8xbf16>, vector<8x32xbf16>, vector<8x32xf32> -> vector<8x32xf32>
    %185 = arith.addf %140, %184 : vector<8x32xf32>
    %c0_136 = arith.constant 0 : index
    %c0_137 = arith.constant 0 : index
    %186 = vector.load %arg12[%c0_136, %c0_137] : memref<1x32xf32, #tpu.memory_space<vmem>>, vector<1x32xf32>
    %187 = vector.broadcast %186 : vector<1x32xf32> to vector<8x32xf32>
    %188 = arith.addf %185, %187 : vector<8x32xf32>
    %c0_138 = arith.constant 0 : index
    %c0_139 = arith.constant 0 : index
    %c0_140 = arith.constant 0 : index
    %189 = vector.load %arg13[%c0_138, %c0_139, %c0_140] : memref<1x8x32xf32, #tpu.memory_space<vmem>>, vector<1x8x32xf32>
    %190 = vector.shape_cast %189 : vector<1x8x32xf32> to vector<8x32xf32>
    %191 = vector.shape_cast %188 : vector<8x32xf32> to vector<1x8x32xf32>
    tpu.vector_store %arg13[%c0_138, %c0_139, %c0_140], %191 {strides = array<i32>} : memref<1x8x32xf32, #tpu.memory_space<vmem>>, vector<1x8x32xf32>,
    return
  }
  func.func @transform_0(%arg0: i32, %arg1: i32) -> (i32, i32, i32) {
    %c0_i32 = arith.constant 0 : i32
    %c0_i32_0 = arith.constant 0 : i32
    return %arg0, %arg1, %c0_i32 : i32, i32, i32
  }
  func.func @transform_1(%arg0: i32, %arg1: i32) -> (i32, i32, i32) {
    %c0_i32 = arith.constant 0 : i32
    %c0_i32_0 = arith.constant 0 : i32
    %c0_i32_1 = arith.constant 0 : i32
    return %arg0, %c0_i32, %c0_i32_0 : i32, i32, i32
  }
  func.func @transform_2(%arg0: i32, %arg1: i32) -> (i32, i32, i32) {
    %c0_i32 = arith.constant 0 : i32
    %c0_i32_0 = arith.constant 0 : i32
    %c0_i32_1 = arith.constant 0 : i32
    return %arg0, %c0_i32, %c0_i32_0 : i32, i32, i32
  }
  func.func @transform_3(%arg0: i32, %arg1: i32) -> (i32, i32, i32) {
    %c0_i32 = arith.constant 0 : i32
    %c0_i32_0 = arith.constant 0 : i32
    %c0_i32_1 = arith.constant 0 : i32
    %c0_i32_2 = arith.constant 0 : i32
    return %c0_i32, %c0_i32_0, %c0_i32_1 : i32, i32, i32
  }
  func.func @transform_4(%arg0: i32, %arg1: i32) -> (i32, i32, i32) {
    %c0_i32 = arith.constant 0 : i32
    %c0_i32_0 = arith.constant 0 : i32
    %c0_i32_1 = arith.constant 0 : i32
    %c0_i32_2 = arith.constant 0 : i32
    return %c0_i32, %c0_i32_0, %c0_i32_1 : i32, i32, i32
  }
  func.func @transform_5(%arg0: i32, %arg1: i32) -> (i32, i32, i32) {
    %c0_i32 = arith.constant 0 : i32
    %c0_i32_0 = arith.constant 0 : i32
    %c0_i32_1 = arith.constant 0 : i32
    %c0_i32_2 = arith.constant 0 : i32
    return %c0_i32, %c0_i32_0, %c0_i32_1 : i32, i32, i32
  }
  func.func @transform_6(%arg0: i32, %arg1: i32) -> (i32, i32, i32) {
    %c0_i32 = arith.constant 0 : i32
    %c0_i32_0 = arith.constant 0 : i32
    %c0_i32_1 = arith.constant 0 : i32
    %c0_i32_2 = arith.constant 0 : i32
    return %c0_i32, %c0_i32_0, %c0_i32_1 : i32, i32, i32
  }
  func.func @transform_7(%arg0: i32, %arg1: i32) -> (i32, i32, i32) {
    %c0_i32 = arith.constant 0 : i32
    %c0_i32_0 = arith.constant 0 : i32
    %c0_i32_1 = arith.constant 0 : i32
    %c0_i32_2 = arith.constant 0 : i32
    return %c0_i32, %c0_i32_0, %c0_i32_1 : i32, i32, i32
  }
  func.func @transform_8(%arg0: i32, %arg1: i32) -> (i32, i32, i32) {
    %c0_i32 = arith.constant 0 : i32
    %c0_i32_0 = arith.constant 0 : i32
    %c0_i32_1 = arith.constant 0 : i32
    %c0_i32_2 = arith.constant 0 : i32
    return %c0_i32, %c0_i32_0, %c0_i32_1 : i32, i32, i32
  }
  func.func @transform_9(%arg0: i32, %arg1: i32) -> (i32, i32, i32) {
    %c0_i32 = arith.constant 0 : i32
    %c0_i32_0 = arith.constant 0 : i32
    %c0_i32_1 = arith.constant 0 : i32
    %c0_i32_2 = arith.constant 0 : i32
    return %c0_i32, %c0_i32_0, %c0_i32_1 : i32, i32, i32
  }
  func.func @transform_10(%arg0: i32, %arg1: i32) -> (i32, i32) {
    %c0_i32 = arith.constant 0 : i32
    %c0_i32_0 = arith.constant 0 : i32
    %c0_i32_1 = arith.constant 0 : i32
    return %c0_i32, %c0_i32_0 : i32, i32
  }
  func.func @transform_11(%arg0: i32, %arg1: i32) -> (i32, i32, i32) {
    %c0_i32 = arith.constant 0 : i32
    %c0_i32_0 = arith.constant 0 : i32
    return %arg0, %arg1, %c0_i32 : i32, i32, i32
  }
  func.func @transform_12(%arg0: i32, %arg1: i32) -> (i32, i32, i32, i32) {
    %c0_i32 = arith.constant 0 : i32
    %c0_i32_0 = arith.constant 0 : i32
    %c0_i32_1 = arith.constant 0 : i32
    return %arg0, %c0_i32, %arg1, %c0_i32_0 : i32, i32, i32, i32
  }
}

</mosaic_0001>

<llo_original>
// kernel: _linear_sra_impl.2
$region0: #{_linear_sra_impl.2}
  #allocation0 [shape = 'u32[]', space=smem, size = 0x4, offset = 0x4, fixed_abs, tag = 'smem constant byte address 0x4 - core index']
  #allocation1 [shape = 'u32[144,128]{1,0:T(1,128)}', space=vmem, size = 0x12000, scoped, tag = 'internal scratch']
  %s0 = inlined_call_operand.vmem [shape: f32[2,196,32], index: 0, kind: input, shape index: {}]
  %s1 = inlined_call_operand.vmem [shape: f32[2,196,32], index: 1, kind: input, shape index: {}]
  %s2 = inlined_call_operand.vmem [shape: bf16[49,196], index: 2, kind: input, shape index: {}]
  %s3 = inlined_call_operand.vmem [shape: bf16[32,32], index: 3, kind: input, shape index: {}]
  %s4 = inlined_call_operand.vmem [shape: f32[1,32], index: 4, kind: input, shape index: {}]
  %s5 = inlined_call_operand.vmem [shape: f32[1,32], index: 5, kind: input, shape index: {}]
  %s6 = inlined_call_operand.vmem [shape: f32[1,32], index: 6, kind: input, shape index: {}]
  %s7 = inlined_call_operand.vmem [shape: bf16[2,49,32], index: 7, kind: output, shape index: {0}]
  %s8 = inlined_call_operand.vmem [shape: bf16[2,49,32], index: 8, kind: output, shape index: {1}]
  %9 = xla_tuple %s7, %s8
  %s10 = sld [smem:[#allocation0]]
  $region69: #{_linear_sra_impl.2} parent=0
    _
  %s12 = ssub.s32 1, %s10
  %s13 = scalar_select 0, %s12, %s10
  loop: start=0, step=1, limit=4
  $region2: #{_linear_sra_impl.2} parent=0 // loop_pre_header
    _
  $region3: #{_linear_sra_impl.2} parent=0 // loop_header
    %s15 = sphi 0, %s19
    %p16 = scmp.ge.s32.totalorder %s15, 4
    %s25 = sphi 0, %s27
    %s28 = sphi 0, %s25
    %s29 = sphi 0, %s28
    %s45 = sphi 0, %s29
    %s51 = sphi 0, %s53
    %s54 = sphi 0, %s51
    %s55 = sphi 0, %s54
    %s71 = sphi 0, %s55
    %s75 = sphi 0, %s75
    %s77 = sphi 0, %s75
    %s78 = sphi 0, %s77
    %s92 = sphi 0, %s78
    %s96 = sphi 0, %s96
    %s98 = sphi 0, %s96
    %s99 = sphi 0, %s98
    %s113 = sphi 0, %s99
    %s117 = sphi 0, %s117
    %s119 = sphi 0, %s117
    %s120 = sphi 0, %s119
    %s134 = sphi 0, %s120
    %s138 = sphi 0, %s138
    %s140 = sphi 0, %s138
    %s141 = sphi 0, %s140
    %s155 = sphi 0, %s141
    %s159 = sphi 0, %s159
    %s161 = sphi 0, %s159
    %s162 = sphi 0, %s161
    %s176 = sphi 0, %s162
    %s182 = sphi 0, %s184
    %s185 = sphi 0, %s182
    %s186 = sphi 0, %s185
    %s202 = sphi 0, %s186
    %s208 = sphi 0, %s210
    %s211 = sphi 0, %s208
    %s212 = sphi 0, %s211
    %s228 = sphi 0, %s212
  $region4: #{_linear_sra_impl.2} parent=0 // loop_header_branch
    %18 = sbr.rel (%p16) target = $region8
  $region5: #{_linear_sra_impl.2} parent=0 // loop_body
    %s20 = ssub.s32 %s15, 1
    %s21 = ssub.s32 %s15, 2
    %s22 = sadd.s32 %s15, 1
    %s23 = ssub.s32 %s15, %s22
    %p24 = scmp.eq.s32.totalorder %s23, 0
    %s26 = sadd.s32 %s25, 1
    %s27 = scalar_select %p24, %s25, %s26
    %p30 = pneg %p24
    %p31 = scmp.eq.s32.totalorder %s15, 1
    %p32 = por %p30, %p31
    %p33 = scmp.ne.s32.totalorder %s25, %s28
    %p34 = scmp.eq.s32.totalorder %s15, 0
    %p35 = por %p33, %p34
    %p36 = scmp.ne.s32.totalorder %s25, %s28
    %p37 = scmp.eq.s32.totalorder %s20, 1
    %p38 = por %p36, %p37
    %p39 = scmp.ne.s32.totalorder %s28, %s29
    %p40 = scmp.eq.s32.totalorder %s20, 0
    %p41 = por %p39, %p40
    %p42 = scmp.ne.s32.totalorder %s28, %s29
    %p43 = scmp.eq.s32.totalorder %s21, 1
    %p44 = por %p42, %p43
    %p46 = scmp.ne.s32.totalorder %s29, %s45
    %p47 = scmp.eq.s32.totalorder %s21, 0
    %p48 = por %p46, %p47
    %s49 = ssub.s32 %s15, %s22
    %p50 = scmp.eq.s32.totalorder %s49, 0
    %s52 = sadd.s32 %s51, 1
    %s53 = scalar_select %p50, %s51, %s52
    %p56 = pneg %p50
    %p57 = scmp.eq.s32.totalorder %s15, 1
    %p58 = por %p56, %p57
    %p59 = scmp.ne.s32.totalorder %s51, %s54
    %p60 = scmp.eq.s32.totalorder %s15, 0
    %p61 = por %p59, %p60
    %p62 = scmp.ne.s32.totalorder %s51, %s54
    %p63 = scmp.eq.s32.totalorder %s20, 1
    %p64 = por %p62, %p63
    %p65 = scmp.ne.s32.totalorder %s54, %s55
    %p66 = scmp.eq.s32.totalorder %s20, 0
    %p67 = por %p65, %p66
    %p68 = scmp.ne.s32.totalorder %s54, %s55
    %p69 = scmp.eq.s32.totalorder %s21, 1
    %p70 = por %p68, %p69
    %p72 = scmp.ne.s32.totalorder %s55, %s71
    %p73 = scmp.eq.s32.totalorder %s21, 0
    %p74 = por %p72, %p73
    %s76 = sadd.s32 %s75, 1
    %p79 = scmp.eq.s32.totalorder %s15, 1
    %p80 = scmp.ne.s32.totalorder %s75, %s77
    %p81 = scmp.eq.s32.totalorder %s15, 0
    %p82 = por %p80, %p81
    %p83 = scmp.ne.s32.totalorder %s75, %s77
    %p84 = scmp.eq.s32.totalorder %s20, 1
    %p85 = por %p83, %p84
    %p86 = scmp.ne.s32.totalorder %s77, %s78
    %p87 = scmp.eq.s32.totalorder %s20, 0
    %p88 = por %p86, %p87
    %p89 = scmp.ne.s32.totalorder %s77, %s78
    %p90 = scmp.eq.s32.totalorder %s21, 1
    %p91 = por %p89, %p90
    %p93 = scmp.ne.s32.totalorder %s78, %s92
    %p94 = scmp.eq.s32.totalorder %s21, 0
    %p95 = por %p93, %p94
    %s97 = sadd.s32 %s96, 1
    %p100 = scmp.eq.s32.totalorder %s15, 1
    %p101 = scmp.ne.s32.totalorder %s96, %s98
    %p102 = scmp.eq.s32.totalorder %s15, 0
    %p103 = por %p101, %p102
    %p104 = scmp.ne.s32.totalorder %s96, %s98
    %p105 = scmp.eq.s32.totalorder %s20, 1
    %p106 = por %p104, %p105
    %p107 = scmp.ne.s32.totalorder %s98, %s99
    %p108 = scmp.eq.s32.totalorder %s20, 0
    %p109 = por %p107, %p108
    %p110 = scmp.ne.s32.totalorder %s98, %s99
    %p111 = scmp.eq.s32.totalorder %s21, 1
    %p112 = por %p110, %p111
    %p114 = scmp.ne.s32.totalorder %s99, %s113
    %p115 = scmp.eq.s32.totalorder %s21, 0
    %p116 = por %p114, %p115
    %s118 = sadd.s32 %s117, 1
    %p121 = scmp.eq.s32.totalorder %s15, 1
    %p122 = scmp.ne.s32.totalorder %s117, %s119
    %p123 = scmp.eq.s32.totalorder %s15, 0
    %p124 = por %p122, %p123
    %p125 = scmp.ne.s32.totalorder %s117, %s119
    %p126 = scmp.eq.s32.totalorder %s20, 1
    %p127 = por %p125, %p126
    %p128 = scmp.ne.s32.totalorder %s119, %s120
    %p129 = scmp.eq.s32.totalorder %s20, 0
    %p130 = por %p128, %p129
    %p131 = scmp.ne.s32.totalorder %s119, %s120
    %p132 = scmp.eq.s32.totalorder %s21, 1
    %p133 = por %p131, %p132
    %p135 = scmp.ne.s32.totalorder %s120, %s134
    %p136 = scmp.eq.s32.totalorder %s21, 0
    %p137 = por %p135, %p136
    %s139 = sadd.s32 %s138, 1
    %p142 = scmp.eq.s32.totalorder %s15, 1
    %p143 = scmp.ne.s32.totalorder %s138, %s140
    %p144 = scmp.eq.s32.totalorder %s15, 0
    %p145 = por %p143, %p144
    %p146 = scmp.ne.s32.totalorder %s138, %s140
    %p147 = scmp.eq.s32.totalorder %s20, 1
    %p148 = por %p146, %p147
    %p149 = scmp.ne.s32.totalorder %s140, %s141
    %p150 = scmp.eq.s32.totalorder %s20, 0
    %p151 = por %p149, %p150
    %p152 = scmp.ne.s32.totalorder %s140, %s141
    %p153 = scmp.eq.s32.totalorder %s21, 1
    %p154 = por %p152, %p153
    %p156 = scmp.ne.s32.totalorder %s141, %s155
    %p157 = scmp.eq.s32.totalorder %s21, 0
    %p158 = por %p156, %p157
    %s160 = sadd.s32 %s159, 1
    %p163 = scmp.eq.s32.totalorder %s15, 1
    %p164 = scmp.ne.s32.totalorder %s159, %s161
    %p165 = scmp.eq.s32.totalorder %s15, 0
    %p166 = por %p164, %p165
    %p167 = scmp.ne.s32.totalorder %s159, %s161
    %p168 = scmp.eq.s32.totalorder %s20, 1
    %p169 = por %p167, %p168
    %p170 = scmp.ne.s32.totalorder %s161, %s162
    %p171 = scmp.eq.s32.totalorder %s20, 0
    %p172 = por %p170, %p171
    %p173 = scmp.ne.s32.totalorder %s161, %s162
    %p174 = scmp.eq.s32.totalorder %s21, 1
    %p175 = por %p173, %p174
    %p177 = scmp.ne.s32.totalorder %s162, %s176
    %p178 = scmp.eq.s32.totalorder %s21, 0
    %p179 = por %p177, %p178
    %s180 = ssub.s32 %s15, %s22
    %p181 = scmp.eq.s32.totalorder %s180, 0
    %s183 = sadd.s32 %s182, 1
    %s184 = scalar_select %p181, %s182, %s183
    %p187 = pneg %p181
    %p188 = scmp.eq.s32.totalorder %s15, 1
    %p189 = por %p187, %p188
    %p190 = scmp.ne.s32.totalorder %s182, %s185
    %p191 = scmp.eq.s32.totalorder %s15, 0
    %p192 = por %p190, %p191
    %p193 = scmp.ne.s32.totalorder %s182, %s185
    %p194 = scmp.eq.s32.totalorder %s20, 1
    %p195 = por %p193, %p194
    %p196 = scmp.ne.s32.totalorder %s185, %s186
    %p197 = scmp.eq.s32.totalorder %s20, 0
    %p198 = por %p196, %p197
    %p199 = scmp.ne.s32.totalorder %s185, %s186
    %p200 = scmp.eq.s32.totalorder %s21, 1
    %p201 = por %p199, %p200
    %p203 = scmp.ne.s32.totalorder %s186, %s202
    %p204 = scmp.eq.s32.totalorder %s21, 0
    %p205 = por %p203, %p204
    %s206 = ssub.s32 %s15, %s22
    %p207 = scmp.eq.s32.totalorder %s206, 0
    %s209 = sadd.s32 %s208, 1
    %s210 = scalar_select %p207, %s208, %s209
    %p213 = pneg %p207
    %p214 = scmp.eq.s32.totalorder %s15, 1
    %p215 = por %p213, %p214
    %p216 = scmp.ne.s32.totalorder %s208, %s211
    %p217 = scmp.eq.s32.totalorder %s15, 0
    %p218 = por %p216, %p217
    %p219 = scmp.ne.s32.totalorder %s208, %s211
    %p220 = scmp.eq.s32.totalorder %s20, 1
    %p221 = por %p219, %p220
    %p222 = scmp.ne.s32.totalorder %s211, %s212
    %p223 = scmp.eq.s32.totalorder %s20, 0
    %p224 = por %p222, %p223
    %p225 = scmp.ne.s32.totalorder %s211, %s212
    %p226 = scmp.eq.s32.totalorder %s21, 1
    %p227 = por %p225, %p226
    %p229 = scmp.ne.s32.totalorder %s212, %s228
    %p230 = scmp.eq.s32.totalorder %s21, 0
    %p231 = por %p229, %p230
    %p232 = scmp.le.s32.totalorder 1, %s15
    %p233 = scmp.lt.s32.totalorder %s15, 3
    %p234 = pnand %p232, %p233
    %p235 = pneg %p234
    // Predicated region
    $region9: #{_linear_sra_impl.2} parent=5 // pred_check
      _
    $region10: #{_linear_sra_impl.2} parent=5 // pred_check_branch
      %237 = sbr.rel (%p234) target = $region12
    $region11: #{_linear_sra_impl.2} parent=5 // pred_region
      %s238 = ssub.s32 %s15, 1
      // Predicated region
      $region13: #{_linear_sra_impl.2} parent=11 // pred_check
        %p239 = pneg %p88
      $region14: #{_linear_sra_impl.2} parent=11 // pred_check_branch
        %241 = sbr.rel (%p239) target = $region16
      $region15: #{_linear_sra_impl.2} parent=11 // pred_region
        _
      $region16: #{_linear_sra_impl.2} parent=11 // pred_fallthru
        _
      // Predicated region
      $region17: #{_linear_sra_impl.2} parent=11 // pred_check
        %p242 = pneg %p109
      $region18: #{_linear_sra_impl.2} parent=11 // pred_check_branch
        %244 = sbr.rel (%p242) target = $region20
      $region19: #{_linear_sra_impl.2} parent=11 // pred_region
        _
      $region20: #{_linear_sra_impl.2} parent=11 // pred_fallthru
        _
      // Predicated region
      $region21: #{_linear_sra_impl.2} parent=11 // pred_check
        %p245 = pneg %p130
      $region22: #{_linear_sra_impl.2} parent=11 // pred_check_branch
        %247 = sbr.rel (%p245) target = $region24
      $region23: #{_linear_sra_impl.2} parent=11 // pred_region
        _
      $region24: #{_linear_sra_impl.2} parent=11 // pred_fallthru
        _
      // Predicated region
      $region25: #{_linear_sra_impl.2} parent=11 // pred_check
        %p248 = pneg %p151
      $region26: #{_linear_sra_impl.2} parent=11 // pred_check_branch
        %250 = sbr.rel (%p248) target = $region28
      $region27: #{_linear_sra_impl.2} parent=11 // pred_region
        _
      $region28: #{_linear_sra_impl.2} parent=11 // pred_fallthru
        _
      // Predicated region
      $region29: #{_linear_sra_impl.2} parent=11 // pred_check
        %p251 = pneg %p172
      $region30: #{_linear_sra_impl.2} parent=11 // pred_check_branch
        %253 = sbr.rel (%p251) target = $region32
      $region31: #{_linear_sra_impl.2} parent=11 // pred_region
        _
      $region32: #{_linear_sra_impl.2} parent=11 // pred_fallthru
        _
    $region12: #{_linear_sra_impl.2} parent=5 // pred_fallthru
      _
    %p254 = scmp.lt.s32.totalorder %s15, 2
    // Predicated region
    $region33: #{_linear_sra_impl.2} parent=5 // pred_check
      %p255 = pneg %p254
    $region34: #{_linear_sra_impl.2} parent=5 // pred_check_branch
      %257 = sbr.rel (%p255) target = $region36
    $region35: #{_linear_sra_impl.2} parent=5 // pred_region
      // Predicated region
      $region37: #{_linear_sra_impl.2} parent=35 // pred_check
        %p258 = pneg %p35
      $region38: #{_linear_sra_impl.2} parent=35 // pred_check_branch
        %260 = sbr.rel (%p258) target = $region40
      $region39: #{_linear_sra_impl.2} parent=35 // pred_region
        %p261 = scmp.lt.s32.totalorder %s15, 1
        %s262 = scalar_select %p261, %s15, 1
        %s263 = smul.addr %s262, 25
        %s264 = smul.addr %s263, 8
        %s265 = scalar_lea.vmem %s0, %s264
      $region40: #{_linear_sra_impl.2} parent=35 // pred_fallthru
        _
      // Predicated region
      $region41: #{_linear_sra_impl.2} parent=35 // pred_check
        %p266 = pneg %p61
      $region42: #{_linear_sra_impl.2} parent=35 // pred_check_branch
        %268 = sbr.rel (%p266) target = $region44
      $region43: #{_linear_sra_impl.2} parent=35 // pred_region
        %p269 = scmp.lt.s32.totalorder %s15, 1
        %s270 = scalar_select %p269, %s15, 1
        %s271 = smul.addr %s270, 25
        %s272 = smul.addr %s271, 8
        %s273 = scalar_lea.vmem %s1, %s272
      $region44: #{_linear_sra_impl.2} parent=35 // pred_fallthru
        _
    $region36: #{_linear_sra_impl.2} parent=5 // pred_fallthru
      _
    %p274 = scmp.le.s32.totalorder 1, %s15
    %p275 = scmp.lt.s32.totalorder %s15, 3
    %p276 = pnand %p274, %p275
    %p277 = pneg %p276
    // Predicated region
    $region45: #{_linear_sra_impl.2} parent=5 // pred_check
      _
    $region46: #{_linear_sra_impl.2} parent=5 // pred_check_branch
      %279 = sbr.rel (%p276) target = $region48
    $region47: #{_linear_sra_impl.2} parent=5 // pred_region
      %s280 = ssub.s32 %s15, 1
      %p281 = scmp.lt.s32.totalorder %s20, 1
      %s282 = scalar_select %p281, %s20, 1
      %s283 = smul.addr %s282, 25
      %s284 = smul.addr %s283, 8
      %s285 = scalar_lea.vmem %s0, %s284
      %p286 = pneg %p41
      %p287 = pneg %p38
      %p288 = scmp.lt.s32.totalorder %s20, 1
      %s289 = scalar_select %p288, %s20, 1
      %s290 = smul.addr %s289, 25
      %s291 = smul.addr %s290, 8
      %s292 = scalar_lea.vmem %s1, %s291
      %p293 = pneg %p67
      %p294 = pneg %p64
      %p295 = pneg %p88
      %p296 = pneg %p85
      %p297 = pneg %p109
      %p298 = pneg %p106
      %p299 = pneg %p130
      %p300 = pneg %p127
      %p301 = pneg %p151
      %p302 = pneg %p148
      %p303 = pneg %p172
      %p304 = pneg %p169
      %p305 = pneg %p198
      %p306 = pneg %p195
      %p307 = scmp.lt.s32.totalorder %s20, 1
      %s308 = scalar_select %p307, %s20, 1
      %s309 = smul.addr %s308, 7
      %s310 = smul.addr %s309, 4
      %s311 = scalar_lea.vmem %s7, %s310
      %p312 = pneg %p224
      %p313 = pneg %p221
      %p314 = scmp.lt.s32.totalorder %s20, 1
      %s315 = scalar_select %p314, %s20, 1
      %s316 = smul.addr %s315, 7
      %s317 = smul.addr %s316, 4
      %s318 = scalar_lea.vmem %s8, %s317
      %p319 = scmp.lt.s32.totalorder %s20, 1
      %s320 = scalar_select %p319, %s20, 1
      %s321 = smul.addr %s320, 25
      %s322 = smul.addr %s321, 8
      %s323 = scalar_lea.vmem %s0, %s322
      %p324 = scmp.lt.s32.totalorder %s20, 1
      %s325 = scalar_select %p324, %s20, 1
      %s326 = smul.addr %s325, 25
      %s327 = smul.addr %s326, 8
      %s328 = scalar_lea.vmem %s1, %s327
      %p329 = scmp.lt.s32.totalorder %s20, 1
      %s330 = scalar_select %p329, %s20, 1
      %s331 = smul.addr %s330, 7
      %s332 = smul.addr %s331, 4
      %s333 = scalar_lea.vmem %s7, %s332
      %p334 = scmp.lt.s32.totalorder %s20, 1
      %s335 = scalar_select %p334, %s20, 1
      %s336 = smul.addr %s335, 7
      %s337 = smul.addr %s336, 4
      %s338 = scalar_lea.vmem %s8, %s337
      %v340 = vld [vmem:[%s323] sm:$0xff]
      %v341 = vld [vmem:[%s323 + $0x8] sm:$0xff]
      %v342 = vld [vmem:[%s323 + $0x10] sm:$0xff]
      %v343 = vld [vmem:[%s323 + $0x18] sm:$0xff]
      %v344 = vld [vmem:[%s323 + $0x20] sm:$0xff]
      %v345 = vld [vmem:[%s323 + $0x28] sm:$0xff]
      %v346 = vld [vmem:[%s323 + $0x30] sm:$0xff]
      %v347 = vld [vmem:[%s323 + $0x38] sm:$0xff]
      %v348 = vld [vmem:[%s323 + $0x40] sm:$0xff]
      %v349 = vld [vmem:[%s323 + $0x48] sm:$0xff]
      %v350 = vld [vmem:[%s323 + $0x50] sm:$0xff]
      %v351 = vld [vmem:[%s323 + $0x58] sm:$0xff]
      %v352 = vld [vmem:[%s323 + $0x60] sm:$0xff]
      %v353 = vld [vmem:[%s323 + $0x68] sm:$0xff]
      %v354 = vld [vmem:[%s323 + $0x70] sm:$0xff]
      %v355 = vld [vmem:[%s323 + $0x78] sm:$0xff]
      %v356 = vld [vmem:[%s323 + $0x80] sm:$0xff]
      %v357 = vld [vmem:[%s323 + $0x88] sm:$0xff]
      %v358 = vld [vmem:[%s323 + $0x90] sm:$0xff]
      %v359 = vld [vmem:[%s323 + $0x98] sm:$0xff]
      %v360 = vld [vmem:[%s323 + $0xa0] sm:$0xff]
      %v361 = vld [vmem:[%s323 + $0xa8] sm:$0xff]
      %v362 = vld [vmem:[%s323 + $0xb0] sm:$0xff]
      %v363 = vld [vmem:[%s323 + $0xb8] sm:$0xff]
      %v364 = vld [vmem:[%s323 + $0xc0] sm:$0xf]
      %v365 = vpack.c.bf16 %v341, %v340
      %v366 = vpack.c.bf16 %v343, %v342
      %v367 = vpack.c.bf16 %v345, %v344
      %v368 = vpack.c.bf16 %v347, %v346
      %v369 = vpack.c.bf16 %v349, %v348
      %v370 = vpack.c.bf16 %v351, %v350
      %v371 = vpack.c.bf16 %v353, %v352
      %v372 = vpack.c.bf16 %v355, %v354
      %v373 = vpack.c.bf16 %v357, %v356
      %v374 = vpack.c.bf16 %v359, %v358
      %v375 = vpack.c.bf16 %v361, %v360
      %v376 = vpack.c.bf16 %v363, %v362
      %v377 = vpack.c.bf16 %v364, %v364
      %v378 = vld [vmem:[%s2] sm:$0xff]
      %v379 = vld [vmem:[%s2 + $0x8] sm:$0xff]
      %v380 = vld [vmem:[%s2 + $0x10] sm:$0xff]
      %v381 = vld [vmem:[%s2 + $0x18] sm:$0xff]
      %v382 = vld [vmem:[%s2 + $0x20] sm:$0xff]
      %v383 = vld [vmem:[%s2 + $0x28] sm:$0xff]
      %v384 = vld [vmem:[%s2 + $0x30] sm:$0x11]
      %v392 = vunpack.c.l.b16 %v378
      %v393 = vunpack.c.h.b16 %v378
      %v394 = vunpack.c.l.b16 %v379
      %v395 = vunpack.c.h.b16 %v379
      %v396 = vunpack.c.l.b16 %v380
      %v397 = vunpack.c.h.b16 %v380
      %v398 = vunpack.c.l.b16 %v381
      %v399 = vunpack.c.h.b16 %v381
      %v400 = vunpack.c.l.b16 %v382
      %v401 = vunpack.c.h.b16 %v382
      %v402 = vunpack.c.l.b16 %v383
      %v403 = vunpack.c.h.b16 %v383
      %v404 = vunpack.c.l.b16 %v384
      %v405 = vunpack.c.h.b16 %v384
      %v406 = vpack.c.b16 %v394, %v392
      %v407 = vpack.c.b16 %v395, %v393
      %v408 = vpack.c.b16 %v398, %v396
      %v409 = vpack.c.b16 %v399, %v397
      %v410 = vpack.c.b16 %v402, %v400
      %v411 = vpack.c.b16 %v403, %v401
      %v412 = vpack.c.b16 %v404, %v404
      %v413 = vpack.c.b16 %v405, %v405
      %vm418 = vcmask 556032
      %v420 = vsel %vm418, %v407, 0
      %v423 = vsel %vm418, %v409, 0
      %v426 = vsel %vm418, %v411, 0
      %v429 = vsel %vm418, %v413, 0
      %vm431 = vcmask 1041408
      %v433 = vsel %vm431, %v377, 0
      %435 = vmatprep.subr.bf16.mxu0 0
      %436 = vmatpush1.bf16.msra.mxu0 %v365
      %437 = vmatprep.subr.bf16.mxu0 0
      %438 = vmatpush1.bf16.msra.mxu0 %v366
      %439 = vmatprep.subr.bf16.mxu0 0
      %440 = vmatpush1.bf16.msra.mxu0 %v367
      %441 = vmatprep.subr.bf16.mxu0 0
      %442 = vmatpush1.bf16.msra.mxu0 %v368
      %443 = vmatprep.subr.bf16.mxu0 0
      %444 = vmatpush1.bf16.msra.mxu0 %v369
      %445 = vmatprep.subr.bf16.mxu0 0
      %446 = vmatpush1.bf16.msra.mxu0 %v370
      %447 = vmatprep.subr.bf16.mxu0 0
      %448 = vmatpush1.bf16.msra.mxu0 %v371
      %449 = vmatprep.subr.bf16.mxu0 0
      %450 = vmatpush1.bf16.msra.mxu0 %v372
      %451 = vmatprep.subr.bf16.mxu0 0
      %452 = vmatpush1.bf16.msra.mxu0 %v373
      %453 = vmatprep.subr.bf16.mxu0 0
      %454 = vmatpush1.bf16.msra.mxu0 %v374
      %455 = vmatprep.subr.bf16.mxu0 0
      %456 = vmatpush1.bf16.msra.mxu0 %v375
      %457 = vmatprep.subr.bf16.mxu0 0
      %458 = vmatpush1.bf16.msra.mxu0 %v376
      %459 = vmatprep.subr.bf16.mxu0 0
      %460 = vmatpush1.bf16.msra.mxu0 %v433
      %461 = vmatprep.subr.bf16.mxu0 0
      %462 = vmatpush1.bf16.msra.mxu0 0
      %463 = vmatprep.subr.bf16.mxu0 0
      %464 = vmatpush1.bf16.msra.mxu0 0
      %465 = vmatprep.subr.bf16.mxu0 0
      %466 = vmatpush1.bf16.msra.mxu0 0
      %467 = vmatprep.mubr.bf16.mxu0 %v420
      %468 = vmatmul.mubr.bf16.gmra.mrb[0].mxu0 %v406
      %v469 = vpop.f32.mrb[0].mxu0
      %v470 = vadd.f32 0.0, %v469
      %v471 = vpop.f32.mrb[0].mxu0
      %v472 = vpop.f32.mrb[0].mxu0
      %v473 = vadd.f32 0.0, %v472
      %v474 = vpop.f32.mrb[0].mxu0
      %475 = vmatprep.mubr.bf16.mxu0 %v423
      %476 = vmatmul.mubr.bf16.gmra.mrb[0].mxu0 %v408
      %v477 = vpop.f32.mrb[0].mxu0
      %v478 = vadd.f32 0.0, %v477
      %v479 = vpop.f32.mrb[0].mxu0
      %v480 = vpop.f32.mrb[0].mxu0
      %v481 = vadd.f32 0.0, %v480
      %v482 = vpop.f32.mrb[0].mxu0
      %483 = vmatprep.mubr.bf16.mxu0 %v426
      %484 = vmatmul.mubr.bf16.gmra.mrb[0].mxu0 %v410
      %v485 = vpop.f32.mrb[0].mxu0
      %v486 = vadd.f32 0.0, %v485
      %v487 = vpop.f32.mrb[0].mxu0
      %v488 = vpop.f32.mrb[0].mxu0
      %v489 = vadd.f32 0.0, %v488
      %v490 = vpop.f32.mrb[0].mxu0
      %491 = vmatprep.mubr.bf16.mxu0 %v429
      %492 = vmatmul.mubr.bf16.gmra.mrb[0].mxu0 %v412
      %v493 = vpop.f32.mrb[0].mxu0
      %v494 = vadd.f32 0.0, %v493
      %v495 = vpop.f32.mrb[0].mxu0
      %v496 = vpop.f32.mrb[0].mxu0
      %v497 = vpop.f32.mrb[0].mxu0
      %498 = vdwg.mxu0
      %v499 = vpack.c.bf16 %v473, %v470
      %v500 = vpack.c.bf16 %v481, %v478
      %v501 = vpack.c.bf16 %v489, %v486
      %v502 = vpack.c.bf16 %v494, %v494
      %v503 = vld [vmem:[%s3] sm:$0xf]
      %v504 = vld [vmem:[%s3 + $0x4] sm:$0xf]
      %v505 = vld [vmem:[%s3 + $0x8] sm:$0xf]
      %v506 = vld [vmem:[%s3 + $0xc] sm:$0xf]
      %v507 = vld [vmem:[%s4] sm:$0x1]
      %v509 = vlaneseq
      %v510 = vshrl.u32 %v509, 7
      %v511 = vsub.s32 0, %v510
      %v512 = vrot.slane %v507, %v511
      %v518 = vunpack.c.l.b16 %v503
      %v519 = vunpack.c.l.b16 %v504
      %v520 = vunpack.c.l.b16 %v505
      %v521 = vunpack.c.l.b16 %v506
      %v522 = vpack.c.b16 %v519, %v518
      %v523 = vpack.c.b16 %v521, %v520
      %vm526 = vcmask 261120
      %v528 = vsel %vm526, %v499, 0
      %v531 = vsel %vm526, %v500, 0
      %v534 = vsel %vm526, %v501, 0
      %v537 = vsel %vm526, %v502, 0
      %539 = vmatprep.subr.bf16.mxu0 0
      %540 = vmatpush1.bf16.msra.mxu0 %v522
      %541 = vmatprep.subr.bf16.mxu0 0
      %542 = vmatpush1.bf16.msra.mxu0 %v523
      %543 = vmatprep.subr.bf16.mxu0 0
      %544 = vmatpush1.bf16.msra.mxu0 0
      %545 = vmatprep.subr.bf16.mxu0 0
      %546 = vmatpush1.bf16.msra.mxu0 0
      %547 = vmatprep.subr.bf16.mxu0 0
      %548 = vmatpush1.bf16.msra.mxu0 0
      %549 = vmatprep.subr.bf16.mxu0 0
      %550 = vmatpush1.bf16.msra.mxu0 0
      %551 = vmatprep.subr.bf16.mxu0 0
      %552 = vmatpush1.bf16.msra.mxu0 0
      %553 = vmatprep.subr.bf16.mxu0 0
      %554 = vmatpush1.bf16.msra.mxu0 0
      %555 = vmatprep.subr.bf16.mxu0 0
      %556 = vmatpush1.bf16.msra.mxu0 0
      %557 = vmatprep.subr.bf16.mxu0 0
      %558 = vmatpush1.bf16.msra.mxu0 0
      %559 = vmatprep.subr.bf16.mxu0 0
      %560 = vmatpush1.bf16.msra.mxu0 0
      %561 = vmatprep.subr.bf16.mxu0 0
      %562 = vmatpush1.bf16.msra.mxu0 0
      %563 = vmatprep.subr.bf16.mxu0 0
      %564 = vmatpush1.bf16.msra.mxu0 0
      %565 = vmatprep.subr.bf16.mxu0 0
      %566 = vmatpush1.bf16.msra.mxu0 0
      %567 = vmatprep.subr.bf16.mxu0 0
      %568 = vmatpush1.bf16.msra.mxu0 0
      %569 = vmatprep.subr.bf16.mxu0 0
      %570 = vmatpush1.bf16.msra.mxu0 0
      %571 = vmatprep.mubr.bf16.mxu0 0
      %572 = vmatmul.mubr.bf16.gmra.mrb[0].mxu0 %v528
      %v573 = vpop.f32.mrb[0].mxu0
      %v574 = vadd.f32 %v512, %v573
      %v575 = vpop.f32.mrb[0].mxu0
      %v576 = vpop.f32.mrb[0].mxu0
      %v577 = vadd.f32 %v512, %v576
      %v578 = vpop.f32.mrb[0].mxu0
      %579 = vmatprep.mubr.bf16.mxu0 0
      %580 = vmatmul.mubr.bf16.gmra.mrb[0].mxu0 %v531
      %v581 = vpop.f32.mrb[0].mxu0
      %v582 = vadd.f32 %v512, %v581
      %v583 = vpop.f32.mrb[0].mxu0
      %v584 = vpop.f32.mrb[0].mxu0
      %v585 = vadd.f32 %v512, %v584
      %v586 = vpop.f32.mrb[0].mxu0
      %587 = vmatprep.mubr.bf16.mxu0 0
      %588 = vmatmul.mubr.bf16.gmra.mrb[0].mxu0 %v534
      %v589 = vpop.f32.mrb[0].mxu0
      %v590 = vadd.f32 %v512, %v589
      %v591 = vpop.f32.mrb[0].mxu0
      %v592 = vpop.f32.mrb[0].mxu0
      %v593 = vadd.f32 %v512, %v592
      %v594 = vpop.f32.mrb[0].mxu0
      %595 = vmatprep.mubr.bf16.mxu0 0
      %596 = vmatmul.mubr.bf16.gmra.mrb[0].mxu0 %v537
      %v597 = vpop.f32.mrb[0].mxu0
      %v598 = vadd.f32 %v512, %v597
      %v599 = vpop.f32.mrb[0].mxu0
      %v600 = vpop.f32.mrb[0].mxu0
      %v601 = vpop.f32.mrb[0].mxu0
      %602 = vdwg.mxu0
      %v603 = vsel %vm526, %v574, 0.0
      %604 = vadd.xlane.f32.xlu0 %v603
      %v605 = vpop.xlane.xlu0 %604
      %v606 = vsel %vm526, %v577, 0.0
      %607 = vadd.xlane.f32.xlu0 %v606
      %v608 = vpop.xlane.xlu0 %607
      %v609 = vsel %vm526, %v582, 0.0
      %610 = vadd.xlane.f32.xlu0 %v609
      %v611 = vpop.xlane.xlu0 %610
      %v612 = vsel %vm526, %v585, 0.0
      %613 = vadd.xlane.f32.xlu0 %v612
      %v614 = vpop.xlane.xlu0 %613
      %v615 = vsel %vm526, %v590, 0.0
      %616 = vadd.xlane.f32.xlu0 %v615
      %v617 = vpop.xlane.xlu0 %616
      %v618 = vsel %vm526, %v593, 0.0
      %619 = vadd.xlane.f32.xlu0 %v618
      %v620 = vpop.xlane.xlu0 %619
      %vm621 = vcmask 253952
      %v622 = vsel %vm621, %v598, 0.0
      %623 = vadd.xlane.f32.xlu0 %v622
      %v624 = vpop.xlane.xlu0 %623
      %v625 = vrcp.pop 32.0
      %v626 = vmul.f32 %v605, %v625
      %v627 = vmul.f32 %v608, %v625
      %v628 = vmul.f32 %v611, %v625
      %v629 = vmul.f32 %v614, %v625
      %v630 = vmul.f32 %v617, %v625
      %v631 = vmul.f32 %v620, %v625
      %v632 = vmul.f32 %v624, %v625
      %v633 = vsub.f32 %v574, %v626
      %v634 = vsub.f32 %v577, %v627
      %v635 = vsub.f32 %v582, %v628
      %v636 = vsub.f32 %v585, %v629
      %v637 = vsub.f32 %v590, %v630
      %v638 = vsub.f32 %v593, %v631
      %v639 = vsub.f32 %v598, %v632
      %v640 = vmul.f32 %v633, %v633
      %v641 = vmul.f32 %v634, %v634
      %v642 = vmul.f32 %v635, %v635
      %v643 = vmul.f32 %v636, %v636
      %v644 = vmul.f32 %v637, %v637
      %v645 = vmul.f32 %v638, %v638
      %v646 = vmul.f32 %v639, %v639
      %v647 = vsel %vm526, %v640, 0.0
      %648 = vadd.xlane.f32.xlu0 %v647
      %v649 = vpop.xlane.xlu0 %648
      %v650 = vsel %vm526, %v641, 0.0
      %651 = vadd.xlane.f32.xlu0 %v650
      %v652 = vpop.xlane.xlu0 %651
      %v653 = vsel %vm526, %v642, 0.0
      %654 = vadd.xlane.f32.xlu0 %v653
      %v655 = vpop.xlane.xlu0 %654
      %v656 = vsel %vm526, %v643, 0.0
      %657 = vadd.xlane.f32.xlu0 %v656
      %v658 = vpop.xlane.xlu0 %657
      %v659 = vsel %vm526, %v644, 0.0
      %660 = vadd.xlane.f32.xlu0 %v659
      %v661 = vpop.xlane.xlu0 %660
      %v662 = vsel %vm526, %v645, 0.0
      %663 = vadd.xlane.f32.xlu0 %v662
      %v664 = vpop.xlane.xlu0 %663
      %v665 = vsel %vm621, %v646, 0.0
      %666 = vadd.xlane.f32.xlu0 %v665
      %v667 = vpop.xlane.xlu0 %666
      %v668 = vmul.f32 %v649, %v625
      %v669 = vmul.f32 %v652, %v625
      %v670 = vmul.f32 %v655, %v625
      %v671 = vmul.f32 %v658, %v625
      %v672 = vmul.f32 %v661, %v625
      %v673 = vmul.f32 %v664, %v625
      %v674 = vmul.f32 %v667, %v625
      %v675 = vadd.f32 %v668, 1e-05
      %v676 = vadd.f32 %v669, 1e-05
      %v677 = vadd.f32 %v670, 1e-05
      %v678 = vadd.f32 %v671, 1e-05
      %v679 = vadd.f32 %v672, 1e-05
      %v680 = vadd.f32 %v673, 1e-05
      %v681 = vadd.f32 %v674, 1e-05
      %v682 = vrsqrt.pop %v675
      %v683 = vrsqrt.pop %v676
      %v684 = vrsqrt.pop %v677
      %v685 = vrsqrt.pop %v678
      %v686 = vrsqrt.pop %v679
      %v687 = vrsqrt.pop %v680
      %v688 = vrsqrt.pop %v681
      %v689 = vmul.f32 %v633, %v682
      %v690 = vmul.f32 %v634, %v683
      %v691 = vmul.f32 %v635, %v684
      %v692 = vmul.f32 %v636, %v685
      %v693 = vmul.f32 %v637, %v686
      %v694 = vmul.f32 %v638, %v687
      %v695 = vmul.f32 %v639, %v688
      %v696 = vld [vmem:[%s5] sm:$0x1]
      %v698 = vlaneseq
      %v699 = vshrl.u32 %v698, 7
      %v700 = vsub.s32 0, %v699
      %v701 = vrot.slane %v696, %v700
      %v703 = vmul.f32 %v689, %v701
      %v704 = vmul.f32 %v690, %v701
      %v705 = vmul.f32 %v691, %v701
      %v706 = vmul.f32 %v692, %v701
      %v707 = vmul.f32 %v693, %v701
      %v708 = vmul.f32 %v694, %v701
      %v709 = vmul.f32 %v695, %v701
      %v710 = vld [vmem:[%s6] sm:$0x1]
      %v712 = vlaneseq
      %v713 = vshrl.u32 %v712, 7
      %v714 = vsub.s32 0, %v713
      %v715 = vrot.slane %v710, %v714
      %v717 = vadd.f32 %v703, %v715
      %v718 = vadd.f32 %v704, %v715
      %v719 = vadd.f32 %v705, %v715
      %v720 = vadd.f32 %v706, %v715
      %v721 = vadd.f32 %v707, %v715
      %v722 = vadd.f32 %v708, %v715
      %v723 = vadd.f32 %v709, %v715
      %v724 = vmul.f32 %v717, 0.5
      %v725 = vmul.f32 %v718, 0.5
      %v726 = vmul.f32 %v719, 0.5
      %v727 = vmul.f32 %v720, 0.5
      %v728 = vmul.f32 %v721, 0.5
      %v729 = vmul.f32 %v722, 0.5
      %v730 = vmul.f32 %v723, 0.5
      %v731 = vmul.f32 %v717, 0.044715
      %v732 = vmul.f32 %v718, 0.044715
      %v733 = vmul.f32 %v719, 0.044715
      %v734 = vmul.f32 %v720, 0.044715
      %v735 = vmul.f32 %v721, 0.044715
      %v736 = vmul.f32 %v722, 0.044715
      %v737 = vmul.f32 %v723, 0.044715
      %v738 = vmul.f32 %v731, %v717
      %v739 = vmul.f32 %v732, %v718
      %v740 = vmul.f32 %v733, %v719
      %v741 = vmul.f32 %v734, %v720
      %v742 = vmul.f32 %v735, %v721
      %v743 = vmul.f32 %v736, %v722
      %v744 = vmul.f32 %v737, %v723
      %v745 = vmul.f32 %v738, %v717
      %v746 = vmul.f32 %v739, %v718
      %v747 = vmul.f32 %v740, %v719
      %v748 = vmul.f32 %v741, %v720
      %v749 = vmul.f32 %v742, %v721
      %v750 = vmul.f32 %v743, %v722
      %v751 = vmul.f32 %v744, %v723
      %v752 = vadd.f32 %v717, %v745
      %v753 = vadd.f32 %v718, %v746
      %v754 = vadd.f32 %v719, %v747
      %v755 = vadd.f32 %v720, %v748
      %v756 = vadd.f32 %v721, %v749
      %v757 = vadd.f32 %v722, %v750
      %v758 = vadd.f32 %v723, %v751
      %v759 = vmul.f32 %v752, 0.7978846
      %v760 = vmul.f32 %v753, 0.7978846
      %v761 = vmul.f32 %v754, 0.7978846
      %v762 = vmul.f32 %v755, 0.7978846
      %v763 = vmul.f32 %v756, 0.7978846
      %v764 = vmul.f32 %v757, 0.7978846
      %v765 = vmul.f32 %v758, 0.7978846
      %v766 = vtanh.pop %v759
      %v767 = vtanh.pop %v760
      %v768 = vtanh.pop %v761
      %v769 = vtanh.pop %v762
      %v770 = vtanh.pop %v763
      %v771 = vtanh.pop %v764
      %v772 = vtanh.pop %v765
      %v773 = vadd.f32 %v766, 1.0
      %v774 = vadd.f32 %v767, 1.0
      %v775 = vadd.f32 %v768, 1.0
      %v776 = vadd.f32 %v769, 1.0
      %v777 = vadd.f32 %v770, 1.0
      %v778 = vadd.f32 %v771, 1.0
      %v779 = vadd.f32 %v772, 1.0
      %v780 = vmul.f32 %v724, %v773
      %v781 = vmul.f32 %v725, %v774
      %v782 = vmul.f32 %v726, %v775
      %v783 = vmul.f32 %v727, %v776
      %v784 = vmul.f32 %v728, %v777
      %v785 = vmul.f32 %v729, %v778
      %v786 = vmul.f32 %v730, %v779
      %v787 = vpack.c.bf16 %v781, %v780
      %v788 = vpack.c.bf16 %v783, %v782
      %v789 = vpack.c.bf16 %v785, %v784
      %v790 = vpack.c.bf16 %v786, %v786
      %v795 = vunpack.c.l.b16 %v787
      %v796 = vunpack.c.h.b16 %v787
      %v797 = vunpack.c.l.b16 %v788
      %v798 = vunpack.c.h.b16 %v788
      %v799 = vunpack.c.l.b16 %v789
      %v800 = vunpack.c.h.b16 %v789
      %v801 = vunpack.c.l.b16 %v790
      %v802 = vpack.c.b16 %v795, %v795
      %v803 = vpack.c.b16 %v796, %v796
      %v804 = vpack.c.b16 %v797, %v797
      %v805 = vpack.c.b16 %v798, %v798
      %v806 = vpack.c.b16 %v799, %v799
      %v807 = vpack.c.b16 %v800, %v800
      %v808 = vpack.c.b16 %v801, %v801
      %vm816 = vcmask 257024
      %817 = vst.msk [vmem:[%s333] sm:$0xf] %vm816, %v802
      %818 = vst.msk [vmem:[%s333 + $0x4] sm:$0xf] %vm816, %v803
      %819 = vst.msk [vmem:[%s333 + $0x8] sm:$0xf] %vm816, %v804
      %820 = vst.msk [vmem:[%s333 + $0xc] sm:$0xf] %vm816, %v805
      %821 = vst.msk [vmem:[%s333 + $0x10] sm:$0xf] %vm816, %v806
      %822 = vst.msk [vmem:[%s333 + $0x14] sm:$0xf] %vm816, %v807
      %vm823 = vcmask 253952
      %vm824 = vsmask.f32 256
      %vm825 = vmand %vm823, %vm824
      %v826 = vld [vmem:[%s333 + $0x18] sm:$0x1]
      %v827 = vsel %vm825, %v808, %v826
      %828 = vst [vmem:[%s333 + $0x18] sm:$0x1] %v827
      %v829 = vld [vmem:[%s328] sm:$0xff]
      %v830 = vld [vmem:[%s328 + $0x8] sm:$0xff]
      %v831 = vld [vmem:[%s328 + $0x10] sm:$0xff]
      %v832 = vld [vmem:[%s328 + $0x18] sm:$0xff]
      %v833 = vld [vmem:[%s328 + $0x20] sm:$0xff]
      %v834 = vld [vmem:[%s328 + $0x28] sm:$0xff]
      %v835 = vld [vmem:[%s328 + $0x30] sm:$0xff]
      %v836 = vld [vmem:[%s328 + $0x38] sm:$0xff]
      %v837 = vld [vmem:[%s328 + $0x40] sm:$0xff]
      %v838 = vld [vmem:[%s328 + $0x48] sm:$0xff]
      %v839 = vld [vmem:[%s328 + $0x50] sm:$0xff]
      %v840 = vld [vmem:[%s328 + $0x58] sm:$0xff]
      %v841 = vld [vmem:[%s328 + $0x60] sm:$0xff]
      %v842 = vld [vmem:[%s328 + $0x68] sm:$0xff]
      %v843 = vld [vmem:[%s328 + $0x70] sm:$0xff]
      %v844 = vld [vmem:[%s328 + $0x78] sm:$0xff]
      %v845 = vld [vmem:[%s328 + $0x80] sm:$0xff]
      %v846 = vld [vmem:[%s328 + $0x88] sm:$0xff]
      %v847 = vld [vmem:[%s328 + $0x90] sm:$0xff]
      %v848 = vld [vmem:[%s328 + $0x98] sm:$0xff]
      %v849 = vld [vmem:[%s328 + $0xa0] sm:$0xff]
      %v850 = vld [vmem:[%s328 + $0xa8] sm:$0xff]
      %v851 = vld [vmem:[%s328 + $0xb0] sm:$0xff]
      %v852 = vld [vmem:[%s328 + $0xb8] sm:$0xff]
      %v853 = vld [vmem:[%s328 + $0xc0] sm:$0xf]
      %v854 = vpack.c.bf16 %v830, %v829
      %v855 = vpack.c.bf16 %v832, %v831
      %v856 = vpack.c.bf16 %v834, %v833
      %v857 = vpack.c.bf16 %v836, %v835
      %v858 = vpack.c.bf16 %v838, %v837
      %v859 = vpack.c.bf16 %v840, %v839
      %v860 = vpack.c.bf16 %v842, %v841
      %v861 = vpack.c.bf16 %v844, %v843
      %v862 = vpack.c.bf16 %v846, %v845
      %v863 = vpack.c.bf16 %v848, %v847
      %v864 = vpack.c.bf16 %v850, %v849
      %v865 = vpack.c.bf16 %v852, %v851
      %v866 = vpack.c.bf16 %v853, %v853
      %v867 = vld [vmem:[%s2] sm:$0xff]
      %v868 = vld [vmem:[%s2 + $0x8] sm:$0xff]
      %v869 = vld [vmem:[%s2 + $0x10] sm:$0xff]
      %v870 = vld [vmem:[%s2 + $0x18] sm:$0xff]
      %v871 = vld [vmem:[%s2 + $0x20] sm:$0xff]
      %v872 = vld [vmem:[%s2 + $0x28] sm:$0xff]
      %v873 = vld [vmem:[%s2 + $0x30] sm:$0x11]
      %v881 = vunpack.c.l.b16 %v867
      %v882 = vunpack.c.h.b16 %v867
      %v883 = vunpack.c.l.b16 %v868
      %v884 = vunpack.c.h.b16 %v868
      %v885 = vunpack.c.l.b16 %v869
      %v886 = vunpack.c.h.b16 %v869
      %v887 = vunpack.c.l.b16 %v870
      %v888 = vunpack.c.h.b16 %v870
      %v889 = vunpack.c.l.b16 %v871
      %v890 = vunpack.c.h.b16 %v871
      %v891 = vunpack.c.l.b16 %v872
      %v892 = vunpack.c.h.b16 %v872
      %v893 = vunpack.c.l.b16 %v873
      %v894 = vunpack.c.h.b16 %v873
      %v895 = vpack.c.b16 %v883, %v881
      %v896 = vpack.c.b16 %v884, %v882
      %v897 = vpack.c.b16 %v887, %v885
      %v898 = vpack.c.b16 %v888, %v886
      %v899 = vpack.c.b16 %v891, %v889
      %v900 = vpack.c.b16 %v892, %v890
      %v901 = vpack.c.b16 %v893, %v893
      %v902 = vpack.c.b16 %v894, %v894
      %v908 = vsel %vm418, %v896, 0
      %v911 = vsel %vm418, %v898, 0
      %v914 = vsel %vm418, %v900, 0
      %v917 = vsel %vm418, %v902, 0
      %v920 = vsel %vm431, %v866, 0
      %922 = vmatprep.subr.bf16.mxu0 0
      %923 = vmatpush1.bf16.msra.mxu0 %v854
      %924 = vmatprep.subr.bf16.mxu0 0
      %925 = vmatpush1.bf16.msra.mxu0 %v855
      %926 = vmatprep.subr.bf16.mxu0 0
      %927 = vmatpush1.bf16.msra.mxu0 %v856
      %928 = vmatprep.subr.bf16.mxu0 0
      %929 = vmatpush1.bf16.msra.mxu0 %v857
      %930 = vmatprep.subr.bf16.mxu0 0
      %931 = vmatpush1.bf16.msra.mxu0 %v858
      %932 = vmatprep.subr.bf16.mxu0 0
      %933 = vmatpush1.bf16.msra.mxu0 %v859
      %934 = vmatprep.subr.bf16.mxu0 0
      %935 = vmatpush1.bf16.msra.mxu0 %v860
      %936 = vmatprep.subr.bf16.mxu0 0
      %937 = vmatpush1.bf16.msra.mxu0 %v861
      %938 = vmatprep.subr.bf16.mxu0 0
      %939 = vmatpush1.bf16.msra.mxu0 %v862
      %940 = vmatprep.subr.bf16.mxu0 0
      %941 = vmatpush1.bf16.msra.mxu0 %v863
      %942 = vmatprep.subr.bf16.mxu0 0
      %943 = vmatpush1.bf16.msra.mxu0 %v864
      %944 = vmatprep.subr.bf16.mxu0 0
      %945 = vmatpush1.bf16.msra.mxu0 %v865
      %946 = vmatprep.subr.bf16.mxu0 0
      %947 = vmatpush1.bf16.msra.mxu0 %v920
      %948 = vmatprep.subr.bf16.mxu0 0
      %949 = vmatpush1.bf16.msra.mxu0 0
      %950 = vmatprep.subr.bf16.mxu0 0
      %951 = vmatpush1.bf16.msra.mxu0 0
      %952 = vmatprep.subr.bf16.mxu0 0
      %953 = vmatpush1.bf16.msra.mxu0 0
      %954 = vmatprep.mubr.bf16.mxu0 %v908
      %955 = vmatmul.mubr.bf16.gmra.mrb[0].mxu0 %v895
      %v956 = vpop.f32.mrb[0].mxu0
      %v957 = vadd.f32 0.0, %v956
      %v958 = vpop.f32.mrb[0].mxu0
      %v959 = vpop.f32.mrb[0].mxu0
      %v960 = vadd.f32 0.0, %v959
      %v961 = vpop.f32.mrb[0].mxu0
      %962 = vmatprep.mubr.bf16.mxu0 %v911
      %963 = vmatmul.mubr.bf16.gmra.mrb[0].mxu0 %v897
      %v964 = vpop.f32.mrb[0].mxu0
      %v965 = vadd.f32 0.0, %v964
      %v966 = vpop.f32.mrb[0].mxu0
      %v967 = vpop.f32.mrb[0].mxu0
      %v968 = vadd.f32 0.0, %v967
      %v969 = vpop.f32.mrb[0].mxu0
      %970 = vmatprep.mubr.bf16.mxu0 %v914
      %971 = vmatmul.mubr.bf16.gmra.mrb[0].mxu0 %v899
      %v972 = vpop.f32.mrb[0].mxu0
      %v973 = vadd.f32 0.0, %v972
      %v974 = vpop.f32.mrb[0].mxu0
      %v975 = vpop.f32.mrb[0].mxu0
      %v976 = vadd.f32 0.0, %v975
      %v977 = vpop.f32.mrb[0].mxu0
      %978 = vmatprep.mubr.bf16.mxu0 %v917
      %979 = vmatmul.mubr.bf16.gmra.mrb[0].mxu0 %v901
      %v980 = vpop.f32.mrb[0].mxu0
      %v981 = vadd.f32 0.0, %v980
      %v982 = vpop.f32.mrb[0].mxu0
      %v983 = vpop.f32.mrb[0].mxu0
      %v984 = vpop.f32.mrb[0].mxu0
      %985 = vdwg.mxu0
      %v986 = vpack.c.bf16 %v960, %v957
      %v987 = vpack.c.bf16 %v968, %v965
      %v988 = vpack.c.bf16 %v976, %v973
      %v989 = vpack.c.bf16 %v981, %v981
      %v990 = vld [vmem:[%s3] sm:$0xf]
      %v991 = vld [vmem:[%s3 + $0x4] sm:$0xf]
      %v992 = vld [vmem:[%s3 + $0x8] sm:$0xf]
      %v993 = vld [vmem:[%s3 + $0xc] sm:$0xf]
      %v994 = vld [vmem:[%s4] sm:$0x1]
      %v996 = vlaneseq
      %v997 = vshrl.u32 %v996, 7
      %v998 = vsub.s32 0, %v997
      %v999 = vrot.slane %v994, %v998
      %v1005 = vunpack.c.l.b16 %v990
      %v1006 = vunpack.c.l.b16 %v991
      %v1007 = vunpack.c.l.b16 %v992
      %v1008 = vunpack.c.l.b16 %v993
      %v1009 = vpack.c.b16 %v1006, %v1005
      %v1010 = vpack.c.b16 %v1008, %v1007
      %v1014 = vsel %vm526, %v986, 0
      %v1017 = vsel %vm526, %v987, 0
      %v1020 = vsel %vm526, %v988, 0
      %v1023 = vsel %vm526, %v989, 0
      %1025 = vmatprep.subr.bf16.mxu0 0
      %1026 = vmatpush1.bf16.msra.mxu0 %v1009
      %1027 = vmatprep.subr.bf16.mxu0 0
      %1028 = vmatpush1.bf16.msra.mxu0 %v1010
      %1029 = vmatprep.subr.bf16.mxu0 0
      %1030 = vmatpush1.bf16.msra.mxu0 0
      %1031 = vmatprep.subr.bf16.mxu0 0
      %1032 = vmatpush1.bf16.msra.mxu0 0
      %1033 = vmatprep.subr.bf16.mxu0 0
      %1034 = vmatpush1.bf16.msra.mxu0 0
      %1035 = vmatprep.subr.bf16.mxu0 0
      %1036 = vmatpush1.bf16.msra.mxu0 0
      %1037 = vmatprep.subr.bf16.mxu0 0
      %1038 = vmatpush1.bf16.msra.mxu0 0
      %1039 = vmatprep.subr.bf16.mxu0 0
      %1040 = vmatpush1.bf16.msra.mxu0 0
      %1041 = vmatprep.subr.bf16.mxu0 0
      %1042 = vmatpush1.bf16.msra.mxu0 0
      %1043 = vmatprep.subr.bf16.mxu0 0
      %1044 = vmatpush1.bf16.msra.mxu0 0
      %1045 = vmatprep.subr.bf16.mxu0 0
      %1046 = vmatpush1.bf16.msra.mxu0 0
      %1047 = vmatprep.subr.bf16.mxu0 0
      %1048 = vmatpush1.bf16.msra.mxu0 0
      %1049 = vmatprep.subr.bf16.mxu0 0
      %1050 = vmatpush1.bf16.msra.mxu0 0
      %1051 = vmatprep.subr.bf16.mxu0 0
      %1052 = vmatpush1.bf16.msra.mxu0 0
      %1053 = vmatprep.subr.bf16.mxu0 0
      %1054 = vmatpush1.bf16.msra.mxu0 0
      %1055 = vmatprep.subr.bf16.mxu0 0
      %1056 = vmatpush1.bf16.msra.mxu0 0
      %1057 = vmatprep.mubr.bf16.mxu0 0
      %1058 = vmatmul.mubr.bf16.gmra.mrb[0].mxu0 %v1014
      %v1059 = vpop.f32.mrb[0].mxu0
      %v1060 = vadd.f32 %v999, %v1059
      %v1061 = vpop.f32.mrb[0].mxu0
      %v1062 = vpop.f32.mrb[0].mxu0
      %v1063 = vadd.f32 %v999, %v1062
      %v1064 = vpop.f32.mrb[0].mxu0
      %1065 = vmatprep.mubr.bf16.mxu0 0
      %1066 = vmatmul.mubr.bf16.gmra.mrb[0].mxu0 %v1017
      %v1067 = vpop.f32.mrb[0].mxu0
      %v1068 = vadd.f32 %v999, %v1067
      %v1069 = vpop.f32.mrb[0].mxu0
      %v1070 = vpop.f32.mrb[0].mxu0
      %v1071 = vadd.f32 %v999, %v1070
      %v1072 = vpop.f32.mrb[0].mxu0
      %1073 = vmatprep.mubr.bf16.mxu0 0
      %1074 = vmatmul.mubr.bf16.gmra.mrb[0].mxu0 %v1020
      %v1075 = vpop.f32.mrb[0].mxu0
      %v1076 = vadd.f32 %v999, %v1075
      %v1077 = vpop.f32.mrb[0].mxu0
      %v1078 = vpop.f32.mrb[0].mxu0
      %v1079 = vadd.f32 %v999, %v1078
      %v1080 = vpop.f32.mrb[0].mxu0
      %1081 = vmatprep.mubr.bf16.mxu0 0
      %1082 = vmatmul.mubr.bf16.gmra.mrb[0].mxu0 %v1023
      %v1083 = vpop.f32.mrb[0].mxu0
      %v1084 = vadd.f32 %v999, %v1083
      %v1085 = vpop.f32.mrb[0].mxu0
      %v1086 = vpop.f32.mrb[0].mxu0
      %v1087 = vpop.f32.mrb[0].mxu0
      %1088 = vdwg.mxu0
      %v1089 = vsel %vm526, %v1060, 0.0
      %1090 = vadd.xlane.f32.xlu0 %v1089
      %v1091 = vpop.xlane.xlu0 %1090
      %v1092 = vsel %vm526, %v1063, 0.0
      %1093 = vadd.xlane.f32.xlu0 %v1092
      %v1094 = vpop.xlane.xlu0 %1093
      %v1095 = vsel %vm526, %v1068, 0.0
      %1096 = vadd.xlane.f32.xlu0 %v1095
      %v1097 = vpop.xlane.xlu0 %1096
      %v1098 = vsel %vm526, %v1071, 0.0
      %1099 = vadd.xlane.f32.xlu0 %v1098
      %v1100 = vpop.xlane.xlu0 %1099
      %v1101 = vsel %vm526, %v1076, 0.0
      %1102 = vadd.xlane.f32.xlu0 %v1101
      %v1103 = vpop.xlane.xlu0 %1102
      %v1104 = vsel %vm526, %v1079, 0.0
      %1105 = vadd.xlane.f32.xlu0 %v1104
      %v1106 = vpop.xlane.xlu0 %1105
      %v1107 = vsel %vm621, %v1084, 0.0
      %1108 = vadd.xlane.f32.xlu0 %v1107
      %v1109 = vpop.xlane.xlu0 %1108
      %v1110 = vmul.f32 %v1091, %v625
      %v1111 = vmul.f32 %v1094, %v625
      %v1112 = vmul.f32 %v1097, %v625
      %v1113 = vmul.f32 %v1100, %v625
      %v1114 = vmul.f32 %v1103, %v625
      %v1115 = vmul.f32 %v1106, %v625
      %v1116 = vmul.f32 %v1109, %v625
      %v1117 = vsub.f32 %v1060, %v1110
      %v1118 = vsub.f32 %v1063, %v1111
      %v1119 = vsub.f32 %v1068, %v1112
      %v1120 = vsub.f32 %v1071, %v1113
      %v1121 = vsub.f32 %v1076, %v1114
      %v1122 = vsub.f32 %v1079, %v1115
      %v1123 = vsub.f32 %v1084, %v1116
      %v1124 = vmul.f32 %v1117, %v1117
      %v1125 = vmul.f32 %v1118, %v1118
      %v1126 = vmul.f32 %v1119, %v1119
      %v1127 = vmul.f32 %v1120, %v1120
      %v1128 = vmul.f32 %v1121, %v1121
      %v1129 = vmul.f32 %v1122, %v1122
      %v1130 = vmul.f32 %v1123, %v1123
      %v1131 = vsel %vm526, %v1124, 0.0
      %1132 = vadd.xlane.f32.xlu0 %v1131
      %v1133 = vpop.xlane.xlu0 %1132
      %v1134 = vsel %vm526, %v1125, 0.0
      %1135 = vadd.xlane.f32.xlu0 %v1134
      %v1136 = vpop.xlane.xlu0 %1135
      %v1137 = vsel %vm526, %v1126, 0.0
      %1138 = vadd.xlane.f32.xlu0 %v1137
      %v1139 = vpop.xlane.xlu0 %1138
      %v1140 = vsel %vm526, %v1127, 0.0
      %1141 = vadd.xlane.f32.xlu0 %v1140
      %v1142 = vpop.xlane.xlu0 %1141
      %v1143 = vsel %vm526, %v1128, 0.0
      %1144 = vadd.xlane.f32.xlu0 %v1143
      %v1145 = vpop.xlane.xlu0 %1144
      %v1146 = vsel %vm526, %v1129, 0.0
      %1147 = vadd.xlane.f32.xlu0 %v1146
      %v1148 = vpop.xlane.xlu0 %1147
      %v1149 = vsel %vm621, %v1130, 0.0
      %1150 = vadd.xlane.f32.xlu0 %v1149
      %v1151 = vpop.xlane.xlu0 %1150
      %v1152 = vmul.f32 %v1133, %v625
      %v1153 = vmul.f32 %v1136, %v625
      %v1154 = vmul.f32 %v1139, %v625
      %v1155 = vmul.f32 %v1142, %v625
      %v1156 = vmul.f32 %v1145, %v625
      %v1157 = vmul.f32 %v1148, %v625
      %v1158 = vmul.f32 %v1151, %v625
      %v1159 = vadd.f32 %v1152, 1e-05
      %v1160 = vadd.f32 %v1153, 1e-05
      %v1161 = vadd.f32 %v1154, 1e-05
      %v1162 = vadd.f32 %v1155, 1e-05
      %v1163 = vadd.f32 %v1156, 1e-05
      %v1164 = vadd.f32 %v1157, 1e-05
      %v1165 = vadd.f32 %v1158, 1e-05
      %v1166 = vrsqrt.pop %v1159
      %v1167 = vrsqrt.pop %v1160
      %v1168 = vrsqrt.pop %v1161
      %v1169 = vrsqrt.pop %v1162
      %v1170 = vrsqrt.pop %v1163
      %v1171 = vrsqrt.pop %v1164
      %v1172 = vrsqrt.pop %v1165
      %v1173 = vmul.f32 %v1117, %v1166
      %v1174 = vmul.f32 %v1118, %v1167
      %v1175 = vmul.f32 %v1119, %v1168
      %v1176 = vmul.f32 %v1120, %v1169
      %v1177 = vmul.f32 %v1121, %v1170
      %v1178 = vmul.f32 %v1122, %v1171
      %v1179 = vmul.f32 %v1123, %v1172
      %v1180 = vld [vmem:[%s5] sm:$0x1]
      %v1182 = vlaneseq
      %v1183 = vshrl.u32 %v1182, 7
      %v1184 = vsub.s32 0, %v1183
      %v1185 = vrot.slane %v1180, %v1184
      %v1187 = vmul.f32 %v1173, %v1185
      %v1188 = vmul.f32 %v1174, %v1185
      %v1189 = vmul.f32 %v1175, %v1185
      %v1190 = vmul.f32 %v1176, %v1185
      %v1191 = vmul.f32 %v1177, %v1185
      %v1192 = vmul.f32 %v1178, %v1185
      %v1193 = vmul.f32 %v1179, %v1185
      %v1194 = vld [vmem:[%s6] sm:$0x1]
      %v1196 = vlaneseq
      %v1197 = vshrl.u32 %v1196, 7
      %v1198 = vsub.s32 0, %v1197
      %v1199 = vrot.slane %v1194, %v1198
      %v1201 = vadd.f32 %v1187, %v1199
      %v1202 = vadd.f32 %v1188, %v1199
      %v1203 = vadd.f32 %v1189, %v1199
      %v1204 = vadd.f32 %v1190, %v1199
      %v1205 = vadd.f32 %v1191, %v1199
      %v1206 = vadd.f32 %v1192, %v1199
      %v1207 = vadd.f32 %v1193, %v1199
      %v1208 = vmul.f32 %v1201, 0.5
      %v1209 = vmul.f32 %v1202, 0.5
      %v1210 = vmul.f32 %v1203, 0.5
      %v1211 = vmul.f32 %v1204, 0.5
      %v1212 = vmul.f32 %v1205, 0.5
      %v1213 = vmul.f32 %v1206, 0.5
      %v1214 = vmul.f32 %v1207, 0.5
      %v1215 = vmul.f32 %v1201, 0.044715
      %v1216 = vmul.f32 %v1202, 0.044715
      %v1217 = vmul.f32 %v1203, 0.044715
      %v1218 = vmul.f32 %v1204, 0.044715
      %v1219 = vmul.f32 %v1205, 0.044715
      %v1220 = vmul.f32 %v1206, 0.044715
      %v1221 = vmul.f32 %v1207, 0.044715
      %v1222 = vmul.f32 %v1215, %v1201
      %v1223 = vmul.f32 %v1216, %v1202
      %v1224 = vmul.f32 %v1217, %v1203
      %v1225 = vmul.f32 %v1218, %v1204
      %v1226 = vmul.f32 %v1219, %v1205
      %v1227 = vmul.f32 %v1220, %v1206
      %v1228 = vmul.f32 %v1221, %v1207
      %v1229 = vmul.f32 %v1222, %v1201
      %v1230 = vmul.f32 %v1223, %v1202
      %v1231 = vmul.f32 %v1224, %v1203
      %v1232 = vmul.f32 %v1225, %v1204
      %v1233 = vmul.f32 %v1226, %v1205
      %v1234 = vmul.f32 %v1227, %v1206
      %v1235 = vmul.f32 %v1228, %v1207
      %v1236 = vadd.f32 %v1201, %v1229
      %v1237 = vadd.f32 %v1202, %v1230
      %v1238 = vadd.f32 %v1203, %v1231
      %v1239 = vadd.f32 %v1204, %v1232
      %v1240 = vadd.f32 %v1205, %v1233
      %v1241 = vadd.f32 %v1206, %v1234
      %v1242 = vadd.f32 %v1207, %v1235
      %v1243 = vmul.f32 %v1236, 0.7978846
      %v1244 = vmul.f32 %v1237, 0.7978846
      %v1245 = vmul.f32 %v1238, 0.7978846
      %v1246 = vmul.f32 %v1239, 0.7978846
      %v1247 = vmul.f32 %v1240, 0.7978846
      %v1248 = vmul.f32 %v1241, 0.7978846
      %v1249 = vmul.f32 %v1242, 0.7978846
      %v1250 = vtanh.pop %v1243
      %v1251 = vtanh.pop %v1244
      %v1252 = vtanh.pop %v1245
      %v1253 = vtanh.pop %v1246
      %v1254 = vtanh.pop %v1247
      %v1255 = vtanh.pop %v1248
      %v1256 = vtanh.pop %v1249
      %v1257 = vadd.f32 %v1250, 1.0
      %v1258 = vadd.f32 %v1251, 1.0
      %v1259 = vadd.f32 %v1252, 1.0
      %v1260 = vadd.f32 %v1253, 1.0
      %v1261 = vadd.f32 %v1254, 1.0
      %v1262 = vadd.f32 %v1255, 1.0
      %v1263 = vadd.f32 %v1256, 1.0
      %v1264 = vmul.f32 %v1208, %v1257
      %v1265 = vmul.f32 %v1209, %v1258
      %v1266 = vmul.f32 %v1210, %v1259
      %v1267 = vmul.f32 %v1211, %v1260
      %v1268 = vmul.f32 %v1212, %v1261
      %v1269 = vmul.f32 %v1213, %v1262
      %v1270 = vmul.f32 %v1214, %v1263
      %v1271 = vpack.c.bf16 %v1265, %v1264
      %v1272 = vpack.c.bf16 %v1267, %v1266
      %v1273 = vpack.c.bf16 %v1269, %v1268
      %v1274 = vpack.c.bf16 %v1270, %v1270
      %v1279 = vunpack.c.l.b16 %v1271
      %v1280 = vunpack.c.h.b16 %v1271
      %v1281 = vunpack.c.l.b16 %v1272
      %v1282 = vunpack.c.h.b16 %v1272
      %v1283 = vunpack.c.l.b16 %v1273
      %v1284 = vunpack.c.h.b16 %v1273
      %v1285 = vunpack.c.l.b16 %v1274
      %v1286 = vpack.c.b16 %v1279, %v1279
      %v1287 = vpack.c.b16 %v1280, %v1280
      %v1288 = vpack.c.b16 %v1281, %v1281
      %v1289 = vpack.c.b16 %v1282, %v1282
      %v1290 = vpack.c.b16 %v1283, %v1283
      %v1291 = vpack.c.b16 %v1284, %v1284
      %v1292 = vpack.c.b16 %v1285, %v1285
      %1300 = vst.msk [vmem:[%s338] sm:$0xf] %vm816, %v1286
      %1301 = vst.msk [vmem:[%s338 + $0x4] sm:$0xf] %vm816, %v1287
      %1302 = vst.msk [vmem:[%s338 + $0x8] sm:$0xf] %vm816, %v1288
      %1303 = vst.msk [vmem:[%s338 + $0xc] sm:$0xf] %vm816, %v1289
      %1304 = vst.msk [vmem:[%s338 + $0x10] sm:$0xf] %vm816, %v1290
      %1305 = vst.msk [vmem:[%s338 + $0x14] sm:$0xf] %vm816, %v1291
      %v1306 = vld [vmem:[%s338 + $0x18] sm:$0x1]
      %v1307 = vsel %vm825, %v1292, %v1306
      %1308 = vst [vmem:[%s338 + $0x18] sm:$0x1] %v1307
      %p1309 = scmp.lt.s32.totalorder %s20, 1
      %s1310 = scalar_select %p1309, %s20, 1
      %s1311 = smul.addr %s1310, 7
      %s1312 = smul.addr %s1311, 4
      %s1313 = scalar_lea.vmem %s7, %s1312
      %p1314 = scmp.lt.s32.totalorder %s20, 1
      %s1315 = scalar_select %p1314, %s20, 1
      %s1316 = smul.addr %s1315, 7
      %s1317 = smul.addr %s1316, 4
      %s1318 = scalar_lea.vmem %s8, %s1317
      // Predicated region
      $region49: #{_linear_sra_impl.2} parent=47 // pred_check
        %p1319 = pneg %p195
      $region50: #{_linear_sra_impl.2} parent=47 // pred_check_branch
        %1321 = sbr.rel (%p1319) target = $region52
      $region51: #{_linear_sra_impl.2} parent=47 // pred_region
        _
      $region52: #{_linear_sra_impl.2} parent=47 // pred_fallthru
        _
      // Predicated region
      $region53: #{_linear_sra_impl.2} parent=47 // pred_check
        %p1322 = pneg %p221
      $region54: #{_linear_sra_impl.2} parent=47 // pred_check_branch
        %1324 = sbr.rel (%p1322) target = $region56
      $region55: #{_linear_sra_impl.2} parent=47 // pred_region
        _
      $region56: #{_linear_sra_impl.2} parent=47 // pred_fallthru
        _
    $region48: #{_linear_sra_impl.2} parent=5 // pred_fallthru
      _
    %p1325 = scmp.le.s32.totalorder 2, %s15
    // Predicated region
    $region57: #{_linear_sra_impl.2} parent=5 // pred_check
      %p1326 = pneg %p1325
    $region58: #{_linear_sra_impl.2} parent=5 // pred_check_branch
      %1328 = sbr.rel (%p1326) target = $region60
    $region59: #{_linear_sra_impl.2} parent=5 // pred_region
      %s1329 = ssub.s32 %s15, 2
      // Predicated region
      $region61: #{_linear_sra_impl.2} parent=59 // pred_check
        %p1330 = pneg %p201
      $region62: #{_linear_sra_impl.2} parent=59 // pred_check_branch
        %1332 = sbr.rel (%p1330) target = $region64
      $region63: #{_linear_sra_impl.2} parent=59 // pred_region
        %p1333 = scmp.lt.s32.totalorder %s21, 1
        %s1334 = scalar_select %p1333, %s21, 1
        %s1335 = smul.addr %s1334, 7
        %s1336 = smul.addr %s1335, 4
        %s1337 = scalar_lea.vmem %s7, %s1336
      $region64: #{_linear_sra_impl.2} parent=59 // pred_fallthru
        _
      // Predicated region
      $region65: #{_linear_sra_impl.2} parent=59 // pred_check
        %p1338 = pneg %p227
      $region66: #{_linear_sra_impl.2} parent=59 // pred_check_branch
        %1340 = sbr.rel (%p1338) target = $region68
      $region67: #{_linear_sra_impl.2} parent=59 // pred_region
        %p1341 = scmp.lt.s32.totalorder %s21, 1
        %s1342 = scalar_select %p1341, %s21, 1
        %s1343 = smul.addr %s1342, 7
        %s1344 = smul.addr %s1343, 4
        %s1345 = scalar_lea.vmem %s8, %s1344
      $region68: #{_linear_sra_impl.2} parent=59 // pred_fallthru
        _
    $region60: #{_linear_sra_impl.2} parent=5 // pred_fallthru
      _
  $region6: #{_linear_sra_impl.2} parent=0 // loop_footer
    %s19 = sadd.s32 1, %s15
  $region7: #{_linear_sra_impl.2} parent=0 // loop_footer_branch
    %14 = sbr.rel target = $region3
  $region8: #{_linear_sra_impl.2} parent=0 // loop_exit
    _

// kernel: _linear_sra_impl.3
$region0: #{_linear_sra_impl.3}
  #allocation0 [shape = 'u32[]', space=smem, size = 0x4, offset = 0x4, fixed_abs, tag = 'smem constant byte address 0x4 - core index']
  #allocation1 [shape = 'u32[144,128]{1,0:T(1,128)}', space=vmem, size = 0x12000, scoped, tag = 'internal scratch']
  %s0 = inlined_call_operand.vmem [shape: f32[2,8,32], index: 0, kind: input, shape index: {}]
  %s1 = inlined_call_operand.vmem [shape: bf16[2,49,32], index: 1, kind: input, shape index: {}]
  %s2 = inlined_call_operand.vmem [shape: bf16[2,49,32], index: 2, kind: input, shape index: {}]
  %s3 = inlined_call_operand.vmem [shape: bf16[4,32,8], index: 3, kind: input, shape index: {}]
  %s4 = inlined_call_operand.vmem [shape: bf16[4,32,8], index: 4, kind: input, shape index: {}]
  %s5 = inlined_call_operand.vmem [shape: bf16[4,32,8], index: 5, kind: input, shape index: {}]
  %s6 = inlined_call_operand.vmem [shape: bf16[4,8,32], index: 6, kind: input, shape index: {}]
  %s7 = inlined_call_operand.vmem [shape: f32[4,1,8], index: 7, kind: input, shape index: {}]
  %s8 = inlined_call_operand.vmem [shape: f32[4,1,8], index: 8, kind: input, shape index: {}]
  %s9 = inlined_call_operand.vmem [shape: f32[4,1,8], index: 9, kind: input, shape index: {}]
  %s10 = inlined_call_operand.vmem [shape: f32[1,32], index: 10, kind: input, shape index: {}]
  %s11 = inlined_call_operand.hbm [shape: f32[2,8,32], index: 11, kind: output, shape index: {0}]
  %s12 = inlined_call_operand.hbm [shape: f32[2,4,8,49], index: 12, kind: output, shape index: {1}]
  %13 = xla_tuple %s11, %s12
  %s14 = sld [smem:[#allocation0]]
  $region85: #{_linear_sra_impl.3} parent=0
    _
  %s16 = ssub.s32 1, %s14
  %s17 = scalar_select 0, %s16, %s14
  $region1: #{_linear_sra_impl.3} parent=0
    #allocation2 [shape = 'u8[8192]{0}', space=vmem, size = 0x2000, scoped, tag = 'output window, operand 0']
    #allocation3 [shape = 's32[2]{0}', space=sflag, size = 0x8, scoped, tag = 'scoped memory for _linear_sra_impl.3']
    #allocation4 [shape = 'u8[32768]{0}', space=vmem, size = 0x8000, scoped, tag = 'output window, operand 1']
    #allocation5 [shape = 's32[2]{0}', space=sflag, size = 0x8, scoped, tag = 'scoped memory for _linear_sra_impl.3']
    %18 = vsyncpa [#allocation3], 0
    %s19 = scalar_lea.sflag [#allocation3], 1
    %20 = vsyncpa %s19, 0
    %21 = vsyncpa [#allocation5], 0
    %s22 = scalar_lea.sflag [#allocation5], 1
    %23 = vsyncpa %s22, 0
    loop: start=0, step=1, limit=4
    $region2: #{_linear_sra_impl.3} parent=1 // loop_pre_header
      _
    $region3: #{_linear_sra_impl.3} parent=1 // loop_header
      %s25 = sphi 0, %s29
      %p26 = scmp.ge.s32.totalorder %s25, 4
      %s32 = sphi 0, %s44
      %s33 = sphi 0, %s40
      %s34 = sphi 0, %s32
      %s35 = sphi 0, %s33
      %s36 = sphi 0, %s34
      %s37 = sphi 0, %s35
      %s49 = sphi 0, %s51
      %s52 = sphi 0, %s49
      %s53 = sphi 0, %s52
      %s69 = sphi 0, %s53
      %s75 = sphi 0, %s77
      %s78 = sphi 0, %s75
      %s79 = sphi 0, %s78
      %s95 = sphi 0, %s79
      %s101 = sphi 0, %s103
      %s104 = sphi 0, %s101
      %s105 = sphi 0, %s104
      %s121 = sphi 0, %s105
      %s125 = sphi 0, %s125
      %s127 = sphi 0, %s125
      %s128 = sphi 0, %s127
      %s142 = sphi 0, %s128
      %s146 = sphi 0, %s146
      %s148 = sphi 0, %s146
      %s149 = sphi 0, %s148
      %s163 = sphi 0, %s149
      %s167 = sphi 0, %s167
      %s169 = sphi 0, %s167
      %s170 = sphi 0, %s169
      %s184 = sphi 0, %s170
      %s188 = sphi 0, %s188
      %s190 = sphi 0, %s188
      %s191 = sphi 0, %s190
      %s205 = sphi 0, %s191
      %s209 = sphi 0, %s209
      %s211 = sphi 0, %s209
      %s212 = sphi 0, %s211
      %s226 = sphi 0, %s212
      %s230 = sphi 0, %s230
      %s232 = sphi 0, %s230
      %s233 = sphi 0, %s232
      %s247 = sphi 0, %s233
      %s251 = sphi 0, %s251
      %s253 = sphi 0, %s251
      %s254 = sphi 0, %s253
      %s268 = sphi 0, %s254
      %s272 = sphi 0, %s272
      %s274 = sphi 0, %s272
      %s275 = sphi 0, %s274
      %s289 = sphi 0, %s275
      %s297 = sphi 0, %s299
      %s300 = sphi 0, %s297
      %s301 = sphi 0, %s300
      %s317 = sphi 0, %s301
      %s325 = sphi 0, %s327
      %s328 = sphi 0, %s325
      %s329 = sphi 0, %s328
      %s345 = sphi 0, %s329
    $region4: #{_linear_sra_impl.3} parent=1 // loop_header_branch
      %28 = sbr.rel (%p26) target = $region8
    $region5: #{_linear_sra_impl.3} parent=1 // loop_body
      %s30 = ssub.s32 %s25, 1
      %s31 = ssub.s32 %s25, 2
      %s38 = sadd.s32 1, %s33
      %p39 = scmp.ge.s32.totalorder %s38, 1
      %s40 = scalar_select %p39, 0, %s38
      %s41 = sadd.s32 1, %s32
      %s42 = scalar_select %p39, %s41, %s32
      %p43 = scmp.ge.s32.totalorder %s42, 2
      %s44 = scalar_select %p43, 0, %s42
      %s45 = ssub.s32 %s32, %s44
      %s46 = ssub.s32 %s33, %s40
      %s47 = sor.u32 %s45, %s46
      %p48 = scmp.eq.s32.totalorder %s47, 0
      %s50 = sadd.s32 %s49, 1
      %s51 = scalar_select %p48, %s49, %s50
      %p54 = pneg %p48
      %p55 = scmp.eq.s32.totalorder %s25, 1
      %p56 = por %p54, %p55
      %p57 = scmp.ne.s32.totalorder %s49, %s52
      %p58 = scmp.eq.s32.totalorder %s25, 0
      %p59 = por %p57, %p58
      %p60 = scmp.ne.s32.totalorder %s49, %s52
      %p61 = scmp.eq.s32.totalorder %s30, 1
      %p62 = por %p60, %p61
      %p63 = scmp.ne.s32.totalorder %s52, %s53
      %p64 = scmp.eq.s32.totalorder %s30, 0
      %p65 = por %p63, %p64
      %p66 = scmp.ne.s32.totalorder %s52, %s53
      %p67 = scmp.eq.s32.totalorder %s31, 1
      %p68 = por %p66, %p67
      %p70 = scmp.ne.s32.totalorder %s53, %s69
      %p71 = scmp.eq.s32.totalorder %s31, 0
      %p72 = por %p70, %p71
      %s73 = ssub.s32 %s32, %s44
      %p74 = scmp.eq.s32.totalorder %s73, 0
      %s76 = sadd.s32 %s75, 1
      %s77 = scalar_select %p74, %s75, %s76
      %p80 = pneg %p74
      %p81 = scmp.eq.s32.totalorder %s25, 1
      %p82 = por %p80, %p81
      %p83 = scmp.ne.s32.totalorder %s75, %s78
      %p84 = scmp.eq.s32.totalorder %s25, 0
      %p85 = por %p83, %p84
      %p86 = scmp.ne.s32.totalorder %s75, %s78
      %p87 = scmp.eq.s32.totalorder %s30, 1
      %p88 = por %p86, %p87
      %p89 = scmp.ne.s32.totalorder %s78, %s79
      %p90 = scmp.eq.s32.totalorder %s30, 0
      %p91 = por %p89, %p90
      %p92 = scmp.ne.s32.totalorder %s78, %s79
      %p93 = scmp.eq.s32.totalorder %s31, 1
      %p94 = por %p92, %p93
      %p96 = scmp.ne.s32.totalorder %s79, %s95
      %p97 = scmp.eq.s32.totalorder %s31, 0
      %p98 = por %p96, %p97
      %s99 = ssub.s32 %s32, %s44
      %p100 = scmp.eq.s32.totalorder %s99, 0
      %s102 = sadd.s32 %s101, 1
      %s103 = scalar_select %p100, %s101, %s102
      %p106 = pneg %p100
      %p107 = scmp.eq.s32.totalorder %s25, 1
      %p108 = por %p106, %p107
      %p109 = scmp.ne.s32.totalorder %s101, %s104
      %p110 = scmp.eq.s32.totalorder %s25, 0
      %p111 = por %p109, %p110
      %p112 = scmp.ne.s32.totalorder %s101, %s104
      %p113 = scmp.eq.s32.totalorder %s30, 1
      %p114 = por %p112, %p113
      %p115 = scmp.ne.s32.totalorder %s104, %s105
      %p116 = scmp.eq.s32.totalorder %s30, 0
      %p117 = por %p115, %p116
      %p118 = scmp.ne.s32.totalorder %s104, %s105
      %p119 = scmp.eq.s32.totalorder %s31, 1
      %p120 = por %p118, %p119
      %p122 = scmp.ne.s32.totalorder %s105, %s121
      %p123 = scmp.eq.s32.totalorder %s31, 0
      %p124 = por %p122, %p123
      %s126 = sadd.s32 %s125, 1
      %p129 = scmp.eq.s32.totalorder %s25, 1
      %p130 = scmp.ne.s32.totalorder %s125, %s127
      %p131 = scmp.eq.s32.totalorder %s25, 0
      %p132 = por %p130, %p131
      %p133 = scmp.ne.s32.totalorder %s125, %s127
      %p134 = scmp.eq.s32.totalorder %s30, 1
      %p135 = por %p133, %p134
      %p136 = scmp.ne.s32.totalorder %s127, %s128
      %p137 = scmp.eq.s32.totalorder %s30, 0
      %p138 = por %p136, %p137
      %p139 = scmp.ne.s32.totalorder %s127, %s128
      %p140 = scmp.eq.s32.totalorder %s31, 1
      %p141 = por %p139, %p140
      %p143 = scmp.ne.s32.totalorder %s128, %s142
      %p144 = scmp.eq.s32.totalorder %s31, 0
      %p145 = por %p143, %p144
      %s147 = sadd.s32 %s146, 1
      %p150 = scmp.eq.s32.totalorder %s25, 1
      %p151 = scmp.ne.s32.totalorder %s146, %s148
      %p152 = scmp.eq.s32.totalorder %s25, 0
      %p153 = por %p151, %p152
      %p154 = scmp.ne.s32.totalorder %s146, %s148
      %p155 = scmp.eq.s32.totalorder %s30, 1
      %p156 = por %p154, %p155
      %p157 = scmp.ne.s32.totalorder %s148, %s149
      %p158 = scmp.eq.s32.totalorder %s30, 0
      %p159 = por %p157, %p158
      %p160 = scmp.ne.s32.totalorder %s148, %s149
      %p161 = scmp.eq.s32.totalorder %s31, 1
      %p162 = por %p160, %p161
      %p164 = scmp.ne.s32.totalorder %s149, %s163
      %p165 = scmp.eq.s32.totalorder %s31, 0
      %p166 = por %p164, %p165
      %s168 = sadd.s32 %s167, 1
      %p171 = scmp.eq.s32.totalorder %s25, 1
      %p172 = scmp.ne.s32.totalorder %s167, %s169
      %p173 = scmp.eq.s32.totalorder %s25, 0
      %p174 = por %p172, %p173
      %p175 = scmp.ne.s32.totalorder %s167, %s169
      %p176 = scmp.eq.s32.totalorder %s30, 1
      %p177 = por %p175, %p176
      %p178 = scmp.ne.s32.totalorder %s169, %s170
      %p179 = scmp.eq.s32.totalorder %s30, 0
      %p180 = por %p178, %p179
      %p181 = scmp.ne.s32.totalorder %s169, %s170
      %p182 = scmp.eq.s32.totalorder %s31, 1
      %p183 = por %p181, %p182
      %p185 = scmp.ne.s32.totalorder %s170, %s184
      %p186 = scmp.eq.s32.totalorder %s31, 0
      %p187 = por %p185, %p186
      %s189 = sadd.s32 %s188, 1
      %p192 = scmp.eq.s32.totalorder %s25, 1
      %p193 = scmp.ne.s32.totalorder %s188, %s190
      %p194 = scmp.eq.s32.totalorder %s25, 0
      %p195 = por %p193, %p194
      %p196 = scmp.ne.s32.totalorder %s188, %s190
      %p197 = scmp.eq.s32.totalorder %s30, 1
      %p198 = por %p196, %p197
      %p199 = scmp.ne.s32.totalorder %s190, %s191
      %p200 = scmp.eq.s32.totalorder %s30, 0
      %p201 = por %p199, %p200
      %p202 = scmp.ne.s32.totalorder %s190, %s191
      %p203 = scmp.eq.s32.totalorder %s31, 1
      %p204 = por %p202, %p203
      %p206 = scmp.ne.s32.totalorder %s191, %s205
      %p207 = scmp.eq.s32.totalorder %s31, 0
      %p208 = por %p206, %p207
      %s210 = sadd.s32 %s209, 1
      %p213 = scmp.eq.s32.totalorder %s25, 1
      %p214 = scmp.ne.s32.totalorder %s209, %s211
      %p215 = scmp.eq.s32.totalorder %s25, 0
      %p216 = por %p214, %p215
      %p217 = scmp.ne.s32.totalorder %s209, %s211
      %p218 = scmp.eq.s32.totalorder %s30, 1
      %p219 = por %p217, %p218
      %p220 = scmp.ne.s32.totalorder %s211, %s212
      %p221 = scmp.eq.s32.totalorder %s30, 0
      %p222 = por %p220, %p221
      %p223 = scmp.ne.s32.totalorder %s211, %s212
      %p224 = scmp.eq.s32.totalorder %s31, 1
      %p225 = por %p223, %p224
      %p227 = scmp.ne.s32.totalorder %s212, %s226
      %p228 = scmp.eq.s32.totalorder %s31, 0
      %p229 = por %p227, %p228
      %s231 = sadd.s32 %s230, 1
      %p234 = scmp.eq.s32.totalorder %s25, 1
      %p235 = scmp.ne.s32.totalorder %s230, %s232
      %p236 = scmp.eq.s32.totalorder %s25, 0
      %p237 = por %p235, %p236
      %p238 = scmp.ne.s32.totalorder %s230, %s232
      %p239 = scmp.eq.s32.totalorder %s30, 1
      %p240 = por %p238, %p239
      %p241 = scmp.ne.s32.totalorder %s232, %s233
      %p242 = scmp.eq.s32.totalorder %s30, 0
      %p243 = por %p241, %p242
      %p244 = scmp.ne.s32.totalorder %s232, %s233
      %p245 = scmp.eq.s32.totalorder %s31, 1
      %p246 = por %p244, %p245
      %p248 = scmp.ne.s32.totalorder %s233, %s247
      %p249 = scmp.eq.s32.totalorder %s31, 0
      %p250 = por %p248, %p249
      %s252 = sadd.s32 %s251, 1
      %p255 = scmp.eq.s32.totalorder %s25, 1
      %p256 = scmp.ne.s32.totalorder %s251, %s253
      %p257 = scmp.eq.s32.totalorder %s25, 0
      %p258 = por %p256, %p257
      %p259 = scmp.ne.s32.totalorder %s251, %s253
      %p260 = scmp.eq.s32.totalorder %s30, 1
      %p261 = por %p259, %p260
      %p262 = scmp.ne.s32.totalorder %s253, %s254
      %p263 = scmp.eq.s32.totalorder %s30, 0
      %p264 = por %p262, %p263
      %p265 = scmp.ne.s32.totalorder %s253, %s254
      %p266 = scmp.eq.s32.totalorder %s31, 1
      %p267 = por %p265, %p266
      %p269 = scmp.ne.s32.totalorder %s254, %s268
      %p270 = scmp.eq.s32.totalorder %s31, 0
      %p271 = por %p269, %p270
      %s273 = sadd.s32 %s272, 1
      %p276 = scmp.eq.s32.totalorder %s25, 1
      %p277 = scmp.ne.s32.totalorder %s272, %s274
      %p278 = scmp.eq.s32.totalorder %s25, 0
      %p279 = por %p277, %p278
      %p280 = scmp.ne.s32.totalorder %s272, %s274
      %p281 = scmp.eq.s32.totalorder %s30, 1
      %p282 = por %p280, %p281
      %p283 = scmp.ne.s32.totalorder %s274, %s275
      %p284 = scmp.eq.s32.totalorder %s30, 0
      %p285 = por %p283, %p284
      %p286 = scmp.ne.s32.totalorder %s274, %s275
      %p287 = scmp.eq.s32.totalorder %s31, 1
      %p288 = por %p286, %p287
      %p290 = scmp.ne.s32.totalorder %s275, %s289
      %p291 = scmp.eq.s32.totalorder %s31, 0
      %p292 = por %p290, %p291
      %s293 = ssub.s32 %s32, %s44
      %s294 = ssub.s32 %s33, %s40
      %s295 = sor.u32 %s293, %s294
      %p296 = scmp.eq.s32.totalorder %s295, 0
      %s298 = sadd.s32 %s297, 1
      %s299 = scalar_select %p296, %s297, %s298
      %p302 = pneg %p296
      %p303 = scmp.eq.s32.totalorder %s25, 1
      %p304 = por %p302, %p303
      %p305 = scmp.ne.s32.totalorder %s297, %s300
      %p306 = scmp.eq.s32.totalorder %s25, 0
      %p307 = por %p305, %p306
      %p308 = scmp.ne.s32.totalorder %s297, %s300
      %p309 = scmp.eq.s32.totalorder %s30, 1
      %p310 = por %p308, %p309
      %p311 = scmp.ne.s32.totalorder %s300, %s301
      %p312 = scmp.eq.s32.totalorder %s30, 0
      %p313 = por %p311, %p312
      %p314 = scmp.ne.s32.totalorder %s300, %s301
      %p315 = scmp.eq.s32.totalorder %s31, 1
      %p316 = por %p314, %p315
      %p318 = scmp.ne.s32.totalorder %s301, %s317
      %p319 = scmp.eq.s32.totalorder %s31, 0
      %p320 = por %p318, %p319
      %s321 = ssub.s32 %s32, %s44
      %s322 = ssub.s32 %s33, %s40
      %s323 = sor.u32 %s321, %s322
      %p324 = scmp.eq.s32.totalorder %s323, 0
      %s326 = sadd.s32 %s325, 1
      %s327 = scalar_select %p324, %s325, %s326
      %p330 = pneg %p324
      %p331 = scmp.eq.s32.totalorder %s25, 1
      %p332 = por %p330, %p331
      %p333 = scmp.ne.s32.totalorder %s325, %s328
      %p334 = scmp.eq.s32.totalorder %s25, 0
      %p335 = por %p333, %p334
      %p336 = scmp.ne.s32.totalorder %s325, %s328
      %p337 = scmp.eq.s32.totalorder %s30, 1
      %p338 = por %p336, %p337
      %p339 = scmp.ne.s32.totalorder %s328, %s329
      %p340 = scmp.eq.s32.totalorder %s30, 0
      %p341 = por %p339, %p340
      %p342 = scmp.ne.s32.totalorder %s328, %s329
      %p343 = scmp.eq.s32.totalorder %s31, 1
      %p344 = por %p342, %p343
      %p346 = scmp.ne.s32.totalorder %s329, %s345
      %p347 = scmp.eq.s32.totalorder %s31, 0
      %p348 = por %p346, %p347
      %p349 = scmp.le.s32.totalorder 1, %s25
      %p350 = scmp.lt.s32.totalorder %s25, 3
      %p351 = pnand %p349, %p350
      %p352 = pneg %p351
      // Predicated region
      $region9: #{_linear_sra_impl.3} parent=5 // pred_check
        _
      $region10: #{_linear_sra_impl.3} parent=5 // pred_check_branch
        %354 = sbr.rel (%p351) target = $region12
      $region11: #{_linear_sra_impl.3} parent=5 // pred_region
        %s355 = ssub.s32 %s25, 1
        // Predicated region
        $region13: #{_linear_sra_impl.3} parent=11 // pred_check
          %p356 = pneg %p138
        $region14: #{_linear_sra_impl.3} parent=11 // pred_check_branch
          %358 = sbr.rel (%p356) target = $region16
        $region15: #{_linear_sra_impl.3} parent=11 // pred_region
          _
        $region16: #{_linear_sra_impl.3} parent=11 // pred_fallthru
          _
        // Predicated region
        $region17: #{_linear_sra_impl.3} parent=11 // pred_check
          %p359 = pneg %p159
        $region18: #{_linear_sra_impl.3} parent=11 // pred_check_branch
          %361 = sbr.rel (%p359) target = $region20
        $region19: #{_linear_sra_impl.3} parent=11 // pred_region
          _
        $region20: #{_linear_sra_impl.3} parent=11 // pred_fallthru
          _
        // Predicated region
        $region21: #{_linear_sra_impl.3} parent=11 // pred_check
          %p362 = pneg %p180
        $region22: #{_linear_sra_impl.3} parent=11 // pred_check_branch
          %364 = sbr.rel (%p362) target = $region24
        $region23: #{_linear_sra_impl.3} parent=11 // pred_region
          _
        $region24: #{_linear_sra_impl.3} parent=11 // pred_fallthru
          _
        // Predicated region
        $region25: #{_linear_sra_impl.3} parent=11 // pred_check
          %p365 = pneg %p201
        $region26: #{_linear_sra_impl.3} parent=11 // pred_check_branch
          %367 = sbr.rel (%p365) target = $region28
        $region27: #{_linear_sra_impl.3} parent=11 // pred_region
          _
        $region28: #{_linear_sra_impl.3} parent=11 // pred_fallthru
          _
        // Predicated region
        $region29: #{_linear_sra_impl.3} parent=11 // pred_check
          %p368 = pneg %p222
        $region30: #{_linear_sra_impl.3} parent=11 // pred_check_branch
          %370 = sbr.rel (%p368) target = $region32
        $region31: #{_linear_sra_impl.3} parent=11 // pred_region
          _
        $region32: #{_linear_sra_impl.3} parent=11 // pred_fallthru
          _
        // Predicated region
        $region33: #{_linear_sra_impl.3} parent=11 // pred_check
          %p371 = pneg %p243
        $region34: #{_linear_sra_impl.3} parent=11 // pred_check_branch
          %373 = sbr.rel (%p371) target = $region36
        $region35: #{_linear_sra_impl.3} parent=11 // pred_region
          _
        $region36: #{_linear_sra_impl.3} parent=11 // pred_fallthru
          _
        // Predicated region
        $region37: #{_linear_sra_impl.3} parent=11 // pred_check
          %p374 = pneg %p264
        $region38: #{_linear_sra_impl.3} parent=11 // pred_check_branch
          %376 = sbr.rel (%p374) target = $region40
        $region39: #{_linear_sra_impl.3} parent=11 // pred_region
          _
        $region40: #{_linear_sra_impl.3} parent=11 // pred_fallthru
          _
        // Predicated region
        $region41: #{_linear_sra_impl.3} parent=11 // pred_check
          %p377 = pneg %p285
        $region42: #{_linear_sra_impl.3} parent=11 // pred_check_branch
          %379 = sbr.rel (%p377) target = $region44
        $region43: #{_linear_sra_impl.3} parent=11 // pred_region
          _
        $region44: #{_linear_sra_impl.3} parent=11 // pred_fallthru
          _
      $region12: #{_linear_sra_impl.3} parent=5 // pred_fallthru
        _
      %p380 = scmp.lt.s32.totalorder %s25, 2
      // Predicated region
      $region45: #{_linear_sra_impl.3} parent=5 // pred_check
        %p381 = pneg %p380
      $region46: #{_linear_sra_impl.3} parent=5 // pred_check_branch
        %383 = sbr.rel (%p381) target = $region48
      $region47: #{_linear_sra_impl.3} parent=5 // pred_region
        // Predicated region
        $region49: #{_linear_sra_impl.3} parent=47 // pred_check
          %p384 = pneg %p59
        $region50: #{_linear_sra_impl.3} parent=47 // pred_check_branch
          %386 = sbr.rel (%p384) target = $region52
        $region51: #{_linear_sra_impl.3} parent=47 // pred_region
          %p387 = scmp.lt.s32.totalorder %s32, 1
          %s388 = scalar_select %p387, %s32, 1
          %p389 = scmp.lt.s32.totalorder %s33, 0
          %s390 = scalar_select %p389, %s33, 0
          %s391 = sadd.s32 %s390, %s388
          %s392 = smul.addr %s391, 8
          %s393 = scalar_lea.vmem %s0, %s392
        $region52: #{_linear_sra_impl.3} parent=47 // pred_fallthru
          _
        // Predicated region
        $region53: #{_linear_sra_impl.3} parent=47 // pred_check
          %p394 = pneg %p85
        $region54: #{_linear_sra_impl.3} parent=47 // pred_check_branch
          %396 = sbr.rel (%p394) target = $region56
        $region55: #{_linear_sra_impl.3} parent=47 // pred_region
          %p397 = scmp.lt.s32.totalorder %s32, 1
          %s398 = scalar_select %p397, %s32, 1
          %s399 = smul.addr %s398, 7
          %s400 = smul.addr %s399, 4
          %s401 = scalar_lea.vmem %s1, %s400
        $region56: #{_linear_sra_impl.3} parent=47 // pred_fallthru
          _
        // Predicated region
        $region57: #{_linear_sra_impl.3} parent=47 // pred_check
          %p402 = pneg %p111
        $region58: #{_linear_sra_impl.3} parent=47 // pred_check_branch
          %404 = sbr.rel (%p402) target = $region60
        $region59: #{_linear_sra_impl.3} parent=47 // pred_region
          %p405 = scmp.lt.s32.totalorder %s32, 1
          %s406 = scalar_select %p405, %s32, 1
          %s407 = smul.addr %s406, 7
          %s408 = smul.addr %s407, 4
          %s409 = scalar_lea.vmem %s2, %s408
        $region60: #{_linear_sra_impl.3} parent=47 // pred_fallthru
          _
      $region48: #{_linear_sra_impl.3} parent=5 // pred_fallthru
        _
      %p410 = scmp.le.s32.totalorder 1, %s25
      %p411 = scmp.lt.s32.totalorder %s25, 3
      %p412 = pnand %p410, %p411
      %p413 = pneg %p412
      // Predicated region
      $region61: #{_linear_sra_impl.3} parent=5 // pred_check
        _
      $region62: #{_linear_sra_impl.3} parent=5 // pred_check_branch
        %415 = sbr.rel (%p412) target = $region64
      $region63: #{_linear_sra_impl.3} parent=5 // pred_region
        %s416 = ssub.s32 %s25, 1
        %p417 = scmp.lt.s32.totalorder %s34, 1
        %s418 = scalar_select %p417, %s34, 1
        %p419 = scmp.lt.s32.totalorder %s35, 0
        %s420 = scalar_select %p419, %s35, 0
        %s421 = sadd.s32 %s420, %s418
        %s422 = smul.addr %s421, 8
        %s423 = scalar_lea.vmem %s0, %s422
        %p424 = pneg %p65
        %p425 = pneg %p62
        %p426 = scmp.lt.s32.totalorder %s34, 1
        %s427 = scalar_select %p426, %s34, 1
        %s428 = smul.addr %s427, 7
        %s429 = smul.addr %s428, 4
        %s430 = scalar_lea.vmem %s1, %s429
        %p431 = pneg %p91
        %p432 = pneg %p88
        %p433 = scmp.lt.s32.totalorder %s34, 1
        %s434 = scalar_select %p433, %s34, 1
        %s435 = smul.addr %s434, 7
        %s436 = smul.addr %s435, 4
        %s437 = scalar_lea.vmem %s2, %s436
        %p438 = pneg %p117
        %p439 = pneg %p114
        %p440 = pneg %p138
        %p441 = pneg %p135
        %p442 = pneg %p159
        %p443 = pneg %p156
        %p444 = pneg %p180
        %p445 = pneg %p177
        %p446 = pneg %p201
        %p447 = pneg %p198
        %p448 = pneg %p222
        %p449 = pneg %p219
        %p450 = pneg %p243
        %p451 = pneg %p240
        %p452 = pneg %p264
        %p453 = pneg %p261
        %p454 = pneg %p285
        %p455 = pneg %p282
        %p456 = pneg %p313
        %p457 = pneg %p310
        %s458 = sand.u32 %s300, 1
        %s459 = scalar_lea.sflag [#allocation3], %s458
        %s460 = sand.u32 %s300, 1
        %s461 = smul.addr %s460, 8
        %s462 = scalar_lea.vmem [#allocation2], %s461
        %p463 = pneg %p341
        %p464 = pneg %p338
        %s465 = sand.u32 %s328, 1
        %s466 = scalar_lea.sflag [#allocation5], %s465
        %s467 = sand.u32 %s328, 1
        %s468 = smul.addr %s467, 32
        %s469 = scalar_lea.vmem [#allocation4], %s468
        %p470 = scmp.lt.s32.totalorder %s34, 1
        %s471 = scalar_select %p470, %s34, 1
        %p472 = scmp.lt.s32.totalorder %s35, 0
        %s473 = scalar_select %p472, %s35, 0
        %s474 = sadd.s32 %s473, %s471
        %s475 = smul.addr %s474, 8
        %s476 = scalar_lea.vmem %s0, %s475
        %p477 = scmp.lt.s32.totalorder %s34, 1
        %s478 = scalar_select %p477, %s34, 1
        %s479 = smul.addr %s478, 7
        %s480 = smul.addr %s479, 4
        %s481 = scalar_lea.vmem %s1, %s480
        %p482 = scmp.lt.s32.totalorder %s34, 1
        %s483 = scalar_select %p482, %s34, 1
        %s484 = smul.addr %s483, 7
        %s485 = smul.addr %s484, 4
        %s486 = scalar_lea.vmem %s2, %s485
        %v488 = vld [vmem:[%s476] sm:$0xff]
        %v489 = vpack.c.bf16 %v488, %v488
        %v490 = vld [vmem:[%s481] sm:$0xf]
        %v491 = vld [vmem:[%s481 + $0x4] sm:$0xf]
        %v492 = vld [vmem:[%s481 + $0x8] sm:$0xf]
        %v493 = vld [vmem:[%s481 + $0xc] sm:$0xf]
        %v494 = vld [vmem:[%s481 + $0x10] sm:$0xf]
        %v495 = vld [vmem:[%s481 + $0x14] sm:$0xf]
        %v496 = vld [vmem:[%s481 + $0x18] sm:$0x1]
        %v497 = vld [vmem:[%s486] sm:$0xf]
        %v498 = vld [vmem:[%s486 + $0x4] sm:$0xf]
        %v499 = vld [vmem:[%s486 + $0x8] sm:$0xf]
        %v500 = vld [vmem:[%s486 + $0xc] sm:$0xf]
        %v501 = vld [vmem:[%s486 + $0x10] sm:$0xf]
        %v502 = vld [vmem:[%s486 + $0x14] sm:$0xf]
        %v503 = vld [vmem:[%s486 + $0x18] sm:$0x1]
        %v504 = vld [vmem:[%s3] sm:$0xf]
        %v505 = vld [vmem:[%s3 + $0x4] sm:$0xf]
        %v506 = vld [vmem:[%s3 + $0x8] sm:$0xf]
        %v507 = vld [vmem:[%s3 + $0xc] sm:$0xf]
        %v508 = vld [vmem:[%s7] sm:$0x1]
        %v510 = vlaneseq
        %v511 = vshrl.u32 %v510, 7
        %v512 = vsub.s32 0, %v511
        %v513 = vrot.slane %v508, %v512
        %v519 = vunpack.c.l.b16 %v504
        %v520 = vunpack.c.l.b16 %v505
        %v521 = vunpack.c.l.b16 %v506
        %v522 = vunpack.c.l.b16 %v507
        %v523 = vpack.c.b16 %v520, %v519
        %v524 = vpack.c.b16 %v522, %v521
        %vm527 = vcmask 261120
        %v529 = vsel %vm527, %v489, 0
        %531 = vmatprep.subr.bf16.mxu0 0
        %532 = vmatpush1.bf16.msra.mxu0 %v523
        %533 = vmatprep.subr.bf16.mxu0 0
        %534 = vmatpush1.bf16.msra.mxu0 %v524
        %535 = vmatprep.subr.bf16.mxu0 0
        %536 = vmatpush1.bf16.msra.mxu0 0
        %537 = vmatprep.subr.bf16.mxu0 0
        %538 = vmatpush1.bf16.msra.mxu0 0
        %539 = vmatprep.subr.bf16.mxu0 0
        %540 = vmatpush1.bf16.msra.mxu0 0
        %541 = vmatprep.subr.bf16.mxu0 0
        %542 = vmatpush1.bf16.msra.mxu0 0
        %543 = vmatprep.subr.bf16.mxu0 0
        %544 = vmatpush1.bf16.msra.mxu0 0
        %545 = vmatprep.subr.bf16.mxu0 0
        %546 = vmatpush1.bf16.msra.mxu0 0
        %547 = vmatprep.subr.bf16.mxu0 0
        %548 = vmatpush1.bf16.msra.mxu0 0
        %549 = vmatprep.subr.bf16.mxu0 0
        %550 = vmatpush1.bf16.msra.mxu0 0
        %551 = vmatprep.subr.bf16.mxu0 0
        %552 = vmatpush1.bf16.msra.mxu0 0
        %553 = vmatprep.subr.bf16.mxu0 0
        %554 = vmatpush1.bf16.msra.mxu0 0
        %555 = vmatprep.subr.bf16.mxu0 0
        %556 = vmatpush1.bf16.msra.mxu0 0
        %557 = vmatprep.subr.bf16.mxu0 0
        %558 = vmatpush1.bf16.msra.mxu0 0
        %559 = vmatprep.subr.bf16.mxu0 0
        %560 = vmatpush1.bf16.msra.mxu0 0
        %561 = vmatprep.subr.bf16.mxu0 0
        %562 = vmatpush1.bf16.msra.mxu0 0
        %563 = vmatprep.mubr.bf16.mxu0 0
        %564 = vmatmul.mubr.bf16.gmra.mrb[0].mxu0 %v529
        %v565 = vpop.f32.mrb[0].mxu0
        %v566 = vadd.f32 %v513, %v565
        %v567 = vpop.f32.mrb[0].mxu0
        %v568 = vpop.f32.mrb[0].mxu0
        %v569 = vpop.f32.mrb[0].mxu0
        %570 = vdwg.mxu0
        %v571 = vpack.c.bf16 %v566, %v566
        %v572 = vld [vmem:[%s4] sm:$0xf]
        %v573 = vld [vmem:[%s4 + $0x4] sm:$0xf]
        %v574 = vld [vmem:[%s4 + $0x8] sm:$0xf]
        %v575 = vld [vmem:[%s4 + $0xc] sm:$0xf]
        %v576 = vld [vmem:[%s8] sm:$0x1]
        %v578 = vlaneseq
        %v579 = vshrl.u32 %v578, 7
        %v580 = vsub.s32 0, %v579
        %v581 = vrot.slane %v576, %v580
        %v590 = vunpack.c.l.b16 %v490
        %v591 = vunpack.c.l.b16 %v491
        %v592 = vunpack.c.l.b16 %v492
        %v593 = vunpack.c.l.b16 %v493
        %v594 = vunpack.c.l.b16 %v494
        %v595 = vunpack.c.l.b16 %v495
        %v596 = vunpack.c.l.b16 %v496
        %v597 = vpack.c.b16 %v591, %v590
        %v598 = vpack.c.b16 %v593, %v592
        %v599 = vpack.c.b16 %v595, %v594
        %v600 = vpack.c.b16 %v596, %v596
        %v605 = vunpack.c.l.b16 %v572
        %v606 = vunpack.c.l.b16 %v573
        %v607 = vunpack.c.l.b16 %v574
        %v608 = vunpack.c.l.b16 %v575
        %v609 = vpack.c.b16 %v606, %v605
        %v610 = vpack.c.b16 %v608, %v607
        %v614 = vsel %vm527, %v597, 0
        %v617 = vsel %vm527, %v598, 0
        %v620 = vsel %vm527, %v599, 0
        %v623 = vsel %vm527, %v600, 0
        %625 = vmatprep.subr.bf16.mxu0 0
        %626 = vmatpush1.bf16.msra.mxu0 %v609
        %627 = vmatprep.subr.bf16.mxu0 0
        %628 = vmatpush1.bf16.msra.mxu0 %v610
        %629 = vmatprep.subr.bf16.mxu0 0
        %630 = vmatpush1.bf16.msra.mxu0 0
        %631 = vmatprep.subr.bf16.mxu0 0
        %632 = vmatpush1.bf16.msra.mxu0 0
        %633 = vmatprep.subr.bf16.mxu0 0
        %634 = vmatpush1.bf16.msra.mxu0 0
        %635 = vmatprep.subr.bf16.mxu0 0
        %636 = vmatpush1.bf16.msra.mxu0 0
        %637 = vmatprep.subr.bf16.mxu0 0
        %638 = vmatpush1.bf16.msra.mxu0 0
        %639 = vmatprep.subr.bf16.mxu0 0
        %640 = vmatpush1.bf16.msra.mxu0 0
        %641 = vmatprep.subr.bf16.mxu0 0
        %642 = vmatpush1.bf16.msra.mxu0 0
        %643 = vmatprep.subr.bf16.mxu0 0
        %644 = vmatpush1.bf16.msra.mxu0 0
        %645 = vmatprep.subr.bf16.mxu0 0
        %646 = vmatpush1.bf16.msra.mxu0 0
        %647 = vmatprep.subr.bf16.mxu0 0
        %648 = vmatpush1.bf16.msra.mxu0 0
        %649 = vmatprep.subr.bf16.mxu0 0
        %650 = vmatpush1.bf16.msra.mxu0 0
        %651 = vmatprep.subr.bf16.mxu0 0
        %652 = vmatpush1.bf16.msra.mxu0 0
        %653 = vmatprep.subr.bf16.mxu0 0
        %654 = vmatpush1.bf16.msra.mxu0 0
        %655 = vmatprep.subr.bf16.mxu0 0
        %656 = vmatpush1.bf16.msra.mxu0 0
        %657 = vmatprep.mubr.bf16.mxu0 0
        %658 = vmatmul.mubr.bf16.gmra.mrb[0].mxu0 %v614
        %v659 = vpop.f32.mrb[0].mxu0
        %v660 = vadd.f32 %v581, %v659
        %v661 = vpop.f32.mrb[0].mxu0
        %v662 = vpop.f32.mrb[0].mxu0
        %v663 = vadd.f32 %v581, %v662
        %v664 = vpop.f32.mrb[0].mxu0
        %665 = vmatprep.mubr.bf16.mxu0 0
        %666 = vmatmul.mubr.bf16.gmra.mrb[0].mxu0 %v617
        %v667 = vpop.f32.mrb[0].mxu0
        %v668 = vadd.f32 %v581, %v667
        %v669 = vpop.f32.mrb[0].mxu0
        %v670 = vpop.f32.mrb[0].mxu0
        %v671 = vadd.f32 %v581, %v670
        %v672 = vpop.f32.mrb[0].mxu0
        %673 = vmatprep.mubr.bf16.mxu0 0
        %674 = vmatmul.mubr.bf16.gmra.mrb[0].mxu0 %v620
        %v675 = vpop.f32.mrb[0].mxu0
        %v676 = vadd.f32 %v581, %v675
        %v677 = vpop.f32.mrb[0].mxu0
        %v678 = vpop.f32.mrb[0].mxu0
        %v679 = vadd.f32 %v581, %v678
        %v680 = vpop.f32.mrb[0].mxu0
        %681 = vmatprep.mubr.bf16.mxu0 0
        %682 = vmatmul.mubr.bf16.gmra.mrb[0].mxu0 %v623
        %v683 = vpop.f32.mrb[0].mxu0
        %v684 = vadd.f32 %v581, %v683
        %v685 = vpop.f32.mrb[0].mxu0
        %v686 = vpop.f32.mrb[0].mxu0
        %v687 = vpop.f32.mrb[0].mxu0
        %688 = vdwg.mxu0
        %v689 = vpack.c.bf16 %v663, %v660
        %v690 = vpack.c.bf16 %v671, %v668
        %v691 = vpack.c.bf16 %v679, %v676
        %v692 = vpack.c.bf16 %v684, %v684
        %v693 = vld [vmem:[%s5] sm:$0xf]
        %v694 = vld [vmem:[%s5 + $0x4] sm:$0xf]
        %v695 = vld [vmem:[%s5 + $0x8] sm:$0xf]
        %v696 = vld [vmem:[%s5 + $0xc] sm:$0xf]
        %v697 = vld [vmem:[%s9] sm:$0x1]
        %v699 = vlaneseq
        %v700 = vshrl.u32 %v699, 7
        %v701 = vsub.s32 0, %v700
        %v702 = vrot.slane %v697, %v701
        %v711 = vunpack.c.l.b16 %v497
        %v712 = vunpack.c.l.b16 %v498
        %v713 = vunpack.c.l.b16 %v499
        %v714 = vunpack.c.l.b16 %v500
        %v715 = vunpack.c.l.b16 %v501
        %v716 = vunpack.c.l.b16 %v502
        %v717 = vunpack.c.l.b16 %v503
        %v718 = vpack.c.b16 %v712, %v711
        %v719 = vpack.c.b16 %v714, %v713
        %v720 = vpack.c.b16 %v716, %v715
        %v721 = vpack.c.b16 %v717, %v717
        %v726 = vunpack.c.l.b16 %v693
        %v727 = vunpack.c.l.b16 %v694
        %v728 = vunpack.c.l.b16 %v695
        %v729 = vunpack.c.l.b16 %v696
        %v730 = vpack.c.b16 %v727, %v726
        %v731 = vpack.c.b16 %v729, %v728
        %v735 = vsel %vm527, %v718, 0
        %v738 = vsel %vm527, %v719, 0
        %v741 = vsel %vm527, %v720, 0
        %v744 = vsel %vm527, %v721, 0
        %746 = vmatprep.subr.bf16.mxu0 0
        %747 = vmatpush1.bf16.msra.mxu0 %v730
        %748 = vmatprep.subr.bf16.mxu0 0
        %749 = vmatpush1.bf16.msra.mxu0 %v731
        %750 = vmatprep.subr.bf16.mxu0 0
        %751 = vmatpush1.bf16.msra.mxu0 0
        %752 = vmatprep.subr.bf16.mxu0 0
        %753 = vmatpush1.bf16.msra.mxu0 0
        %754 = vmatprep.subr.bf16.mxu0 0
        %755 = vmatpush1.bf16.msra.mxu0 0
        %756 = vmatprep.subr.bf16.mxu0 0
        %757 = vmatpush1.bf16.msra.mxu0 0
        %758 = vmatprep.subr.bf16.mxu0 0
        %759 = vmatpush1.bf16.msra.mxu0 0
        %760 = vmatprep.subr.bf16.mxu0 0
        %761 = vmatpush1.bf16.msra.mxu0 0
        %762 = vmatprep.subr.bf16.mxu0 0
        %763 = vmatpush1.bf16.msra.mxu0 0
        %764 = vmatprep.subr.bf16.mxu0 0
        %765 = vmatpush1.bf16.msra.mxu0 0
        %766 = vmatprep.subr.bf16.mxu0 0
        %767 = vmatpush1.bf16.msra.mxu0 0
        %768 = vmatprep.subr.bf16.mxu0 0
        %769 = vmatpush1.bf16.msra.mxu0 0
        %770 = vmatprep.subr.bf16.mxu0 0
        %771 = vmatpush1.bf16.msra.mxu0 0
        %772 = vmatprep.subr.bf16.mxu0 0
        %773 = vmatpush1.bf16.msra.mxu0 0
        %774 = vmatprep.subr.bf16.mxu0 0
        %775 = vmatpush1.bf16.msra.mxu0 0
        %776 = vmatprep.subr.bf16.mxu0 0
        %777 = vmatpush1.bf16.msra.mxu0 0
        %778 = vmatprep.mubr.bf16.mxu0 0
        %779 = vmatmul.mubr.bf16.gmra.mrb[0].mxu0 %v735
        %v780 = vpop.f32.mrb[0].mxu0
        %v781 = vadd.f32 %v702, %v780
        %v782 = vpop.f32.mrb[0].mxu0
        %v783 = vpop.f32.mrb[0].mxu0
        %v784 = vadd.f32 %v702, %v783
        %v785 = vpop.f32.mrb[0].mxu0
        %786 = vmatprep.mubr.bf16.mxu0 0
        %787 = vmatmul.mubr.bf16.gmra.mrb[0].mxu0 %v738
        %v788 = vpop.f32.mrb[0].mxu0
        %v789 = vadd.f32 %v702, %v788
        %v790 = vpop.f32.mrb[0].mxu0
        %v791 = vpop.f32.mrb[0].mxu0
        %v792 = vadd.f32 %v702, %v791
        %v793 = vpop.f32.mrb[0].mxu0
        %794 = vmatprep.mubr.bf16.mxu0 0
        %795 = vmatmul.mubr.bf16.gmra.mrb[0].mxu0 %v741
        %v796 = vpop.f32.mrb[0].mxu0
        %v797 = vadd.f32 %v702, %v796
        %v798 = vpop.f32.mrb[0].mxu0
        %v799 = vpop.f32.mrb[0].mxu0
        %v800 = vadd.f32 %v702, %v799
        %v801 = vpop.f32.mrb[0].mxu0
        %802 = vmatprep.mubr.bf16.mxu0 0
        %803 = vmatmul.mubr.bf16.gmra.mrb[0].mxu0 %v744
        %v804 = vpop.f32.mrb[0].mxu0
        %v805 = vadd.f32 %v702, %v804
        %v806 = vpop.f32.mrb[0].mxu0
        %v807 = vpop.f32.mrb[0].mxu0
        %v808 = vpop.f32.mrb[0].mxu0
        %809 = vdwg.mxu0
        %v810 = vpack.c.bf16 %v784, %v781
        %v811 = vpack.c.bf16 %v792, %v789
        %v812 = vpack.c.bf16 %v800, %v797
        %v813 = vpack.c.bf16 %v805, %v805
        %vm814 = vcmask 64512
        %v816 = vsel %vm814, %v571, 0
        %v819 = vsel %vm814, %v689, 0
        %v822 = vsel %vm814, %v690, 0
        %v825 = vsel %vm814, %v691, 0
        %v828 = vsel %vm814, %v692, 0
        %830 = vmatprep.subr.bf16.mxu0 0
        %831 = vmatpush1.bf16.xpose.msra.mxu0 %v819
        %832 = vmatprep.subr.bf16.mxu0 0
        %833 = vmatpush1.bf16.xpose.msra.mxu0 %v822
        %834 = vmatprep.subr.bf16.mxu0 0
        %835 = vmatpush1.bf16.xpose.msra.mxu0 %v825
        %836 = vmatprep.subr.bf16.mxu0 0
        %837 = vmatpush1.bf16.xpose.msra.mxu0 %v828
        %838 = vmatprep.subr.bf16.mxu0 0
        %839 = vmatpush1.bf16.xpose.msra.mxu0 0
        %840 = vmatprep.subr.bf16.mxu0 0
        %841 = vmatpush1.bf16.xpose.msra.mxu0 0
        %842 = vmatprep.subr.bf16.mxu0 0
        %843 = vmatpush1.bf16.xpose.msra.mxu0 0
        %844 = vmatprep.subr.bf16.mxu0 0
        %845 = vmatpush1.bf16.xpose.msra.mxu0 0
        %846 = vmatprep.subr.bf16.mxu0 0
        %847 = vmatpush1.bf16.xpose.msra.mxu0 0
        %848 = vmatprep.subr.bf16.mxu0 0
        %849 = vmatpush1.bf16.xpose.msra.mxu0 0
        %850 = vmatprep.subr.bf16.mxu0 0
        %851 = vmatpush1.bf16.xpose.msra.mxu0 0
        %852 = vmatprep.subr.bf16.mxu0 0
        %853 = vmatpush1.bf16.xpose.msra.mxu0 0
        %854 = vmatprep.subr.bf16.mxu0 0
        %855 = vmatpush1.bf16.xpose.msra.mxu0 0
        %856 = vmatprep.subr.bf16.mxu0 0
        %857 = vmatpush1.bf16.xpose.msra.mxu0 0
        %858 = vmatprep.subr.bf16.mxu0 0
        %859 = vmatpush1.bf16.xpose.msra.mxu0 0
        %860 = vmatprep.subr.bf16.mxu0 0
        %861 = vmatpush1.bf16.xpose.msra.mxu0 0
        %862 = vmatprep.mubr.bf16.mxu0 0
        %863 = vmatmul.mubr.bf16.gmra.mrb[0].mxu0 %v816
        %v864 = vpop.f32.mrb[0].mxu0
        %v865 = vadd.f32 0.0, %v864
        %v866 = vpop.f32.mrb[0].mxu0
        %v867 = vpop.f32.mrb[0].mxu0
        %v868 = vpop.f32.mrb[0].mxu0
        %869 = vdwg.mxu0
        %vm870 = vcmask 400384
        %v871 = vsel %vm870, %v865, -inf
        %872 = vmax.xlane.f32.xlu0 %v871
        %v873 = vpop.xlane.xlu0 %872
        %v874 = vsub.f32 %v865, %v873
        %v875 = vmul.f32 %v874, 1.442695
        %v876 = vpow.pop %v875
        %v877 = vsel %vm870, %v876, 0.0
        %878 = vadd.xlane.f32.xlu0 %v877
        %v879 = vpop.xlane.xlu0 %878
        %v880 = vrcp.pop %v879
        %v881 = vmul.f32 %v876, %v880
        %882 = vst.msk [vmem:[%s469] sm:$0xff] %vm870, %v881
        %v883 = vpack.c.bf16 %v881, %v881
        %v885 = vsel %vm870, %v883, 0
        %vm887 = vcmask 1040384
        %v888 = vsel 0, 4294967295, 65535
        %v889 = vsel %vm887, %v888, 0
        %v891 = vand.u32 %v813, %v889
        %893 = vmatprep.subr.bf16.mxu0 0
        %894 = vmatpush1.bf16.msra.mxu0 %v810
        %895 = vmatprep.subr.bf16.mxu0 0
        %896 = vmatpush1.bf16.msra.mxu0 %v811
        %897 = vmatprep.subr.bf16.mxu0 0
        %898 = vmatpush1.bf16.msra.mxu0 %v812
        %899 = vmatprep.subr.bf16.mxu0 0
        %900 = vmatpush1.bf16.msra.mxu0 %v891
        %901 = vmatprep.subr.bf16.mxu0 0
        %902 = vmatpush1.bf16.msra.mxu0 0
        %903 = vmatprep.subr.bf16.mxu0 0
        %904 = vmatpush1.bf16.msra.mxu0 0
        %905 = vmatprep.subr.bf16.mxu0 0
        %906 = vmatpush1.bf16.msra.mxu0 0
        %907 = vmatprep.subr.bf16.mxu0 0
        %908 = vmatpush1.bf16.msra.mxu0 0
        %909 = vmatprep.subr.bf16.mxu0 0
        %910 = vmatpush1.bf16.msra.mxu0 0
        %911 = vmatprep.subr.bf16.mxu0 0
        %912 = vmatpush1.bf16.msra.mxu0 0
        %913 = vmatprep.subr.bf16.mxu0 0
        %914 = vmatpush1.bf16.msra.mxu0 0
        %915 = vmatprep.subr.bf16.mxu0 0
        %916 = vmatpush1.bf16.msra.mxu0 0
        %917 = vmatprep.subr.bf16.mxu0 0
        %918 = vmatpush1.bf16.msra.mxu0 0
        %919 = vmatprep.subr.bf16.mxu0 0
        %920 = vmatpush1.bf16.msra.mxu0 0
        %921 = vmatprep.subr.bf16.mxu0 0
        %922 = vmatpush1.bf16.msra.mxu0 0
        %923 = vmatprep.subr.bf16.mxu0 0
        %924 = vmatpush1.bf16.msra.mxu0 0
        %925 = vmatprep.mubr.bf16.mxu0 0
        %926 = vmatmul.mubr.bf16.gmra.mrb[0].mxu0 %v885
        %v927 = vpop.f32.mrb[0].mxu0
        %v928 = vadd.f32 0.0, %v927
        %v929 = vpop.f32.mrb[0].mxu0
        %v930 = vpop.f32.mrb[0].mxu0
        %v931 = vpop.f32.mrb[0].mxu0
        %932 = vdwg.mxu0
        %v933 = vpack.c.bf16 %v928, %v928
        %v934 = vld [vmem:[%s6] sm:$0xf]
        %s935 = scalar_lea.vmem %s3, 16
        %v936 = vld [vmem:[%s935] sm:$0xf]
        %v937 = vld [vmem:[%s935 + $0x4] sm:$0xf]
        %v938 = vld [vmem:[%s935 + $0x8] sm:$0xf]
        %v939 = vld [vmem:[%s935 + $0xc] sm:$0xf]
        %s940 = scalar_lea.vmem %s7, 1
        %v941 = vld [vmem:[%s940] sm:$0x1]
        %v943 = vlaneseq
        %v944 = vshrl.u32 %v943, 7
        %v945 = vsub.s32 0, %v944
        %v946 = vrot.slane %v941, %v945
        %v952 = vunpack.c.l.b16 %v936
        %v953 = vunpack.c.l.b16 %v937
        %v954 = vunpack.c.l.b16 %v938
        %v955 = vunpack.c.l.b16 %v939
        %v956 = vpack.c.b16 %v953, %v952
        %v957 = vpack.c.b16 %v955, %v954
        %960 = vmatprep.subr.bf16.mxu0 0
        %961 = vmatpush1.bf16.msra.mxu0 %v956
        %962 = vmatprep.subr.bf16.mxu0 0
        %963 = vmatpush1.bf16.msra.mxu0 %v957
        %964 = vmatprep.subr.bf16.mxu0 0
        %965 = vmatpush1.bf16.msra.mxu0 0
        %966 = vmatprep.subr.bf16.mxu0 0
        %967 = vmatpush1.bf16.msra.mxu0 0
        %968 = vmatprep.subr.bf16.mxu0 0
        %969 = vmatpush1.bf16.msra.mxu0 0
        %970 = vmatprep.subr.bf16.mxu0 0
        %971 = vmatpush1.bf16.msra.mxu0 0
        %972 = vmatprep.subr.bf16.mxu0 0
        %973 = vmatpush1.bf16.msra.mxu0 0
        %974 = vmatprep.subr.bf16.mxu0 0
        %975 = vmatpush1.bf16.msra.mxu0 0
        %976 = vmatprep.subr.bf16.mxu0 0
        %977 = vmatpush1.bf16.msra.mxu0 0
        %978 = vmatprep.subr.bf16.mxu0 0
        %979 = vmatpush1.bf16.msra.mxu0 0
        %980 = vmatprep.subr.bf16.mxu0 0
        %981 = vmatpush1.bf16.msra.mxu0 0
        %982 = vmatprep.subr.bf16.mxu0 0
        %983 = vmatpush1.bf16.msra.mxu0 0
        %984 = vmatprep.subr.bf16.mxu0 0
        %985 = vmatpush1.bf16.msra.mxu0 0
        %986 = vmatprep.subr.bf16.mxu0 0
        %987 = vmatpush1.bf16.msra.mxu0 0
        %988 = vmatprep.subr.bf16.mxu0 0
        %989 = vmatpush1.bf16.msra.mxu0 0
        %990 = vmatprep.subr.bf16.mxu0 0
        %991 = vmatpush1.bf16.msra.mxu0 0
        %992 = vmatprep.mubr.bf16.mxu0 0
        %993 = vmatmul.mubr.bf16.gmra.mrb[0].mxu0 %v529
        %v994 = vpop.f32.mrb[0].mxu0
        %v995 = vadd.f32 %v946, %v994
        %v996 = vpop.f32.mrb[0].mxu0
        %v997 = vpop.f32.mrb[0].mxu0
        %v998 = vpop.f32.mrb[0].mxu0
        %999 = vdwg.mxu0
        %v1000 = vpack.c.bf16 %v995, %v995
        %s1001 = scalar_lea.vmem %s4, 16
        %v1002 = vld [vmem:[%s1001] sm:$0xf]
        %v1003 = vld [vmem:[%s1001 + $0x4] sm:$0xf]
        %v1004 = vld [vmem:[%s1001 + $0x8] sm:$0xf]
        %v1005 = vld [vmem:[%s1001 + $0xc] sm:$0xf]
        %s1006 = scalar_lea.vmem %s8, 1
        %v1007 = vld [vmem:[%s1006] sm:$0x1]
        %v1009 = vlaneseq
        %v1010 = vshrl.u32 %v1009, 7
        %v1011 = vsub.s32 0, %v1010
        %v1012 = vrot.slane %v1007, %v1011
        %v1018 = vunpack.c.l.b16 %v1002
        %v1019 = vunpack.c.l.b16 %v1003
        %v1020 = vunpack.c.l.b16 %v1004
        %v1021 = vunpack.c.l.b16 %v1005
        %v1022 = vpack.c.b16 %v1019, %v1018
        %v1023 = vpack.c.b16 %v1021, %v1020
        %1026 = vmatprep.subr.bf16.mxu0 0
        %1027 = vmatpush1.bf16.msra.mxu0 %v1022
        %1028 = vmatprep.subr.bf16.mxu0 0
        %1029 = vmatpush1.bf16.msra.mxu0 %v1023
        %1030 = vmatprep.subr.bf16.mxu0 0
        %1031 = vmatpush1.bf16.msra.mxu0 0
        %1032 = vmatprep.subr.bf16.mxu0 0
        %1033 = vmatpush1.bf16.msra.mxu0 0
        %1034 = vmatprep.subr.bf16.mxu0 0
        %1035 = vmatpush1.bf16.msra.mxu0 0
        %1036 = vmatprep.subr.bf16.mxu0 0
        %1037 = vmatpush1.bf16.msra.mxu0 0
        %1038 = vmatprep.subr.bf16.mxu0 0
        %1039 = vmatpush1.bf16.msra.mxu0 0
        %1040 = vmatprep.subr.bf16.mxu0 0
        %1041 = vmatpush1.bf16.msra.mxu0 0
        %1042 = vmatprep.subr.bf16.mxu0 0
        %1043 = vmatpush1.bf16.msra.mxu0 0
        %1044 = vmatprep.subr.bf16.mxu0 0
        %1045 = vmatpush1.bf16.msra.mxu0 0
        %1046 = vmatprep.subr.bf16.mxu0 0
        %1047 = vmatpush1.bf16.msra.mxu0 0
        %1048 = vmatprep.subr.bf16.mxu0 0
        %1049 = vmatpush1.bf16.msra.mxu0 0
        %1050 = vmatprep.subr.bf16.mxu0 0
        %1051 = vmatpush1.bf16.msra.mxu0 0
        %1052 = vmatprep.subr.bf16.mxu0 0
        %1053 = vmatpush1.bf16.msra.mxu0 0
        %1054 = vmatprep.subr.bf16.mxu0 0
        %1055 = vmatpush1.bf16.msra.mxu0 0
        %1056 = vmatprep.subr.bf16.mxu0 0
        %1057 = vmatpush1.bf16.msra.mxu0 0
        %1058 = vmatprep.mubr.bf16.mxu0 0
        %1059 = vmatmul.mubr.bf16.gmra.mrb[0].mxu0 %v614
        %v1060 = vpop.f32.mrb[0].mxu0
        %v1061 = vadd.f32 %v1012, %v1060
        %v1062 = vpop.f32.mrb[0].mxu0
        %v1063 = vpop.f32.mrb[0].mxu0
        %v1064 = vadd.f32 %v1012, %v1063
        %v1065 = vpop.f32.mrb[0].mxu0
        %1066 = vmatprep.mubr.bf16.mxu0 0
        %1067 = vmatmul.mubr.bf16.gmra.mrb[0].mxu0 %v617
        %v1068 = vpop.f32.mrb[0].mxu0
        %v1069 = vadd.f32 %v1012, %v1068
        %v1070 = vpop.f32.mrb[0].mxu0
        %v1071 = vpop.f32.mrb[0].mxu0
        %v1072 = vadd.f32 %v1012, %v1071
        %v1073 = vpop.f32.mrb[0].mxu0
        %1074 = vmatprep.mubr.bf16.mxu0 0
        %1075 = vmatmul.mubr.bf16.gmra.mrb[0].mxu0 %v620
        %v1076 = vpop.f32.mrb[0].mxu0
        %v1077 = vadd.f32 %v1012, %v1076
        %v1078 = vpop.f32.mrb[0].mxu0
        %v1079 = vpop.f32.mrb[0].mxu0
        %v1080 = vadd.f32 %v1012, %v1079
        %v1081 = vpop.f32.mrb[0].mxu0
        %1082 = vmatprep.mubr.bf16.mxu0 0
        %1083 = vmatmul.mubr.bf16.gmra.mrb[0].mxu0 %v623
        %v1084 = vpop.f32.mrb[0].mxu0
        %v1085 = vadd.f32 %v1012, %v1084
        %v1086 = vpop.f32.mrb[0].mxu0
        %v1087 = vpop.f32.mrb[0].mxu0
        %v1088 = vpop.f32.mrb[0].mxu0
        %1089 = vdwg.mxu0
        %v1090 = vpack.c.bf16 %v1064, %v1061
        %v1091 = vpack.c.bf16 %v1072, %v1069
        %v1092 = vpack.c.bf16 %v1080, %v1077
        %v1093 = vpack.c.bf16 %v1085, %v1085
        %s1094 = scalar_lea.vmem %s5, 16
        %v1095 = vld [vmem:[%s1094] sm:$0xf]
        %v1096 = vld [vmem:[%s1094 + $0x4] sm:$0xf]
        %v1097 = vld [vmem:[%s1094 + $0x8] sm:$0xf]
        %v1098 = vld [vmem:[%s1094 + $0xc] sm:$0xf]
        %s1099 = scalar_lea.vmem %s9, 1
        %v1100 = vld [vmem:[%s1099] sm:$0x1]
        %v1102 = vlaneseq
        %v1103 = vshrl.u32 %v1102, 7
        %v1104 = vsub.s32 0, %v1103
        %v1105 = vrot.slane %v1100, %v1104
        %v1111 = vunpack.c.l.b16 %v1095
        %v1112 = vunpack.c.l.b16 %v1096
        %v1113 = vunpack.c.l.b16 %v1097
        %v1114 = vunpack.c.l.b16 %v1098
        %v1115 = vpack.c.b16 %v1112, %v1111
        %v1116 = vpack.c.b16 %v1114, %v1113
        %1119 = vmatprep.subr.bf16.mxu0 0
        %1120 = vmatpush1.bf16.msra.mxu0 %v1115
        %1121 = vmatprep.subr.bf16.mxu0 0
        %1122 = vmatpush1.bf16.msra.mxu0 %v1116
        %1123 = vmatprep.subr.bf16.mxu0 0
        %1124 = vmatpush1.bf16.msra.mxu0 0
        %1125 = vmatprep.subr.bf16.mxu0 0
        %1126 = vmatpush1.bf16.msra.mxu0 0
        %1127 = vmatprep.subr.bf16.mxu0 0
        %1128 = vmatpush1.bf16.msra.mxu0 0
        %1129 = vmatprep.subr.bf16.mxu0 0
        %1130 = vmatpush1.bf16.msra.mxu0 0
        %1131 = vmatprep.subr.bf16.mxu0 0
        %1132 = vmatpush1.bf16.msra.mxu0 0
        %1133 = vmatprep.subr.bf16.mxu0 0
        %1134 = vmatpush1.bf16.msra.mxu0 0
        %1135 = vmatprep.subr.bf16.mxu0 0
        %1136 = vmatpush1.bf16.msra.mxu0 0
        %1137 = vmatprep.subr.bf16.mxu0 0
        %1138 = vmatpush1.bf16.msra.mxu0 0
        %1139 = vmatprep.subr.bf16.mxu0 0
        %1140 = vmatpush1.bf16.msra.mxu0 0
        %1141 = vmatprep.subr.bf16.mxu0 0
        %1142 = vmatpush1.bf16.msra.mxu0 0
        %1143 = vmatprep.subr.bf16.mxu0 0
        %1144 = vmatpush1.bf16.msra.mxu0 0
        %1145 = vmatprep.subr.bf16.mxu0 0
        %1146 = vmatpush1.bf16.msra.mxu0 0
        %1147 = vmatprep.subr.bf16.mxu0 0
        %1148 = vmatpush1.bf16.msra.mxu0 0
        %1149 = vmatprep.subr.bf16.mxu0 0
        %1150 = vmatpush1.bf16.msra.mxu0 0
        %1151 = vmatprep.mubr.bf16.mxu0 0
        %1152 = vmatmul.mubr.bf16.gmra.mrb[0].mxu0 %v735
        %v1153 = vpop.f32.mrb[0].mxu0
        %v1154 = vadd.f32 %v1105, %v1153
        %v1155 = vpop.f32.mrb[0].mxu0
        %v1156 = vpop.f32.mrb[0].mxu0
        %v1157 = vadd.f32 %v1105, %v1156
        %v1158 = vpop.f32.mrb[0].mxu0
        %1159 = vmatprep.mubr.bf16.mxu0 0
        %1160 = vmatmul.mubr.bf16.gmra.mrb[0].mxu0 %v738
        %v1161 = vpop.f32.mrb[0].mxu0
        %v1162 = vadd.f32 %v1105, %v1161
        %v1163 = vpop.f32.mrb[0].mxu0
        %v1164 = vpop.f32.mrb[0].mxu0
        %v1165 = vadd.f32 %v1105, %v1164
        %v1166 = vpop.f32.mrb[0].mxu0
        %1167 = vmatprep.mubr.bf16.mxu0 0
        %1168 = vmatmul.mubr.bf16.gmra.mrb[0].mxu0 %v741
        %v1169 = vpop.f32.mrb[0].mxu0
        %v1170 = vadd.f32 %v1105, %v1169
        %v1171 = vpop.f32.mrb[0].mxu0
        %v1172 = vpop.f32.mrb[0].mxu0
        %v1173 = vadd.f32 %v1105, %v1172
        %v1174 = vpop.f32.mrb[0].mxu0
        %1175 = vmatprep.mubr.bf16.mxu0 0
        %1176 = vmatmul.mubr.bf16.gmra.mrb[0].mxu0 %v744
        %v1177 = vpop.f32.mrb[0].mxu0
        %v1178 = vadd.f32 %v1105, %v1177
        %v1179 = vpop.f32.mrb[0].mxu0
        %v1180 = vpop.f32.mrb[0].mxu0
        %v1181 = vpop.f32.mrb[0].mxu0
        %1182 = vdwg.mxu0
        %v1183 = vpack.c.bf16 %v1157, %v1154
        %v1184 = vpack.c.bf16 %v1165, %v1162
        %v1185 = vpack.c.bf16 %v1173, %v1170
        %v1186 = vpack.c.bf16 %v1178, %v1178
        %v1188 = vsel %vm814, %v1000, 0
        %v1191 = vsel %vm814, %v1090, 0
        %v1194 = vsel %vm814, %v1091, 0
        %v1197 = vsel %vm814, %v1092, 0
        %v1200 = vsel %vm814, %v1093, 0
        %1202 = vmatprep.subr.bf16.mxu0 0
        %1203 = vmatpush1.bf16.xpose.msra.mxu0 %v1191
        %1204 = vmatprep.subr.bf16.mxu0 0
        %1205 = vmatpush1.bf16.xpose.msra.mxu0 %v1194
        %1206 = vmatprep.subr.bf16.mxu0 0
        %1207 = vmatpush1.bf16.xpose.msra.mxu0 %v1197
        %1208 = vmatprep.subr.bf16.mxu0 0
        %1209 = vmatpush1.bf16.xpose.msra.mxu0 %v1200
        %1210 = vmatprep.subr.bf16.mxu0 0
        %1211 = vmatpush1.bf16.xpose.msra.mxu0 0
        %1212 = vmatprep.subr.bf16.mxu0 0
        %1213 = vmatpush1.bf16.xpose.msra.mxu0 0
        %1214 = vmatprep.subr.bf16.mxu0 0
        %1215 = vmatpush1.bf16.xpose.msra.mxu0 0
        %1216 = vmatprep.subr.bf16.mxu0 0
        %1217 = vmatpush1.bf16.xpose.msra.mxu0 0
        %1218 = vmatprep.subr.bf16.mxu0 0
        %1219 = vmatpush1.bf16.xpose.msra.mxu0 0
        %1220 = vmatprep.subr.bf16.mxu0 0
        %1221 = vmatpush1.bf16.xpose.msra.mxu0 0
        %1222 = vmatprep.subr.bf16.mxu0 0
        %1223 = vmatpush1.bf16.xpose.msra.mxu0 0
        %1224 = vmatprep.subr.bf16.mxu0 0
        %1225 = vmatpush1.bf16.xpose.msra.mxu0 0
        %1226 = vmatprep.subr.bf16.mxu0 0
        %1227 = vmatpush1.bf16.xpose.msra.mxu0 0
        %1228 = vmatprep.subr.bf16.mxu0 0
        %1229 = vmatpush1.bf16.xpose.msra.mxu0 0
        %1230 = vmatprep.subr.bf16.mxu0 0
        %1231 = vmatpush1.bf16.xpose.msra.mxu0 0
        %1232 = vmatprep.subr.bf16.mxu0 0
        %1233 = vmatpush1.bf16.xpose.msra.mxu0 0
        %1234 = vmatprep.mubr.bf16.mxu0 0
        %1235 = vmatmul.mubr.bf16.gmra.mrb[0].mxu0 %v1188
        %v1236 = vpop.f32.mrb[0].mxu0
        %v1237 = vadd.f32 0.0, %v1236
        %v1238 = vpop.f32.mrb[0].mxu0
        %v1239 = vpop.f32.mrb[0].mxu0
        %v1240 = vpop.f32.mrb[0].mxu0
        %1241 = vdwg.mxu0
        %v1242 = vsel %vm870, %v1237, -inf
        %1243 = vmax.xlane.f32.xlu0 %v1242
        %v1244 = vpop.xlane.xlu0 %1243
        %v1245 = vsub.f32 %v1237, %v1244
        %v1246 = vmul.f32 %v1245, 1.442695
        %v1247 = vpow.pop %v1246
        %v1248 = vsel %vm870, %v1247, 0.0
        %1249 = vadd.xlane.f32.xlu0 %v1248
        %v1250 = vpop.xlane.xlu0 %1249
        %v1251 = vrcp.pop %v1250
        %v1252 = vmul.f32 %v1247, %v1251
        %s1253 = scalar_lea.vmem %s469, 8 [#allocation4]
        %1254 = vst.msk [vmem:[%s1253] sm:$0xff] %vm870, %v1252
        %v1255 = vpack.c.bf16 %v1252, %v1252
        %v1257 = vsel %vm870, %v1255, 0
        %v1260 = vand.u32 %v1186, %v889
        %1262 = vmatprep.subr.bf16.mxu0 0
        %1263 = vmatpush1.bf16.msra.mxu0 %v1183
        %1264 = vmatprep.subr.bf16.mxu0 0
        %1265 = vmatpush1.bf16.msra.mxu0 %v1184
        %1266 = vmatprep.subr.bf16.mxu0 0
        %1267 = vmatpush1.bf16.msra.mxu0 %v1185
        %1268 = vmatprep.subr.bf16.mxu0 0
        %1269 = vmatpush1.bf16.msra.mxu0 %v1260
        %1270 = vmatprep.subr.bf16.mxu0 0
        %1271 = vmatpush1.bf16.msra.mxu0 0
        %1272 = vmatprep.subr.bf16.mxu0 0
        %1273 = vmatpush1.bf16.msra.mxu0 0
        %1274 = vmatprep.subr.bf16.mxu0 0
        %1275 = vmatpush1.bf16.msra.mxu0 0
        %1276 = vmatprep.subr.bf16.mxu0 0
        %1277 = vmatpush1.bf16.msra.mxu0 0
        %1278 = vmatprep.subr.bf16.mxu0 0
        %1279 = vmatpush1.bf16.msra.mxu0 0
        %1280 = vmatprep.subr.bf16.mxu0 0
        %1281 = vmatpush1.bf16.msra.mxu0 0
        %1282 = vmatprep.subr.bf16.mxu0 0
        %1283 = vmatpush1.bf16.msra.mxu0 0
        %1284 = vmatprep.subr.bf16.mxu0 0
        %1285 = vmatpush1.bf16.msra.mxu0 0
        %1286 = vmatprep.subr.bf16.mxu0 0
        %1287 = vmatpush1.bf16.msra.mxu0 0
        %1288 = vmatprep.subr.bf16.mxu0 0
        %1289 = vmatpush1.bf16.msra.mxu0 0
        %1290 = vmatprep.subr.bf16.mxu0 0
        %1291 = vmatpush1.bf16.msra.mxu0 0
        %1292 = vmatprep.subr.bf16.mxu0 0
        %1293 = vmatpush1.bf16.msra.mxu0 0
        %1294 = vmatprep.mubr.bf16.mxu0 0
        %1295 = vmatmul.mubr.bf16.gmra.mrb[0].mxu0 %v1257
        %v1296 = vpop.f32.mrb[0].mxu0
        %v1297 = vadd.f32 0.0, %v1296
        %v1298 = vpop.f32.mrb[0].mxu0
        %v1299 = vpop.f32.mrb[0].mxu0
        %v1300 = vpop.f32.mrb[0].mxu0
        %1301 = vdwg.mxu0
        %v1302 = vpack.c.bf16 %v1297, %v1297
        %s1303 = scalar_lea.vmem %s6, 4
        %v1304 = vld [vmem:[%s1303] sm:$0xf]
        %v1306 = vsel %vm814, %v1302, 0
        %vm1308 = vcmask 1043456
        %v1310 = vsel %vm1308, %v1304, 0
        %1312 = vmatprep.subr.bf16.mxu0 0
        %1313 = vmatpush1.bf16.msra.mxu0 %v1310
        %1314 = vmatprep.subr.bf16.mxu0 0
        %1315 = vmatpush1.bf16.msra.mxu0 0
        %1316 = vmatprep.subr.bf16.mxu0 0
        %1317 = vmatpush1.bf16.msra.mxu0 0
        %1318 = vmatprep.subr.bf16.mxu0 0
        %1319 = vmatpush1.bf16.msra.mxu0 0
        %1320 = vmatprep.subr.bf16.mxu0 0
        %1321 = vmatpush1.bf16.msra.mxu0 0
        %1322 = vmatprep.subr.bf16.mxu0 0
        %1323 = vmatpush1.bf16.msra.mxu0 0
        %1324 = vmatprep.subr.bf16.mxu0 0
        %1325 = vmatpush1.bf16.msra.mxu0 0
        %1326 = vmatprep.subr.bf16.mxu0 0
        %1327 = vmatpush1.bf16.msra.mxu0 0
        %1328 = vmatprep.subr.bf16.mxu0 0
        %1329 = vmatpush1.bf16.msra.mxu0 0
        %1330 = vmatprep.subr.bf16.mxu0 0
        %1331 = vmatpush1.bf16.msra.mxu0 0
        %1332 = vmatprep.subr.bf16.mxu0 0
        %1333 = vmatpush1.bf16.msra.mxu0 0
        %1334 = vmatprep.subr.bf16.mxu0 0
        %1335 = vmatpush1.bf16.msra.mxu0 0
        %1336 = vmatprep.subr.bf16.mxu0 0
        %1337 = vmatpush1.bf16.msra.mxu0 0
        %1338 = vmatprep.subr.bf16.mxu0 0
        %1339 = vmatpush1.bf16.msra.mxu0 0
        %1340 = vmatprep.subr.bf16.mxu0 0
        %1341 = vmatpush1.bf16.msra.mxu0 0
        %1342 = vmatprep.subr.bf16.mxu0 0
        %1343 = vmatpush1.bf16.msra.mxu0 0
        %1344 = vmatprep.mubr.bf16.mxu0 0
        %1345 = vmatmul.mubr.bf16.gmra.mrb[0].mxu0 %v1306
        %v1346 = vpop.f32.mrb[0].mxu0
        %v1347 = vadd.f32 0.0, %v1346
        %v1348 = vpop.f32.mrb[0].mxu0
        %v1349 = vpop.f32.mrb[0].mxu0
        %v1350 = vpop.f32.mrb[0].mxu0
        %1351 = vdwg.mxu0
        %v1353 = vsel %vm814, %v933, 0
        %v1356 = vsel %vm1308, %v934, 0
        %1358 = vmatprep.subr.bf16.mxu0 0
        %1359 = vmatpush1.bf16.msra.mxu0 %v1356
        %1360 = vmatprep.subr.bf16.mxu0 0
        %1361 = vmatpush1.bf16.msra.mxu0 0
        %1362 = vmatprep.subr.bf16.mxu0 0
        %1363 = vmatpush1.bf16.msra.mxu0 0
        %1364 = vmatprep.subr.bf16.mxu0 0
        %1365 = vmatpush1.bf16.msra.mxu0 0
        %1366 = vmatprep.subr.bf16.mxu0 0
        %1367 = vmatpush1.bf16.msra.mxu0 0
        %1368 = vmatprep.subr.bf16.mxu0 0
        %1369 = vmatpush1.bf16.msra.mxu0 0
        %1370 = vmatprep.subr.bf16.mxu0 0
        %1371 = vmatpush1.bf16.msra.mxu0 0
        %1372 = vmatprep.subr.bf16.mxu0 0
        %1373 = vmatpush1.bf16.msra.mxu0 0
        %1374 = vmatprep.subr.bf16.mxu0 0
        %1375 = vmatpush1.bf16.msra.mxu0 0
        %1376 = vmatprep.subr.bf16.mxu0 0
        %1377 = vmatpush1.bf16.msra.mxu0 0
        %1378 = vmatprep.subr.bf16.mxu0 0
        %1379 = vmatpush1.bf16.msra.mxu0 0
        %1380 = vmatprep.subr.bf16.mxu0 0
        %1381 = vmatpush1.bf16.msra.mxu0 0
        %1382 = vmatprep.subr.bf16.mxu0 0
        %1383 = vmatpush1.bf16.msra.mxu0 0
        %1384 = vmatprep.subr.bf16.mxu0 0
        %1385 = vmatpush1.bf16.msra.mxu0 0
        %1386 = vmatprep.subr.bf16.mxu0 0
        %1387 = vmatpush1.bf16.msra.mxu0 0
        %1388 = vmatprep.subr.bf16.mxu0 0
        %1389 = vmatpush1.bf16.msra.mxu0 0
        %1390 = vmatprep.mubr.bf16.mxu0 0
        %1391 = vmatmul.mubr.bf16.gmra.mrb[0].mxu0 %v1353
        %v1392 = vpop.f32.mrb[0].mxu0
        %v1393 = vadd.f32 %v1347, %v1392
        %v1394 = vpop.f32.mrb[0].mxu0
        %v1395 = vpop.f32.mrb[0].mxu0
        %v1396 = vpop.f32.mrb[0].mxu0
        %1397 = vdwg.mxu0
        %s1398 = scalar_lea.vmem %s3, 32
        %v1399 = vld [vmem:[%s1398] sm:$0xf]
        %v1400 = vld [vmem:[%s1398 + $0x4] sm:$0xf]
        %v1401 = vld [vmem:[%s1398 + $0x8] sm:$0xf]
        %v1402 = vld [vmem:[%s1398 + $0xc] sm:$0xf]
        %s1403 = scalar_lea.vmem %s7, 2
        %v1404 = vld [vmem:[%s1403] sm:$0x1]
        %v1406 = vlaneseq
        %v1407 = vshrl.u32 %v1406, 7
        %v1408 = vsub.s32 0, %v1407
        %v1409 = vrot.slane %v1404, %v1408
        %v1415 = vunpack.c.l.b16 %v1399
        %v1416 = vunpack.c.l.b16 %v1400
        %v1417 = vunpack.c.l.b16 %v1401
        %v1418 = vunpack.c.l.b16 %v1402
        %v1419 = vpack.c.b16 %v1416, %v1415
        %v1420 = vpack.c.b16 %v1418, %v1417
        %1423 = vmatprep.subr.bf16.mxu0 0
        %1424 = vmatpush1.bf16.msra.mxu0 %v1419
        %1425 = vmatprep.subr.bf16.mxu0 0
        %1426 = vmatpush1.bf16.msra.mxu0 %v1420
        %1427 = vmatprep.subr.bf16.mxu0 0
        %1428 = vmatpush1.bf16.msra.mxu0 0
        %1429 = vmatprep.subr.bf16.mxu0 0
        %1430 = vmatpush1.bf16.msra.mxu0 0
        %1431 = vmatprep.subr.bf16.mxu0 0
        %1432 = vmatpush1.bf16.msra.mxu0 0
        %1433 = vmatprep.subr.bf16.mxu0 0
        %1434 = vmatpush1.bf16.msra.mxu0 0
        %1435 = vmatprep.subr.bf16.mxu0 0
        %1436 = vmatpush1.bf16.msra.mxu0 0
        %1437 = vmatprep.subr.bf16.mxu0 0
        %1438 = vmatpush1.bf16.msra.mxu0 0
        %1439 = vmatprep.subr.bf16.mxu0 0
        %1440 = vmatpush1.bf16.msra.mxu0 0
        %1441 = vmatprep.subr.bf16.mxu0 0
        %1442 = vmatpush1.bf16.msra.mxu0 0
        %1443 = vmatprep.subr.bf16.mxu0 0
        %1444 = vmatpush1.bf16.msra.mxu0 0
        %1445 = vmatprep.subr.bf16.mxu0 0
        %1446 = vmatpush1.bf16.msra.mxu0 0
        %1447 = vmatprep.subr.bf16.mxu0 0
        %1448 = vmatpush1.bf16.msra.mxu0 0
        %1449 = vmatprep.subr.bf16.mxu0 0
        %1450 = vmatpush1.bf16.msra.mxu0 0
        %1451 = vmatprep.subr.bf16.mxu0 0
        %1452 = vmatpush1.bf16.msra.mxu0 0
        %1453 = vmatprep.subr.bf16.mxu0 0
        %1454 = vmatpush1.bf16.msra.mxu0 0
        %1455 = vmatprep.mubr.bf16.mxu0 0
        %1456 = vmatmul.mubr.bf16.gmra.mrb[0].mxu0 %v529
        %v1457 = vpop.f32.mrb[0].mxu0
        %v1458 = vadd.f32 %v1409, %v1457
        %v1459 = vpop.f32.mrb[0].mxu0
        %v1460 = vpop.f32.mrb[0].mxu0
        %v1461 = vpop.f32.mrb[0].mxu0
        %1462 = vdwg.mxu0
        %v1463 = vpack.c.bf16 %v1458, %v1458
        %s1464 = scalar_lea.vmem %s4, 32
        %v1465 = vld [vmem:[%s1464] sm:$0xf]
        %v1466 = vld [vmem:[%s1464 + $0x4] sm:$0xf]
        %v1467 = vld [vmem:[%s1464 + $0x8] sm:$0xf]
        %v1468 = vld [vmem:[%s1464 + $0xc] sm:$0xf]
        %s1469 = scalar_lea.vmem %s8, 2
        %v1470 = vld [vmem:[%s1469] sm:$0x1]
        %v1472 = vlaneseq
        %v1473 = vshrl.u32 %v1472, 7
        %v1474 = vsub.s32 0, %v1473
        %v1475 = vrot.slane %v1470, %v1474
        %v1481 = vunpack.c.l.b16 %v1465
        %v1482 = vunpack.c.l.b16 %v1466
        %v1483 = vunpack.c.l.b16 %v1467
        %v1484 = vunpack.c.l.b16 %v1468
        %v1485 = vpack.c.b16 %v1482, %v1481
        %v1486 = vpack.c.b16 %v1484, %v1483
        %1489 = vmatprep.subr.bf16.mxu0 0
        %1490 = vmatpush1.bf16.msra.mxu0 %v1485
        %1491 = vmatprep.subr.bf16.mxu0 0
        %1492 = vmatpush1.bf16.msra.mxu0 %v1486
        %1493 = vmatprep.subr.bf16.mxu0 0
        %1494 = vmatpush1.bf16.msra.mxu0 0
        %1495 = vmatprep.subr.bf16.mxu0 0
        %1496 = vmatpush1.bf16.msra.mxu0 0
        %1497 = vmatprep.subr.bf16.mxu0 0
        %1498 = vmatpush1.bf16.msra.mxu0 0
        %1499 = vmatprep.subr.bf16.mxu0 0
        %1500 = vmatpush1.bf16.msra.mxu0 0
        %1501 = vmatprep.subr.bf16.mxu0 0
        %1502 = vmatpush1.bf16.msra.mxu0 0
        %1503 = vmatprep.subr.bf16.mxu0 0
        %1504 = vmatpush1.bf16.msra.mxu0 0
        %1505 = vmatprep.subr.bf16.mxu0 0
        %1506 = vmatpush1.bf16.msra.mxu0 0
        %1507 = vmatprep.subr.bf16.mxu0 0
        %1508 = vmatpush1.bf16.msra.mxu0 0
        %1509 = vmatprep.subr.bf16.mxu0 0
        %1510 = vmatpush1.bf16.msra.mxu0 0
        %1511 = vmatprep.subr.bf16.mxu0 0
        %1512 = vmatpush1.bf16.msra.mxu0 0
        %1513 = vmatprep.subr.bf16.mxu0 0
        %1514 = vmatpush1.bf16.msra.mxu0 0
        %1515 = vmatprep.subr.bf16.mxu0 0
        %1516 = vmatpush1.bf16.msra.mxu0 0
        %1517 = vmatprep.subr.bf16.mxu0 0
        %1518 = vmatpush1.bf16.msra.mxu0 0
        %1519 = vmatprep.subr.bf16.mxu0 0
        %1520 = vmatpush1.bf16.msra.mxu0 0
        %1521 = vmatprep.mubr.bf16.mxu0 0
        %1522 = vmatmul.mubr.bf16.gmra.mrb[0].mxu0 %v614
        %v1523 = vpop.f32.mrb[0].mxu0
        %v1524 = vadd.f32 %v1475, %v1523
        %v1525 = vpop.f32.mrb[0].mxu0
        %v1526 = vpop.f32.mrb[0].mxu0
        %v1527 = vadd.f32 %v1475, %v1526
        %v1528 = vpop.f32.mrb[0].mxu0
        %1529 = vmatprep.mubr.bf16.mxu0 0
        %1530 = vmatmul.mubr.bf16.gmra.mrb[0].mxu0 %v617
        %v1531 = vpop.f32.mrb[0].mxu0
        %v1532 = vadd.f32 %v1475, %v1531
        %v1533 = vpop.f32.mrb[0].mxu0
        %v1534 = vpop.f32.mrb[0].mxu0
        %v1535 = vadd.f32 %v1475, %v1534
        %v1536 = vpop.f32.mrb[0].mxu0
        %1537 = vmatprep.mubr.bf16.mxu0 0
        %1538 = vmatmul.mubr.bf16.gmra.mrb[0].mxu0 %v620
        %v1539 = vpop.f32.mrb[0].mxu0
        %v1540 = vadd.f32 %v1475, %v1539
        %v1541 = vpop.f32.mrb[0].mxu0
        %v1542 = vpop.f32.mrb[0].mxu0
        %v1543 = vadd.f32 %v1475, %v1542
        %v1544 = vpop.f32.mrb[0].mxu0
        %1545 = vmatprep.mubr.bf16.mxu0 0
        %1546 = vmatmul.mubr.bf16.gmra.mrb[0].mxu0 %v623
        %v1547 = vpop.f32.mrb[0].mxu0
        %v1548 = vadd.f32 %v1475, %v1547
        %v1549 = vpop.f32.mrb[0].mxu0
        %v1550 = vpop.f32.mrb[0].mxu0
        %v1551 = vpop.f32.mrb[0].mxu0
        %1552 = vdwg.mxu0
        %v1553 = vpack.c.bf16 %v1527, %v1524
        %v1554 = vpack.c.bf16 %v1535, %v1532
        %v1555 = vpack.c.bf16 %v1543, %v1540
        %v1556 = vpack.c.bf16 %v1548, %v1548
        %s1557 = scalar_lea.vmem %s5, 32
        %v1558 = vld [vmem:[%s1557] sm:$0xf]
        %v1559 = vld [vmem:[%s1557 + $0x4] sm:$0xf]
        %v1560 = vld [vmem:[%s1557 + $0x8] sm:$0xf]
        %v1561 = vld [vmem:[%s1557 + $0xc] sm:$0xf]
        %s1562 = scalar_lea.vmem %s9, 2
        %v1563 = vld [vmem:[%s1562] sm:$0x1]
        %v1565 = vlaneseq
        %v1566 = vshrl.u32 %v1565, 7
        %v1567 = vsub.s32 0, %v1566
        %v1568 = vrot.slane %v1563, %v1567
        %v1574 = vunpack.c.l.b16 %v1558
        %v1575 = vunpack.c.l.b16 %v1559
        %v1576 = vunpack.c.l.b16 %v1560
        %v1577 = vunpack.c.l.b16 %v1561
        %v1578 = vpack.c.b16 %v1575, %v1574
        %v1579 = vpack.c.b16 %v1577, %v1576
        %1582 = vmatprep.subr.bf16.mxu0 0
        %1583 = vmatpush1.bf16.msra.mxu0 %v1578
        %1584 = vmatprep.subr.bf16.mxu0 0
        %1585 = vmatpush1.bf16.msra.mxu0 %v1579
        %1586 = vmatprep.subr.bf16.mxu0 0
        %1587 = vmatpush1.bf16.msra.mxu0 0
        %1588 = vmatprep.subr.bf16.mxu0 0
        %1589 = vmatpush1.bf16.msra.mxu0 0
        %1590 = vmatprep.subr.bf16.mxu0 0
        %1591 = vmatpush1.bf16.msra.mxu0 0
        %1592 = vmatprep.subr.bf16.mxu0 0
        %1593 = vmatpush1.bf16.msra.mxu0 0
        %1594 = vmatprep.subr.bf16.mxu0 0
        %1595 = vmatpush1.bf16.msra.mxu0 0
        %1596 = vmatprep.subr.bf16.mxu0 0
        %1597 = vmatpush1.bf16.msra.mxu0 0
        %1598 = vmatprep.subr.bf16.mxu0 0
        %1599 = vmatpush1.bf16.msra.mxu0 0
        %1600 = vmatprep.subr.bf16.mxu0 0
        %1601 = vmatpush1.bf16.msra.mxu0 0
        %1602 = vmatprep.subr.bf16.mxu0 0
        %1603 = vmatpush1.bf16.msra.mxu0 0
        %1604 = vmatprep.subr.bf16.mxu0 0
        %1605 = vmatpush1.bf16.msra.mxu0 0
        %1606 = vmatprep.subr.bf16.mxu0 0
        %1607 = vmatpush1.bf16.msra.mxu0 0
        %1608 = vmatprep.subr.bf16.mxu0 0
        %1609 = vmatpush1.bf16.msra.mxu0 0
        %1610 = vmatprep.subr.bf16.mxu0 0
        %1611 = vmatpush1.bf16.msra.mxu0 0
        %1612 = vmatprep.subr.bf16.mxu0 0
        %1613 = vmatpush1.bf16.msra.mxu0 0
        %1614 = vmatprep.mubr.bf16.mxu0 0
        %1615 = vmatmul.mubr.bf16.gmra.mrb[0].mxu0 %v735
        %v1616 = vpop.f32.mrb[0].mxu0
        %v1617 = vadd.f32 %v1568, %v1616
        %v1618 = vpop.f32.mrb[0].mxu0
        %v1619 = vpop.f32.mrb[0].mxu0
        %v1620 = vadd.f32 %v1568, %v1619
        %v1621 = vpop.f32.mrb[0].mxu0
        %1622 = vmatprep.mubr.bf16.mxu0 0
        %1623 = vmatmul.mubr.bf16.gmra.mrb[0].mxu0 %v738
        %v1624 = vpop.f32.mrb[0].mxu0
        %v1625 = vadd.f32 %v1568, %v1624
        %v1626 = vpop.f32.mrb[0].mxu0
        %v1627 = vpop.f32.mrb[0].mxu0
        %v1628 = vadd.f32 %v1568, %v1627
        %v1629 = vpop.f32.mrb[0].mxu0
        %1630 = vmatprep.mubr.bf16.mxu0 0
        %1631 = vmatmul.mubr.bf16.gmra.mrb[0].mxu0 %v741
        %v1632 = vpop.f32.mrb[0].mxu0
        %v1633 = vadd.f32 %v1568, %v1632
        %v1634 = vpop.f32.mrb[0].mxu0
        %v1635 = vpop.f32.mrb[0].mxu0
        %v1636 = vadd.f32 %v1568, %v1635
        %v1637 = vpop.f32.mrb[0].mxu0
        %1638 = vmatprep.mubr.bf16.mxu0 0
        %1639 = vmatmul.mubr.bf16.gmra.mrb[0].mxu0 %v744
        %v1640 = vpop.f32.mrb[0].mxu0
        %v1641 = vadd.f32 %v1568, %v1640
        %v1642 = vpop.f32.mrb[0].mxu0
        %v1643 = vpop.f32.mrb[0].mxu0
        %v1644 = vpop.f32.mrb[0].mxu0
        %1645 = vdwg.mxu0
        %v1646 = vpack.c.bf16 %v1620, %v1617
        %v1647 = vpack.c.bf16 %v1628, %v1625
        %v1648 = vpack.c.bf16 %v1636, %v1633
        %v1649 = vpack.c.bf16 %v1641, %v1641
        %v1651 = vsel %vm814, %v1463, 0
        %v1654 = vsel %vm814, %v1553, 0
        %v1657 = vsel %vm814, %v1554, 0
        %v1660 = vsel %vm814, %v1555, 0
        %v1663 = vsel %vm814, %v1556, 0
        %1665 = vmatprep.subr.bf16.mxu0 0
        %1666 = vmatpush1.bf16.xpose.msra.mxu0 %v1654
        %1667 = vmatprep.subr.bf16.mxu0 0
        %1668 = vmatpush1.bf16.xpose.msra.mxu0 %v1657
        %1669 = vmatprep.subr.bf16.mxu0 0
        %1670 = vmatpush1.bf16.xpose.msra.mxu0 %v1660
        %1671 = vmatprep.subr.bf16.mxu0 0
        %1672 = vmatpush1.bf16.xpose.msra.mxu0 %v1663
        %1673 = vmatprep.subr.bf16.mxu0 0
        %1674 = vmatpush1.bf16.xpose.msra.mxu0 0
        %1675 = vmatprep.subr.bf16.mxu0 0
        %1676 = vmatpush1.bf16.xpose.msra.mxu0 0
        %1677 = vmatprep.subr.bf16.mxu0 0
        %1678 = vmatpush1.bf16.xpose.msra.mxu0 0
        %1679 = vmatprep.subr.bf16.mxu0 0
        %1680 = vmatpush1.bf16.xpose.msra.mxu0 0
        %1681 = vmatprep.subr.bf16.mxu0 0
        %1682 = vmatpush1.bf16.xpose.msra.mxu0 0
        %1683 = vmatprep.subr.bf16.mxu0 0
        %1684 = vmatpush1.bf16.xpose.msra.mxu0 0
        %1685 = vmatprep.subr.bf16.mxu0 0
        %1686 = vmatpush1.bf16.xpose.msra.mxu0 0
        %1687 = vmatprep.subr.bf16.mxu0 0
        %1688 = vmatpush1.bf16.xpose.msra.mxu0 0
        %1689 = vmatprep.subr.bf16.mxu0 0
        %1690 = vmatpush1.bf16.xpose.msra.mxu0 0
        %1691 = vmatprep.subr.bf16.mxu0 0
        %1692 = vmatpush1.bf16.xpose.msra.mxu0 0
        %1693 = vmatprep.subr.bf16.mxu0 0
        %1694 = vmatpush1.bf16.xpose.msra.mxu0 0
        %1695 = vmatprep.subr.bf16.mxu0 0
        %1696 = vmatpush1.bf16.xpose.msra.mxu0 0
        %1697 = vmatprep.mubr.bf16.mxu0 0
        %1698 = vmatmul.mubr.bf16.gmra.mrb[0].mxu0 %v1651
        %v1699 = vpop.f32.mrb[0].mxu0
        %v1700 = vadd.f32 0.0, %v1699
        %v1701 = vpop.f32.mrb[0].mxu0
        %v1702 = vpop.f32.mrb[0].mxu0
        %v1703 = vpop.f32.mrb[0].mxu0
        %1704 = vdwg.mxu0
        %v1705 = vsel %vm870, %v1700, -inf
        %1706 = vmax.xlane.f32.xlu0 %v1705
        %v1707 = vpop.xlane.xlu0 %1706
        %v1708 = vsub.f32 %v1700, %v1707
        %v1709 = vmul.f32 %v1708, 1.442695
        %v1710 = vpow.pop %v1709
        %v1711 = vsel %vm870, %v1710, 0.0
        %1712 = vadd.xlane.f32.xlu0 %v1711
        %v1713 = vpop.xlane.xlu0 %1712
        %v1714 = vrcp.pop %v1713
        %v1715 = vmul.f32 %v1710, %v1714
        %s1716 = scalar_lea.vmem %s469, 16 [#allocation4]
        %1717 = vst.msk [vmem:[%s1716] sm:$0xff] %vm870, %v1715
        %v1718 = vpack.c.bf16 %v1715, %v1715
        %v1720 = vsel %vm870, %v1718, 0
        %v1723 = vand.u32 %v1649, %v889
        %1725 = vmatprep.subr.bf16.mxu0 0
        %1726 = vmatpush1.bf16.msra.mxu0 %v1646
        %1727 = vmatprep.subr.bf16.mxu0 0
        %1728 = vmatpush1.bf16.msra.mxu0 %v1647
        %1729 = vmatprep.subr.bf16.mxu0 0
        %1730 = vmatpush1.bf16.msra.mxu0 %v1648
        %1731 = vmatprep.subr.bf16.mxu0 0
        %1732 = vmatpush1.bf16.msra.mxu0 %v1723
        %1733 = vmatprep.subr.bf16.mxu0 0
        %1734 = vmatpush1.bf16.msra.mxu0 0
        %1735 = vmatprep.subr.bf16.mxu0 0
        %1736 = vmatpush1.bf16.msra.mxu0 0
        %1737 = vmatprep.subr.bf16.mxu0 0
        %1738 = vmatpush1.bf16.msra.mxu0 0
        %1739 = vmatprep.subr.bf16.mxu0 0
        %1740 = vmatpush1.bf16.msra.mxu0 0
        %1741 = vmatprep.subr.bf16.mxu0 0
        %1742 = vmatpush1.bf16.msra.mxu0 0
        %1743 = vmatprep.subr.bf16.mxu0 0
        %1744 = vmatpush1.bf16.msra.mxu0 0
        %1745 = vmatprep.subr.bf16.mxu0 0
        %1746 = vmatpush1.bf16.msra.mxu0 0
        %1747 = vmatprep.subr.bf16.mxu0 0
        %1748 = vmatpush1.bf16.msra.mxu0 0
        %1749 = vmatprep.subr.bf16.mxu0 0
        %1750 = vmatpush1.bf16.msra.mxu0 0
        %1751 = vmatprep.subr.bf16.mxu0 0
        %1752 = vmatpush1.bf16.msra.mxu0 0
        %1753 = vmatprep.subr.bf16.mxu0 0
        %1754 = vmatpush1.bf16.msra.mxu0 0
        %1755 = vmatprep.subr.bf16.mxu0 0
        %1756 = vmatpush1.bf16.msra.mxu0 0
        %1757 = vmatprep.mubr.bf16.mxu0 0
        %1758 = vmatmul.mubr.bf16.gmra.mrb[0].mxu0 %v1720
        %v1759 = vpop.f32.mrb[0].mxu0
        %v1760 = vadd.f32 0.0, %v1759
        %v1761 = vpop.f32.mrb[0].mxu0
        %v1762 = vpop.f32.mrb[0].mxu0
        %v1763 = vpop.f32.mrb[0].mxu0
        %1764 = vdwg.mxu0
        %v1765 = vpack.c.bf16 %v1760, %v1760
        %s1766 = scalar_lea.vmem %s6, 8
        %v1767 = vld [vmem:[%s1766] sm:$0xf]
        %v1769 = vsel %vm814, %v1765, 0
        %v1772 = vsel %vm1308, %v1767, 0
        %1774 = vmatprep.subr.bf16.mxu0 0
        %1775 = vmatpush1.bf16.msra.mxu0 %v1772
        %1776 = vmatprep.subr.bf16.mxu0 0
        %1777 = vmatpush1.bf16.msra.mxu0 0
        %1778 = vmatprep.subr.bf16.mxu0 0
        %1779 = vmatpush1.bf16.msra.mxu0 0
        %1780 = vmatprep.subr.bf16.mxu0 0
        %1781 = vmatpush1.bf16.msra.mxu0 0
        %1782 = vmatprep.subr.bf16.mxu0 0
        %1783 = vmatpush1.bf16.msra.mxu0 0
        %1784 = vmatprep.subr.bf16.mxu0 0
        %1785 = vmatpush1.bf16.msra.mxu0 0
        %1786 = vmatprep.subr.bf16.mxu0 0
        %1787 = vmatpush1.bf16.msra.mxu0 0
        %1788 = vmatprep.subr.bf16.mxu0 0
        %1789 = vmatpush1.bf16.msra.mxu0 0
        %1790 = vmatprep.subr.bf16.mxu0 0
        %1791 = vmatpush1.bf16.msra.mxu0 0
        %1792 = vmatprep.subr.bf16.mxu0 0
        %1793 = vmatpush1.bf16.msra.mxu0 0
        %1794 = vmatprep.subr.bf16.mxu0 0
        %1795 = vmatpush1.bf16.msra.mxu0 0
        %1796 = vmatprep.subr.bf16.mxu0 0
        %1797 = vmatpush1.bf16.msra.mxu0 0
        %1798 = vmatprep.subr.bf16.mxu0 0
        %1799 = vmatpush1.bf16.msra.mxu0 0
        %1800 = vmatprep.subr.bf16.mxu0 0
        %1801 = vmatpush1.bf16.msra.mxu0 0
        %1802 = vmatprep.subr.bf16.mxu0 0
        %1803 = vmatpush1.bf16.msra.mxu0 0
        %1804 = vmatprep.subr.bf16.mxu0 0
        %1805 = vmatpush1.bf16.msra.mxu0 0
        %1806 = vmatprep.mubr.bf16.mxu0 0
        %1807 = vmatmul.mubr.bf16.gmra.mrb[0].mxu0 %v1769
        %v1808 = vpop.f32.mrb[0].mxu0
        %v1809 = vadd.f32 0.0, %v1808
        %v1810 = vpop.f32.mrb[0].mxu0
        %v1811 = vpop.f32.mrb[0].mxu0
        %v1812 = vpop.f32.mrb[0].mxu0
        %1813 = vdwg.mxu0
        %v1814 = vadd.f32 %v1393, %v1809
        %s1815 = scalar_lea.vmem %s3, 48
        %v1816 = vld [vmem:[%s1815] sm:$0xf]
        %v1817 = vld [vmem:[%s1815 + $0x4] sm:$0xf]
        %v1818 = vld [vmem:[%s1815 + $0x8] sm:$0xf]
        %v1819 = vld [vmem:[%s1815 + $0xc] sm:$0xf]
        %s1820 = scalar_lea.vmem %s7, 3
        %v1821 = vld [vmem:[%s1820] sm:$0x1]
        %v1823 = vlaneseq
        %v1824 = vshrl.u32 %v1823, 7
        %v1825 = vsub.s32 0, %v1824
        %v1826 = vrot.slane %v1821, %v1825
        %v1832 = vunpack.c.l.b16 %v1816
        %v1833 = vunpack.c.l.b16 %v1817
        %v1834 = vunpack.c.l.b16 %v1818
        %v1835 = vunpack.c.l.b16 %v1819
        %v1836 = vpack.c.b16 %v1833, %v1832
        %v1837 = vpack.c.b16 %v1835, %v1834
        %1840 = vmatprep.subr.bf16.mxu0 0
        %1841 = vmatpush1.bf16.msra.mxu0 %v1836
        %1842 = vmatprep.subr.bf16.mxu0 0
        %1843 = vmatpush1.bf16.msra.mxu0 %v1837
        %1844 = vmatprep.subr.bf16.mxu0 0
        %1845 = vmatpush1.bf16.msra.mxu0 0
        %1846 = vmatprep.subr.bf16.mxu0 0
        %1847 = vmatpush1.bf16.msra.mxu0 0
        %1848 = vmatprep.subr.bf16.mxu0 0
        %1849 = vmatpush1.bf16.msra.mxu0 0
        %1850 = vmatprep.subr.bf16.mxu0 0
        %1851 = vmatpush1.bf16.msra.mxu0 0
        %1852 = vmatprep.subr.bf16.mxu0 0
        %1853 = vmatpush1.bf16.msra.mxu0 0
        %1854 = vmatprep.subr.bf16.mxu0 0
        %1855 = vmatpush1.bf16.msra.mxu0 0
        %1856 = vmatprep.subr.bf16.mxu0 0
        %1857 = vmatpush1.bf16.msra.mxu0 0
        %1858 = vmatprep.subr.bf16.mxu0 0
        %1859 = vmatpush1.bf16.msra.mxu0 0
        %1860 = vmatprep.subr.bf16.mxu0 0
        %1861 = vmatpush1.bf16.msra.mxu0 0
        %1862 = vmatprep.subr.bf16.mxu0 0
        %1863 = vmatpush1.bf16.msra.mxu0 0
        %1864 = vmatprep.subr.bf16.mxu0 0
        %1865 = vmatpush1.bf16.msra.mxu0 0
        %1866 = vmatprep.subr.bf16.mxu0 0
        %1867 = vmatpush1.bf16.msra.mxu0 0
        %1868 = vmatprep.subr.bf16.mxu0 0
        %1869 = vmatpush1.bf16.msra.mxu0 0
        %1870 = vmatprep.subr.bf16.mxu0 0
        %1871 = vmatpush1.bf16.msra.mxu0 0
        %1872 = vmatprep.mubr.bf16.mxu0 0
        %1873 = vmatmul.mubr.bf16.gmra.mrb[0].mxu0 %v529
        %v1874 = vpop.f32.mrb[0].mxu0
        %v1875 = vadd.f32 %v1826, %v1874
        %v1876 = vpop.f32.mrb[0].mxu0
        %v1877 = vpop.f32.mrb[0].mxu0
        %v1878 = vpop.f32.mrb[0].mxu0
        %1879 = vdwg.mxu0
        %v1880 = vpack.c.bf16 %v1875, %v1875
        %s1881 = scalar_lea.vmem %s4, 48
        %v1882 = vld [vmem:[%s1881] sm:$0xf]
        %v1883 = vld [vmem:[%s1881 + $0x4] sm:$0xf]
        %v1884 = vld [vmem:[%s1881 + $0x8] sm:$0xf]
        %v1885 = vld [vmem:[%s1881 + $0xc] sm:$0xf]
        %s1886 = scalar_lea.vmem %s8, 3
        %v1887 = vld [vmem:[%s1886] sm:$0x1]
        %v1889 = vlaneseq
        %v1890 = vshrl.u32 %v1889, 7
        %v1891 = vsub.s32 0, %v1890
        %v1892 = vrot.slane %v1887, %v1891
        %v1898 = vunpack.c.l.b16 %v1882
        %v1899 = vunpack.c.l.b16 %v1883
        %v1900 = vunpack.c.l.b16 %v1884
        %v1901 = vunpack.c.l.b16 %v1885
        %v1902 = vpack.c.b16 %v1899, %v1898
        %v1903 = vpack.c.b16 %v1901, %v1900
        %1906 = vmatprep.subr.bf16.mxu0 0
        %1907 = vmatpush1.bf16.msra.mxu0 %v1902
        %1908 = vmatprep.subr.bf16.mxu0 0
        %1909 = vmatpush1.bf16.msra.mxu0 %v1903
        %1910 = vmatprep.subr.bf16.mxu0 0
        %1911 = vmatpush1.bf16.msra.mxu0 0
        %1912 = vmatprep.subr.bf16.mxu0 0
        %1913 = vmatpush1.bf16.msra.mxu0 0
        %1914 = vmatprep.subr.bf16.mxu0 0
        %1915 = vmatpush1.bf16.msra.mxu0 0
        %1916 = vmatprep.subr.bf16.mxu0 0
        %1917 = vmatpush1.bf16.msra.mxu0 0
        %1918 = vmatprep.subr.bf16.mxu0 0
        %1919 = vmatpush1.bf16.msra.mxu0 0
        %1920 = vmatprep.subr.bf16.mxu0 0
        %1921 = vmatpush1.bf16.msra.mxu0 0
        %1922 = vmatprep.subr.bf16.mxu0 0
        %1923 = vmatpush1.bf16.msra.mxu0 0
        %1924 = vmatprep.subr.bf16.mxu0 0
        %1925 = vmatpush1.bf16.msra.mxu0 0
        %1926 = vmatprep.subr.bf16.mxu0 0
        %1927 = vmatpush1.bf16.msra.mxu0 0
        %1928 = vmatprep.subr.bf16.mxu0 0
        %1929 = vmatpush1.bf16.msra.mxu0 0
        %1930 = vmatprep.subr.bf16.mxu0 0
        %1931 = vmatpush1.bf16.msra.mxu0 0
        %1932 = vmatprep.subr.bf16.mxu0 0
        %1933 = vmatpush1.bf16.msra.mxu0 0
        %1934 = vmatprep.subr.bf16.mxu0 0
        %1935 = vmatpush1.bf16.msra.mxu0 0
        %1936 = vmatprep.subr.bf16.mxu0 0
        %1937 = vmatpush1.bf16.msra.mxu0 0
        %1938 = vmatprep.mubr.bf16.mxu0 0
        %1939 = vmatmul.mubr.bf16.gmra.mrb[0].mxu0 %v614
        %v1940 = vpop.f32.mrb[0].mxu0
        %v1941 = vadd.f32 %v1892, %v1940
        %v1942 = vpop.f32.mrb[0].mxu0
        %v1943 = vpop.f32.mrb[0].mxu0
        %v1944 = vadd.f32 %v1892, %v1943
        %v1945 = vpop.f32.mrb[0].mxu0
        %1946 = vmatprep.mubr.bf16.mxu0 0
        %1947 = vmatmul.mubr.bf16.gmra.mrb[0].mxu0 %v617
        %v1948 = vpop.f32.mrb[0].mxu0
        %v1949 = vadd.f32 %v1892, %v1948
        %v1950 = vpop.f32.mrb[0].mxu0
        %v1951 = vpop.f32.mrb[0].mxu0
        %v1952 = vadd.f32 %v1892, %v1951
        %v1953 = vpop.f32.mrb[0].mxu0
        %1954 = vmatprep.mubr.bf16.mxu0 0
        %1955 = vmatmul.mubr.bf16.gmra.mrb[0].mxu0 %v620
        %v1956 = vpop.f32.mrb[0].mxu0
        %v1957 = vadd.f32 %v1892, %v1956
        %v1958 = vpop.f32.mrb[0].mxu0
        %v1959 = vpop.f32.mrb[0].mxu0
        %v1960 = vadd.f32 %v1892, %v1959
        %v1961 = vpop.f32.mrb[0].mxu0
        %1962 = vmatprep.mubr.bf16.mxu0 0
        %1963 = vmatmul.mubr.bf16.gmra.mrb[0].mxu0 %v623
        %v1964 = vpop.f32.mrb[0].mxu0
        %v1965 = vadd.f32 %v1892, %v1964
        %v1966 = vpop.f32.mrb[0].mxu0
        %v1967 = vpop.f32.mrb[0].mxu0
        %v1968 = vpop.f32.mrb[0].mxu0
        %1969 = vdwg.mxu0
        %v1970 = vpack.c.bf16 %v1944, %v1941
        %v1971 = vpack.c.bf16 %v1952, %v1949
        %v1972 = vpack.c.bf16 %v1960, %v1957
        %v1973 = vpack.c.bf16 %v1965, %v1965
        %s1974 = scalar_lea.vmem %s5, 48
        %v1975 = vld [vmem:[%s1974] sm:$0xf]
        %v1976 = vld [vmem:[%s1974 + $0x4] sm:$0xf]
        %v1977 = vld [vmem:[%s1974 + $0x8] sm:$0xf]
        %v1978 = vld [vmem:[%s1974 + $0xc] sm:$0xf]
        %s1979 = scalar_lea.vmem %s9, 3
        %v1980 = vld [vmem:[%s1979] sm:$0x1]
        %v1982 = vlaneseq
        %v1983 = vshrl.u32 %v1982, 7
        %v1984 = vsub.s32 0, %v1983
        %v1985 = vrot.slane %v1980, %v1984
        %v1991 = vunpack.c.l.b16 %v1975
        %v1992 = vunpack.c.l.b16 %v1976
        %v1993 = vunpack.c.l.b16 %v1977
        %v1994 = vunpack.c.l.b16 %v1978
        %v1995 = vpack.c.b16 %v1992, %v1991
        %v1996 = vpack.c.b16 %v1994, %v1993
        %1999 = vmatprep.subr.bf16.mxu0 0
        %2000 = vmatpush1.bf16.msra.mxu0 %v1995
        %2001 = vmatprep.subr.bf16.mxu0 0
        %2002 = vmatpush1.bf16.msra.mxu0 %v1996
        %2003 = vmatprep.subr.bf16.mxu0 0
        %2004 = vmatpush1.bf16.msra.mxu0 0
        %2005 = vmatprep.subr.bf16.mxu0 0
        %2006 = vmatpush1.bf16.msra.mxu0 0
        %2007 = vmatprep.subr.bf16.mxu0 0
        %2008 = vmatpush1.bf16.msra.mxu0 0
        %2009 = vmatprep.subr.bf16.mxu0 0
        %2010 = vmatpush1.bf16.msra.mxu0 0
        %2011 = vmatprep.subr.bf16.mxu0 0
        %2012 = vmatpush1.bf16.msra.mxu0 0
        %2013 = vmatprep.subr.bf16.mxu0 0
        %2014 = vmatpush1.bf16.msra.mxu0 0
        %2015 = vmatprep.subr.bf16.mxu0 0
        %2016 = vmatpush1.bf16.msra.mxu0 0
        %2017 = vmatprep.subr.bf16.mxu0 0
        %2018 = vmatpush1.bf16.msra.mxu0 0
        %2019 = vmatprep.subr.bf16.mxu0 0
        %2020 = vmatpush1.bf16.msra.mxu0 0
        %2021 = vmatprep.subr.bf16.mxu0 0
        %2022 = vmatpush1.bf16.msra.mxu0 0
        %2023 = vmatprep.subr.bf16.mxu0 0
        %2024 = vmatpush1.bf16.msra.mxu0 0
        %2025 = vmatprep.subr.bf16.mxu0 0
        %2026 = vmatpush1.bf16.msra.mxu0 0
        %2027 = vmatprep.subr.bf16.mxu0 0
        %2028 = vmatpush1.bf16.msra.mxu0 0
        %2029 = vmatprep.subr.bf16.mxu0 0
        %2030 = vmatpush1.bf16.msra.mxu0 0
        %2031 = vmatprep.mubr.bf16.mxu0 0
        %2032 = vmatmul.mubr.bf16.gmra.mrb[0].mxu0 %v735
        %v2033 = vpop.f32.mrb[0].mxu0
        %v2034 = vadd.f32 %v1985, %v2033
        %v2035 = vpop.f32.mrb[0].mxu0
        %v2036 = vpop.f32.mrb[0].mxu0
        %v2037 = vadd.f32 %v1985, %v2036
        %v2038 = vpop.f32.mrb[0].mxu0
        %2039 = vmatprep.mubr.bf16.mxu0 0
        %2040 = vmatmul.mubr.bf16.gmra.mrb[0].mxu0 %v738
        %v2041 = vpop.f32.mrb[0].mxu0
        %v2042 = vadd.f32 %v1985, %v2041
        %v2043 = vpop.f32.mrb[0].mxu0
        %v2044 = vpop.f32.mrb[0].mxu0
        %v2045 = vadd.f32 %v1985, %v2044
        %v2046 = vpop.f32.mrb[0].mxu0
        %2047 = vmatprep.mubr.bf16.mxu0 0
        %2048 = vmatmul.mubr.bf16.gmra.mrb[0].mxu0 %v741
        %v2049 = vpop.f32.mrb[0].mxu0
        %v2050 = vadd.f32 %v1985, %v2049
        %v2051 = vpop.f32.mrb[0].mxu0
        %v2052 = vpop.f32.mrb[0].mxu0
        %v2053 = vadd.f32 %v1985, %v2052
        %v2054 = vpop.f32.mrb[0].mxu0
        %2055 = vmatprep.mubr.bf16.mxu0 0
        %2056 = vmatmul.mubr.bf16.gmra.mrb[0].mxu0 %v744
        %v2057 = vpop.f32.mrb[0].mxu0
        %v2058 = vadd.f32 %v1985, %v2057
        %v2059 = vpop.f32.mrb[0].mxu0
        %v2060 = vpop.f32.mrb[0].mxu0
        %v2061 = vpop.f32.mrb[0].mxu0
        %2062 = vdwg.mxu0
        %v2063 = vpack.c.bf16 %v2037, %v2034
        %v2064 = vpack.c.bf16 %v2045, %v2042
        %v2065 = vpack.c.bf16 %v2053, %v2050
        %v2066 = vpack.c.bf16 %v2058, %v2058
        %v2068 = vsel %vm814, %v1880, 0
        %v2071 = vsel %vm814, %v1970, 0
        %v2074 = vsel %vm814, %v1971, 0
        %v2077 = vsel %vm814, %v1972, 0
        %v2080 = vsel %vm814, %v1973, 0
        %2082 = vmatprep.subr.bf16.mxu0 0
        %2083 = vmatpush1.bf16.xpose.msra.mxu0 %v2071
        %2084 = vmatprep.subr.bf16.mxu0 0
        %2085 = vmatpush1.bf16.xpose.msra.mxu0 %v2074
        %2086 = vmatprep.subr.bf16.mxu0 0
        %2087 = vmatpush1.bf16.xpose.msra.mxu0 %v2077
        %2088 = vmatprep.subr.bf16.mxu0 0
        %2089 = vmatpush1.bf16.xpose.msra.mxu0 %v2080
        %2090 = vmatprep.subr.bf16.mxu0 0
        %2091 = vmatpush1.bf16.xpose.msra.mxu0 0
        %2092 = vmatprep.subr.bf16.mxu0 0
        %2093 = vmatpush1.bf16.xpose.msra.mxu0 0
        %2094 = vmatprep.subr.bf16.mxu0 0
        %2095 = vmatpush1.bf16.xpose.msra.mxu0 0
        %2096 = vmatprep.subr.bf16.mxu0 0
        %2097 = vmatpush1.bf16.xpose.msra.mxu0 0
        %2098 = vmatprep.subr.bf16.mxu0 0
        %2099 = vmatpush1.bf16.xpose.msra.mxu0 0
        %2100 = vmatprep.subr.bf16.mxu0 0
        %2101 = vmatpush1.bf16.xpose.msra.mxu0 0
        %2102 = vmatprep.subr.bf16.mxu0 0
        %2103 = vmatpush1.bf16.xpose.msra.mxu0 0
        %2104 = vmatprep.subr.bf16.mxu0 0
        %2105 = vmatpush1.bf16.xpose.msra.mxu0 0
        %2106 = vmatprep.subr.bf16.mxu0 0
        %2107 = vmatpush1.bf16.xpose.msra.mxu0 0
        %2108 = vmatprep.subr.bf16.mxu0 0
        %2109 = vmatpush1.bf16.xpose.msra.mxu0 0
        %2110 = vmatprep.subr.bf16.mxu0 0
        %2111 = vmatpush1.bf16.xpose.msra.mxu0 0
        %2112 = vmatprep.subr.bf16.mxu0 0
        %2113 = vmatpush1.bf16.xpose.msra.mxu0 0
        %2114 = vmatprep.mubr.bf16.mxu0 0
        %2115 = vmatmul.mubr.bf16.gmra.mrb[0].mxu0 %v2068
        %v2116 = vpop.f32.mrb[0].mxu0
        %v2117 = vadd.f32 0.0, %v2116
        %v2118 = vpop.f32.mrb[0].mxu0
        %v2119 = vpop.f32.mrb[0].mxu0
        %v2120 = vpop.f32.mrb[0].mxu0
        %2121 = vdwg.mxu0
        %v2122 = vsel %vm870, %v2117, -inf
        %2123 = vmax.xlane.f32.xlu0 %v2122
        %v2124 = vpop.xlane.xlu0 %2123
        %v2125 = vsub.f32 %v2117, %v2124
        %v2126 = vmul.f32 %v2125, 1.442695
        %v2127 = vpow.pop %v2126
        %v2128 = vsel %vm870, %v2127, 0.0
        %2129 = vadd.xlane.f32.xlu0 %v2128
        %v2130 = vpop.xlane.xlu0 %2129
        %v2131 = vrcp.pop %v2130
        %v2132 = vmul.f32 %v2127, %v2131
        %s2133 = scalar_lea.vmem %s469, 24 [#allocation4]
        %2134 = vst.msk [vmem:[%s2133] sm:$0xff] %vm870, %v2132
        %v2135 = vpack.c.bf16 %v2132, %v2132
        %v2137 = vsel %vm870, %v2135, 0
        %v2140 = vand.u32 %v2066, %v889
        %2142 = vmatprep.subr.bf16.mxu0 0
        %2143 = vmatpush1.bf16.msra.mxu0 %v2063
        %2144 = vmatprep.subr.bf16.mxu0 0
        %2145 = vmatpush1.bf16.msra.mxu0 %v2064
        %2146 = vmatprep.subr.bf16.mxu0 0
        %2147 = vmatpush1.bf16.msra.mxu0 %v2065
        %2148 = vmatprep.subr.bf16.mxu0 0
        %2149 = vmatpush1.bf16.msra.mxu0 %v2140
        %2150 = vmatprep.subr.bf16.mxu0 0
        %2151 = vmatpush1.bf16.msra.mxu0 0
        %2152 = vmatprep.subr.bf16.mxu0 0
        %2153 = vmatpush1.bf16.msra.mxu0 0
        %2154 = vmatprep.subr.bf16.mxu0 0
        %2155 = vmatpush1.bf16.msra.mxu0 0
        %2156 = vmatprep.subr.bf16.mxu0 0
        %2157 = vmatpush1.bf16.msra.mxu0 0
        %2158 = vmatprep.subr.bf16.mxu0 0
        %2159 = vmatpush1.bf16.msra.mxu0 0
        %2160 = vmatprep.subr.bf16.mxu0 0
        %2161 = vmatpush1.bf16.msra.mxu0 0
        %2162 = vmatprep.subr.bf16.mxu0 0
        %2163 = vmatpush1.bf16.msra.mxu0 0
        %2164 = vmatprep.subr.bf16.mxu0 0
        %2165 = vmatpush1.bf16.msra.mxu0 0
        %2166 = vmatprep.subr.bf16.mxu0 0
        %2167 = vmatpush1.bf16.msra.mxu0 0
        %2168 = vmatprep.subr.bf16.mxu0 0
        %2169 = vmatpush1.bf16.msra.mxu0 0
        %2170 = vmatprep.subr.bf16.mxu0 0
        %2171 = vmatpush1.bf16.msra.mxu0 0
        %2172 = vmatprep.subr.bf16.mxu0 0
        %2173 = vmatpush1.bf16.msra.mxu0 0
        %2174 = vmatprep.mubr.bf16.mxu0 0
        %2175 = vmatmul.mubr.bf16.gmra.mrb[0].mxu0 %v2137
        %v2176 = vpop.f32.mrb[0].mxu0
        %v2177 = vadd.f32 0.0, %v2176
        %v2178 = vpop.f32.mrb[0].mxu0
        %v2179 = vpop.f32.mrb[0].mxu0
        %v2180 = vpop.f32.mrb[0].mxu0
        %2181 = vdwg.mxu0
        %v2182 = vpack.c.bf16 %v2177, %v2177
        %s2183 = scalar_lea.vmem %s6, 12
        %v2184 = vld [vmem:[%s2183] sm:$0xf]
        %v2186 = vsel %vm814, %v2182, 0
        %v2189 = vsel %vm1308, %v2184, 0
        %2191 = vmatprep.subr.bf16.mxu0 0
        %2192 = vmatpush1.bf16.msra.mxu0 %v2189
        %2193 = vmatprep.subr.bf16.mxu0 0
        %2194 = vmatpush1.bf16.msra.mxu0 0
        %2195 = vmatprep.subr.bf16.mxu0 0
        %2196 = vmatpush1.bf16.msra.mxu0 0
        %2197 = vmatprep.subr.bf16.mxu0 0
        %2198 = vmatpush1.bf16.msra.mxu0 0
        %2199 = vmatprep.subr.bf16.mxu0 0
        %2200 = vmatpush1.bf16.msra.mxu0 0
        %2201 = vmatprep.subr.bf16.mxu0 0
        %2202 = vmatpush1.bf16.msra.mxu0 0
        %2203 = vmatprep.subr.bf16.mxu0 0
        %2204 = vmatpush1.bf16.msra.mxu0 0
        %2205 = vmatprep.subr.bf16.mxu0 0
        %2206 = vmatpush1.bf16.msra.mxu0 0
        %2207 = vmatprep.subr.bf16.mxu0 0
        %2208 = vmatpush1.bf16.msra.mxu0 0
        %2209 = vmatprep.subr.bf16.mxu0 0
        %2210 = vmatpush1.bf16.msra.mxu0 0
        %2211 = vmatprep.subr.bf16.mxu0 0
        %2212 = vmatpush1.bf16.msra.mxu0 0
        %2213 = vmatprep.subr.bf16.mxu0 0
        %2214 = vmatpush1.bf16.msra.mxu0 0
        %2215 = vmatprep.subr.bf16.mxu0 0
        %2216 = vmatpush1.bf16.msra.mxu0 0
        %2217 = vmatprep.subr.bf16.mxu0 0
        %2218 = vmatpush1.bf16.msra.mxu0 0
        %2219 = vmatprep.subr.bf16.mxu0 0
        %2220 = vmatpush1.bf16.msra.mxu0 0
        %2221 = vmatprep.subr.bf16.mxu0 0
        %2222 = vmatpush1.bf16.msra.mxu0 0
        %2223 = vmatprep.mubr.bf16.mxu0 0
        %2224 = vmatmul.mubr.bf16.gmra.mrb[0].mxu0 %v2186
        %v2225 = vpop.f32.mrb[0].mxu0
        %v2226 = vadd.f32 0.0, %v2225
        %v2227 = vpop.f32.mrb[0].mxu0
        %v2228 = vpop.f32.mrb[0].mxu0
        %v2229 = vpop.f32.mrb[0].mxu0
        %2230 = vdwg.mxu0
        %v2231 = vadd.f32 %v1814, %v2226
        %v2232 = vld [vmem:[%s10] sm:$0x1]
        %v2234 = vlaneseq
        %v2235 = vshrl.u32 %v2234, 7
        %v2236 = vsub.s32 0, %v2235
        %v2237 = vrot.slane %v2232, %v2236
        %v2239 = vadd.f32 %v2231, %v2237
        %2240 = vst.msk [vmem:[%s462] sm:$0xff] %vm527, %v2239
        %s2241 = sand.u32 %s300, 1
        %s2242 = scalar_lea.sflag [#allocation3], %s2241
        %s2243 = sand.u32 %s300, 1
        %s2244 = smul.addr %s2243, 8
        %s2245 = scalar_lea.vmem [#allocation2], %s2244
        %s2246 = sand.u32 %s328, 1
        %s2247 = scalar_lea.sflag [#allocation5], %s2246
        %s2248 = sand.u32 %s328, 1
        %s2249 = smul.addr %s2248, 32
        %s2250 = scalar_lea.vmem [#allocation4], %s2249
        // Predicated region
        $region65: #{_linear_sra_impl.3} parent=63 // pred_check
          %p2251 = pneg %p310
        $region66: #{_linear_sra_impl.3} parent=63 // pred_check_branch
          %2253 = sbr.rel (%p2251) target = $region68
        $region67: #{_linear_sra_impl.3} parent=63 // pred_region
          %s2255 = ssub.s32 128, 128
          %2256 = vsyncadd %s2242, %s2255
          %s2257 = sadd.s32 %s35, %s34
          %s2258 = smul.addr %s2257, 128
          %s2259 = scalar_lea.hbm %s11, %s2258
          %s2261 = sshll.u32 %s2245, 4
          %s2262 = int_to_ptr.vmem [resolvable:$true] %s2261
          %2264 = dma.vmem_to_hbm [thread:$0]  %s2262, 128, %s2259, %s2242
        $region68: #{_linear_sra_impl.3} parent=63 // pred_fallthru
          _
        // Predicated region
        $region69: #{_linear_sra_impl.3} parent=63 // pred_check
          %p2265 = pneg %p338
        $region70: #{_linear_sra_impl.3} parent=63 // pred_check_branch
          %2267 = sbr.rel (%p2265) target = $region72
        $region71: #{_linear_sra_impl.3} parent=63 // pred_region
          %s2269 = ssub.s32 512, 512
          %2270 = vsyncadd %s2247, %s2269
          %s2271 = smul.addr %s34, 4
          %s2272 = sadd.s32 %s35, %s2271
          %s2273 = smul.addr %s2272, 128
          %s2274 = scalar_lea.hbm %s12, %s2273
          %s2275 = sshll.u32 %s2250, 4
          %s2276 = int_to_ptr.vmem [resolvable:$true] %s2275
          %2281 = dma.vmem_to_hbm [thread:$0]  %s2276, 512, %s2274, %s2247, 128, 128, 8
        $region72: #{_linear_sra_impl.3} parent=63 // pred_fallthru
          _
      $region64: #{_linear_sra_impl.3} parent=5 // pred_fallthru
        _
      %p2282 = scmp.le.s32.totalorder 2, %s25
      // Predicated region
      $region73: #{_linear_sra_impl.3} parent=5 // pred_check
        %p2283 = pneg %p2282
      $region74: #{_linear_sra_impl.3} parent=5 // pred_check_branch
        %2285 = sbr.rel (%p2283) target = $region76
      $region75: #{_linear_sra_impl.3} parent=5 // pred_region
        %s2286 = ssub.s32 %s25, 2
        // Predicated region
        $region77: #{_linear_sra_impl.3} parent=75 // pred_check
          %p2287 = pneg %p316
        $region78: #{_linear_sra_impl.3} parent=75 // pred_check_branch
          %2289 = sbr.rel (%p2287) target = $region80
        $region79: #{_linear_sra_impl.3} parent=75 // pred_region
          %s2290 = sand.u32 %s301, 1
          %s2291 = scalar_lea.sflag [#allocation3], %s2290
          %s2292 = sand.u32 %s301, 1
          %s2293 = smul.addr %s2292, 8
          %s2294 = scalar_lea.vmem [#allocation2], %s2293
          %2295 = dma.done %s2291, 128
        $region80: #{_linear_sra_impl.3} parent=75 // pred_fallthru
          _
        // Predicated region
        $region81: #{_linear_sra_impl.3} parent=75 // pred_check
          %p2296 = pneg %p344
        $region82: #{_linear_sra_impl.3} parent=75 // pred_check_branch
          %2298 = sbr.rel (%p2296) target = $region84
        $region83: #{_linear_sra_impl.3} parent=75 // pred_region
          %s2299 = sand.u32 %s329, 1
          %s2300 = scalar_lea.sflag [#allocation5], %s2299
          %s2301 = sand.u32 %s329, 1
          %s2302 = smul.addr %s2301, 32
          %s2303 = scalar_lea.vmem [#allocation4], %s2302
          %2304 = dma.done %s2300, 512
        $region84: #{_linear_sra_impl.3} parent=75 // pred_fallthru
          _
      $region76: #{_linear_sra_impl.3} parent=5 // pred_fallthru
        _
    $region6: #{_linear_sra_impl.3} parent=1 // loop_footer
      %s29 = sadd.s32 1, %s25
    $region7: #{_linear_sra_impl.3} parent=1 // loop_footer_branch
      %24 = sbr.rel target = $region3
    $region8: #{_linear_sra_impl.3} parent=1 // loop_exit
      _
    %2305 = vsyncpa [#allocation3], 1
    %s2306 = scalar_lea.sflag [#allocation3], 1
    %2307 = vsyncpa %s2306, 1
    %2308 = vsyncpa [#allocation5], 1
    %s2309 = scalar_lea.sflag [#allocation5], 1
    %2310 = vsyncpa %s2309, 1

</llo_original>
